<compile_context>
chip_gen: v5e
topology: v5e:2x2
jax: 0.10.0
libtpu: 0.0.40
codegen_flags: <defaults>
</compile_context>

<pallas_src>
import functools
import math

import jax
import jax.numpy as jnp
from jax.experimental import pallas as pl
from jax.experimental.pallas import tpu as pltpu


# ----------------------------------------------------------------------------
# Activation
# TODO(synk): PyTorch nn.GELU defaults to the erf form; tanh approximation
#             is used here (erf lowering inside Mosaic kernels is not relied
#             on).  Difference is < 1e-3 in practice.
# ----------------------------------------------------------------------------
_GELU_C = math.sqrt(2.0 / math.pi)


def _gelu(x):
    return 0.5 * x * (1.0 + jnp.tanh(_GELU_C * (x + 0.044715 * x * x * x)))


# ----------------------------------------------------------------------------
# Row-tiling helpers (rows = B*H*W flattened spatial x batch)
# ----------------------------------------------------------------------------
def _row_tiles(n_rows, tm_default=512):
    # >= 2 row tiles when possible (both v7x TensorCores get work);
    # tm is a multiple of 8 sublanes.
    tm = min(tm_default, max(8, n_rows // 2))
    tm = max(8, (tm // 8) * 8)
    n_pad = pl.cdiv(n_rows, tm) * tm
    return tm, n_pad


def _pad_rows(x2d, n_pad):
    n = x2d.shape[0]
    if n_pad == n:
        return x2d
    return jnp.pad(x2d, ((0, n_pad - n), (0, 0)))


# ----------------------------------------------------------------------------
# Kernel A: fused lifting  y = (x @ W1 + b1) @ W2 + b2   (no activation)
# ----------------------------------------------------------------------------
def _lift_kernel(x_ref, w1_ref, b1_ref, w2_ref, b2_ref, o_ref):
    h = jnp.dot(x_ref[...].astype(jnp.bfloat16), w1_ref[...],
                preferred_element_type=jnp.float32) + b1_ref[...]
    y = jnp.dot(h.astype(jnp.bfloat16), w2_ref[...],
                preferred_element_type=jnp.float32) + b2_ref[...]
    o_ref[...] = y.astype(o_ref.dtype)


def pallas_lift(x2d, w1, b1, w2, b2, tm_default=512):
    n_rows, cin = x2d.shape
    c1 = w1.shape[1]
    c2 = w2.shape[1]
    tm, n_pad = _row_tiles(n_rows, tm_default)
    xp = _pad_rows(x2d, n_pad)
    out = pl.pallas_call(
        _lift_kernel,
        out_shape=jax.ShapeDtypeStruct((n_pad, c2), jnp.float32),
        grid_spec=pltpu.PrefetchScalarGridSpec(
            num_scalar_prefetch=0,
            grid=(n_pad // tm,),
            in_specs=[
                pl.BlockSpec((tm, cin), lambda i: (i, 0)),
                pl.BlockSpec((cin, c1), lambda i: (0, 0)),
                pl.BlockSpec((1, c1), lambda i: (0, 0)),
                pl.BlockSpec((c1, c2), lambda i: (0, 0)),
                pl.BlockSpec((1, c2), lambda i: (0, 0)),
            ],
            out_specs=pl.BlockSpec((tm, c2), lambda i: (i, 0)),
        ),
        compiler_params=pltpu.CompilerParams(dimension_semantics=("parallel",)),
        cost_estimate=pl.CostEstimate(
            flops=2 * n_pad * (cin * c1 + c1 * c2),
            transcendentals=0,
            bytes_accessed=4 * (n_pad * cin + cin * c1 + c1 * c2 + n_pad * c2),
        ),
    )(xp,
      w1.astype(jnp.bfloat16), b1.reshape(1, c1).astype(jnp.float32),
      w2.astype(jnp.bfloat16), b2.reshape(1, c2).astype(jnp.float32))
    return out[:n_rows] if n_pad != n_rows else out


# ----------------------------------------------------------------------------
# Kernel B: fused projection  y = gelu(x @ Wq + bq) @ Wf + bf
# ----------------------------------------------------------------------------
def _proj_kernel(x_ref, wq_ref, bq_ref, wf_ref, bf_ref, o_ref):
    h = jnp.dot(x_ref[...].astype(jnp.bfloat16), wq_ref[...],
                preferred_element_type=jnp.float32) + bq_ref[...]
    h = _gelu(h)
    y = jnp.dot(h.astype(jnp.bfloat16), wf_ref[...],
                preferred_element_type=jnp.float32) + bf_ref[...]
    o_ref[...] = y.astype(o_ref.dtype)


def pallas_proj(x2d, wq, bq, wf, bf, tm_default=512):
    n_rows, cmid = x2d.shape
    cproj = wq.shape[1]
    cout = wf.shape[1]
    tm, n_pad = _row_tiles(n_rows, tm_default)
    xp = _pad_rows(x2d, n_pad)
    out = pl.pallas_call(
        _proj_kernel,
        out_shape=jax.ShapeDtypeStruct((n_pad, cout), jnp.float32),
        grid_spec=pltpu.PrefetchScalarGridSpec(
            num_scalar_prefetch=0,
            grid=(n_pad // tm,),
            in_specs=[
                pl.BlockSpec((tm, cmid), lambda i: (i, 0)),
                pl.BlockSpec((cmid, cproj), lambda i: (0, 0)),
                pl.BlockSpec((1, cproj), lambda i: (0, 0)),
                pl.BlockSpec((cproj, cout), lambda i: (0, 0)),
                pl.BlockSpec((1, cout), lambda i: (0, 0)),
            ],
            out_specs=pl.BlockSpec((tm, cout), lambda i: (i, 0)),
        ),
        compiler_params=pltpu.CompilerParams(dimension_semantics=("parallel",)),
        cost_estimate=pl.CostEstimate(
            flops=2 * n_pad * (cmid * cproj + cproj * cout),
            transcendentals=n_pad * cproj,
            bytes_accessed=4 * (n_pad * cmid + cmid * cproj + cproj * cout
                                + n_pad * cout),
        ),
    )(xp,
      wq.astype(jnp.bfloat16), bq.reshape(1, cproj).astype(jnp.float32),
      wf.astype(jnp.bfloat16), bf.reshape(1, cout).astype(jnp.float32))
    return out[:n_rows] if n_pad != n_rows else out


# ----------------------------------------------------------------------------
# Kernel C: Fourier-block combine  y = gelu(spec + x @ W + b)
#           (spectral branch + 1x1-conv bypass + activation, fused)
# ----------------------------------------------------------------------------
def _mix_kernel(spec_ref, x_ref, w_ref, b_ref, o_ref):
    acc = jnp.dot(x_ref[...].astype(jnp.bfloat16), w_ref[...],
                  preferred_element_type=jnp.float32)
    acc = acc + b_ref[...] + spec_ref[...]
    o_ref[...] = _gelu(acc).astype(o_ref.dtype)


def pallas_fourier_mix(spec2d, x2d, w, b, tm_default=512):
    n_rows, c = x2d.shape
    tm, n_pad = _row_tiles(n_rows, tm_default)
    xp = _pad_rows(x2d, n_pad)
    sp = _pad_rows(spec2d, n_pad)
    out = pl.pallas_call(
        _mix_kernel,
        out_shape=jax.ShapeDtypeStruct((n_pad, c), jnp.float32),
        grid_spec=pltpu.PrefetchScalarGridSpec(
            num_scalar_prefetch=0,
            grid=(n_pad // tm,),
            in_specs=[
                pl.BlockSpec((tm, c), lambda i: (i, 0)),
                pl.BlockSpec((tm, c), lambda i: (i, 0)),
                pl.BlockSpec((c, c), lambda i: (0, 0)),
                pl.BlockSpec((1, c), lambda i: (0, 0)),
            ],
            out_specs=pl.BlockSpec((tm, c), lambda i: (i, 0)),
        ),
        compiler_params=pltpu.CompilerParams(dimension_semantics=("parallel",)),
        cost_estimate=pl.CostEstimate(
            flops=2 * n_pad * c * c,
            transcendentals=n_pad * c,
            bytes_accessed=4 * (3 * n_pad * c + c * c + c),
        ),
    )(sp, xp, w.astype(jnp.bfloat16), b.reshape(1, c).astype(jnp.float32))
    return out[:n_rows] if n_pad != n_rows else out


# ----------------------------------------------------------------------------
# Kernel D: spectral channel mix over retained modes (complex-as-real stacked)
#   x_stack : [M, B, 2*C]   = [xr | xi]
#   w_stack : [M, 2*C, 2*C] = [[wr, wi], [-wi, wr]]
#   out     : [M, B, 2*C]   -> out[..., :C] = real, out[..., C:] = imag
# ----------------------------------------------------------------------------
def _spectral_kernel(x_ref, w_ref, o_ref):
    o_ref[...] = jnp.einsum(
        "mbk,mkn->mbn", x_ref[...], w_ref[...],
        preferred_element_type=jnp.float32).astype(o_ref.dtype)


def _choose_mode_block(n_modes, two_c):
    # Cap the per-step weight slab so (double-buffered) blocks stay well under
    # the 64 MiB v7x VMEM, and keep >= 2 grid steps for the two v7x cores.
    per_mode_bytes = two_c * two_c * 4
    cap = max(1, (8 * 1024 * 1024) // per_mode_bytes)
    n_blk = max(2 if n_modes >= 2 else 1, pl.cdiv(n_modes, cap))
    while n_modes % n_blk:
        n_blk += 1
    return n_modes // n_blk


def pallas_spectral_mix(x_stack, w_stack):
    n_modes, batch, two_c = x_stack.shape
    mblk = _choose_mode_block(n_modes, two_c)
    return pl.pallas_call(
        _spectral_kernel,
        out_shape=jax.ShapeDtypeStruct((n_modes, batch, two_c), jnp.float32),
        grid_spec=pltpu.PrefetchScalarGridSpec(
            num_scalar_prefetch=0,
            grid=(n_modes // mblk,),
            in_specs=[
                pl.BlockSpec((mblk, batch, two_c), lambda m: (m, 0, 0)),
                pl.BlockSpec((mblk, two_c, two_c), lambda m: (m, 0, 0)),
            ],
            out_specs=pl.BlockSpec((mblk, batch, two_c), lambda m: (m, 0, 0)),
        ),
        compiler_params=pltpu.CompilerParams(
            dimension_semantics=("parallel",),
            vmem_limit_bytes=32 * 1024 * 1024,
        ),
        cost_estimate=pl.CostEstimate(
            flops=2 * n_modes * batch * two_c * two_c,
            transcendentals=0,
            bytes_accessed=4 * (2 * n_modes * batch * two_c
                                + n_modes * two_c * two_c),
        ),
    )(x_stack, w_stack)


# ----------------------------------------------------------------------------
# Fourier block (SpectralConv2d + 1x1 conv bypass + activation), NHWC layout
# ----------------------------------------------------------------------------
def fourier_block(x_nhwc, blk, m1, m2):
    b, h, w, c = x_nhwc.shape
    wf = w // 2 + 1

    # TODO(synk): no Pallas FFT primitive on TPU -> jnp.fft here.
    x_ft = jnp.fft.rfft2(x_nhwc, axes=(1, 2))       # [B, H, Wf, C] complex64
    top = x_ft[:, :m1, :m2, :]                      # low positive frequencies
    bot = x_ft[:, h - m1:, :m2, :]                  # low negative frequencies

    def to_mbc(z):  # [B, m1, m2, C] -> [m1*m2, B, C]
        return jnp.transpose(z, (1, 2, 0, 3)).reshape(m1 * m2, b, c)

    xr = jnp.concatenate([to_mbc(top.real), to_mbc(bot.real)], axis=0)
    xi = jnp.concatenate([to_mbc(top.imag), to_mbc(bot.imag)], axis=0)
    x_stack = jnp.concatenate([xr, xi], axis=-1).astype(jnp.float32)  # [M,B,2C]

    out = pallas_spectral_mix(x_stack, blk["w_stack"])   # [M, B, 2C]
    out_c = (out[..., :c] + 1j * out[..., c:]).astype(jnp.complex64)

    def from_mbc(z):  # [m1*m2, B, C] -> [B, m1, m2, C]
        return jnp.transpose(z.reshape(m1, m2, b, c), (2, 0, 1, 3))

    top_out = from_mbc(out_c[: m1 * m2])
    bot_out = from_mbc(out_c[m1 * m2:])

    # Assemble the low-mode spectrum via pad/concat (no zeros + scatter).
    zero_w = jnp.zeros((b, m1, wf - m2, c), jnp.complex64)
    top_full = jnp.concatenate([top_out, zero_w], axis=2)        # [B, m1, Wf, C]
    bot_full = jnp.concatenate([bot_out, zero_w], axis=2)
    mid = jnp.zeros((b, h - 2 * m1, wf, c), jnp.complex64)
    out_ft = jnp.concatenate([top_full, mid, bot_full], axis=1)  # [B, H, Wf, C]

    spec = jnp.fft.irfft2(out_ft, s=(h, w), axes=(1, 2)).astype(jnp.float32)

    # Fused: 1x1 conv bypass + spectral add + activation (Pallas).
    y2d = pallas_fourier_mix(spec.reshape(b * h * w, c),
                             x_nhwc.reshape(b * h * w, c),
                             blk["conv_w"], blk["conv_b"])
    return y2d.reshape(b, h, w, c)


# ----------------------------------------------------------------------------
# Full FNO forward (input/output NCHW, internally channels-last)
# ----------------------------------------------------------------------------
def fno_forward(x, params, modes):
    b, cin, h, w = x.shape
    m1, m2 = modes

    x_nhwc = jnp.transpose(x, (0, 2, 3, 1))                     # one transpose in
    h2d = pallas_lift(x_nhwc.reshape(b * h * w, cin),
                      params["p1_w"], params["p1_b"],
                      params["p2_w"], params["p2_b"])
    c = h2d.shape[-1]
    feat = h2d.reshape(b, h, w, c)

    for blk in params["blocks"]:
        feat = fourier_block(feat, blk, m1, m2)

    y2d = pallas_proj(feat.reshape(b * h * w, c),
                      params["q1_w"], params["q1_b"],
                      params["final_w"], params["final_b"])
    cout = y2d.shape[-1]
    return jnp.transpose(y2d.reshape(b, h, w, cout), (0, 3, 1, 2))  # one transpose out


# ----------------------------------------------------------------------------
# Parameter construction (shapes match the nn.Module __init__)
# ----------------------------------------------------------------------------
def _stack_complex_weight(wr, wi):
    # [[wr, wi], [-wi, wr]]  :  [M, 2C, 2C]
    top = jnp.concatenate([wr, wi], axis=-1)
    bot = jnp.concatenate([-wi, wr], axis=-1)
    return jnp.concatenate([top, bot], axis=-2)


def init_params(key, modes, num_layers, in_ch, lift_ch, proj_ch, out_ch, mid_ch):
    m1, m2 = modes
    counter = [0]

    def nk():
        counter[0] += 1
        return jax.random.fold_in(key, counter[0])

    def lin(cin, cout):
        bound = 1.0 / math.sqrt(cin)
        w = jax.random.uniform(nk(), (cin, cout), jnp.float32, -bound, bound)
        bvec = jax.random.uniform(nk(), (cout,), jnp.float32, -bound, bound)
        return w, bvec

    params = {}
    params["p1_w"], params["p1_b"] = lin(in_ch, lift_ch)
    params["p2_w"], params["p2_b"] = lin(lift_ch, mid_ch)
    params["q1_w"], params["q1_b"] = lin(mid_ch, proj_ch)
    params["final_w"], params["final_b"] = lin(proj_ch, out_ch)

    blocks = []
    scale = 1.0 / (mid_ch * mid_ch)
    for _ in range(num_layers):
        w1r = scale * jax.random.uniform(nk(), (m1 * m2, mid_ch, mid_ch), jnp.float32)
        w1i = scale * jax.random.uniform(nk(), (m1 * m2, mid_ch, mid_ch), jnp.float32)
        w2r = scale * jax.random.uniform(nk(), (m1 * m2, mid_ch, mid_ch), jnp.float32)
        w2i = scale * jax.random.uniform(nk(), (m1 * m2, mid_ch, mid_ch), jnp.float32)
        conv_w, conv_b = lin(mid_ch, mid_ch)
        w_stack = jnp.concatenate(
            [_stack_complex_weight(w1r, w1i), _stack_complex_weight(w2r, w2i)],
            axis=0)  # [2*m1*m2, 2C, 2C]
        blocks.append(dict(w_stack=w_stack, conv_w=conv_w, conv_b=conv_b))
    params["blocks"] = blocks
    return params


if __name__ == "__main__":
    key = jax.random.PRNGKey(0)
    kx, kp = jax.random.split(key)

    # Small FNO config.
    modes = (4, 4)
    num_fourier_layers = 2
    in_channels = 4
    lifting_channels = 16
    projection_channels = 32
    out_channels = 2
    mid_channels = 32
    B, H, W = 2, 16, 16

    x = jax.random.normal(kx, (B, in_channels, H, W), jnp.float32)  # NCHW
    params = init_params(kp, modes, num_fourier_layers, in_channels,
                         lifting_channels, projection_channels,
                         out_channels, mid_channels)

    fwd = jax.jit(functools.partial(fno_forward, modes=modes))
    out = jax.block_until_ready(fwd(x, params))

    assert out.shape == (B, out_channels, H, W), out.shape
    assert bool(jnp.all(jnp.isfinite(out)))
    print("KERNEL_OK")
</pallas_src>

<mosaic_0001>
module attributes {stable_mosaic.version = 11 : i64} {
  func.func @_lift_kernel(%arg0: i32, %arg1: memref<256x4xf32, #tpu.memory_space<vmem>>, %arg2: memref<4x16xbf16, #tpu.memory_space<vmem>>, %arg3: memref<1x16xf32, #tpu.memory_space<vmem>>, %arg4: memref<16x32xbf16, #tpu.memory_space<vmem>>, %arg5: memref<1x32xf32, #tpu.memory_space<vmem>>, %arg6: memref<256x32xf32, #tpu.memory_space<vmem>>) attributes {dimension_semantics = [#tpu.dimension_semantics<parallel>], iteration_bounds = array<i64: 2>, scalar_prefetch = 0 : i64, scratch_operands = 0 : i64, tpu.core_type = #tpu.core_type<tc>, window_params = [{transform_indices = @transform_0, window_bounds = array<i64: 256, 4>}, {pipeline_mode = #tpu.pipeline_mode<synchronous>, transform_indices = @transform_1, window_bounds = array<i64: 4, 16>}, {pipeline_mode = #tpu.pipeline_mode<synchronous>, transform_indices = @transform_2, window_bounds = array<i64: 1, 16>}, {pipeline_mode = #tpu.pipeline_mode<synchronous>, transform_indices = @transform_3, window_bounds = array<i64: 16, 32>}, {pipeline_mode = #tpu.pipeline_mode<synchronous>, transform_indices = @transform_4, window_bounds = array<i64: 1, 32>}, {transform_indices = @transform_5, window_bounds = array<i64: 256, 32>}]} {
    %c0 = arith.constant 0 : index
    %c0_0 = arith.constant 0 : index
    %0 = vector.load %arg1[%c0, %c0_0] : memref<256x4xf32, #tpu.memory_space<vmem>>, vector<256x4xf32>
    %1 = arith.truncf %0 : vector<256x4xf32> to vector<256x4xbf16>
    %c0_1 = arith.constant 0 : index
    %c0_2 = arith.constant 0 : index
    %2 = vector.load %arg2[%c0_1, %c0_2] : memref<4x16xbf16, #tpu.memory_space<vmem>>, vector<4x16xbf16>
    %cst = arith.constant dense<0.000000e+00> : vector<256x16xf32>
    %3 = tpu.matmul %1, %2, %cst {dimension_numbers = #tpu.dot_dimension_numbers<[1], [0], [0], [1], [0, 0, 1, 1], [], []>} : vector<256x4xbf16>, vector<4x16xbf16>, vector<256x16xf32> -> vector<256x16xf32>
    %c0_3 = arith.constant 0 : index
    %c0_4 = arith.constant 0 : index
    %4 = vector.load %arg3[%c0_3, %c0_4] : memref<1x16xf32, #tpu.memory_space<vmem>>, vector<1x16xf32>
    %5 = vector.broadcast %4 : vector<1x16xf32> to vector<256x16xf32>
    %6 = arith.addf %3, %5 : vector<256x16xf32>
    %7 = arith.truncf %6 : vector<256x16xf32> to vector<256x16xbf16>
    %c0_5 = arith.constant 0 : index
    %c0_6 = arith.constant 0 : index
    %8 = vector.load %arg4[%c0_5, %c0_6] : memref<16x32xbf16, #tpu.memory_space<vmem>>, vector<16x32xbf16>
    %cst_7 = arith.constant dense<0.000000e+00> : vector<256x32xf32>
    %9 = tpu.matmul %7, %8, %cst_7 {dimension_numbers = #tpu.dot_dimension_numbers<[1], [0], [0], [1], [0, 0, 1, 1], [], []>} : vector<256x16xbf16>, vector<16x32xbf16>, vector<256x32xf32> -> vector<256x32xf32>
    %c0_8 = arith.constant 0 : index
    %c0_9 = arith.constant 0 : index
    %10 = vector.load %arg5[%c0_8, %c0_9] : memref<1x32xf32, #tpu.memory_space<vmem>>, vector<1x32xf32>
    %11 = vector.broadcast %10 : vector<1x32xf32> to vector<256x32xf32>
    %12 = arith.addf %9, %11 : vector<256x32xf32>
    %c0_10 = arith.constant 0 : index
    %c0_11 = arith.constant 0 : index
    %13 = vector.load %arg6[%c0_10, %c0_11] : memref<256x32xf32, #tpu.memory_space<vmem>>, vector<256x32xf32>
    tpu.vector_store %arg6[%c0_10, %c0_11], %12 {strides = array<i32>} : memref<256x32xf32, #tpu.memory_space<vmem>>, vector<256x32xf32>,
    return
  }
  func.func @transform_0(%arg0: i32) -> (i32, i32) {
    %c0_i32 = arith.constant 0 : i32
    %c0_i32_0 = arith.constant 0 : i32
    return %arg0, %c0_i32 : i32, i32
  }
  func.func @transform_1(%arg0: i32) -> (i32, i32) {
    %c0_i32 = arith.constant 0 : i32
    %c0_i32_0 = arith.constant 0 : i32
    %c0_i32_1 = arith.constant 0 : i32
    return %c0_i32, %c0_i32_0 : i32, i32
  }
  func.func @transform_2(%arg0: i32) -> (i32, i32) {
    %c0_i32 = arith.constant 0 : i32
    %c0_i32_0 = arith.constant 0 : i32
    %c0_i32_1 = arith.constant 0 : i32
    return %c0_i32, %c0_i32_0 : i32, i32
  }
  func.func @transform_3(%arg0: i32) -> (i32, i32) {
    %c0_i32 = arith.constant 0 : i32
    %c0_i32_0 = arith.constant 0 : i32
    %c0_i32_1 = arith.constant 0 : i32
    return %c0_i32, %c0_i32_0 : i32, i32
  }
  func.func @transform_4(%arg0: i32) -> (i32, i32) {
    %c0_i32 = arith.constant 0 : i32
    %c0_i32_0 = arith.constant 0 : i32
    %c0_i32_1 = arith.constant 0 : i32
    return %c0_i32, %c0_i32_0 : i32, i32
  }
  func.func @transform_5(%arg0: i32) -> (i32, i32) {
    %c0_i32 = arith.constant 0 : i32
    %c0_i32_0 = arith.constant 0 : i32
    return %arg0, %c0_i32 : i32, i32
  }
}

module attributes {stable_mosaic.version = 11 : i64} {
  func.func @_spectral_kernel(%arg0: i32, %arg1: memref<16x2x64xf32, #tpu.memory_space<vmem>>, %arg2: memref<16x64x64xf32, #tpu.memory_space<vmem>>, %arg3: memref<16x2x64xf32, #tpu.memory_space<vmem>>) attributes {dimension_semantics = [#tpu.dimension_semantics<parallel>], iteration_bounds = array<i64: 2>, scalar_prefetch = 0 : i64, scratch_operands = 0 : i64, tpu.core_type = #tpu.core_type<tc>, window_params = [{transform_indices = @transform_0, window_bounds = array<i64: 16, 2, 64>}, {transform_indices = @transform_1, window_bounds = array<i64: 16, 64, 64>}, {transform_indices = @transform_2, window_bounds = array<i64: 16, 2, 64>}]} {
    %c0 = arith.constant 0 : index
    %c0_0 = arith.constant 0 : index
    %c0_1 = arith.constant 0 : index
    %0 = vector.load %arg1[%c0, %c0_0, %c0_1] : memref<16x2x64xf32, #tpu.memory_space<vmem>>, vector<16x2x64xf32>
    %c0_2 = arith.constant 0 : index
    %c0_3 = arith.constant 0 : index
    %c0_4 = arith.constant 0 : index
    %1 = vector.load %arg2[%c0_2, %c0_3, %c0_4] : memref<16x64x64xf32, #tpu.memory_space<vmem>>, vector<16x64x64xf32>
    "tpu.trace_start"() <{level = 10 : i32, message = "mbk,mkn->mbn"}> : () -> ()
    %cst = arith.constant dense<0.000000e+00> : vector<16x2x64xf32>
    %2 = tpu.matmul %0, %1, %cst {dimension_numbers = #tpu.dot_dimension_numbers<[2], [1], [1], [2], [0, 0, 0, 1, 1, 2], [0], [0]>} : vector<16x2x64xf32>, vector<16x64x64xf32>, vector<16x2x64xf32> -> vector<16x2x64xf32>
    "tpu.trace_stop"() : () -> ()
    %c0_5 = arith.constant 0 : index
    %c0_6 = arith.constant 0 : index
    %c0_7 = arith.constant 0 : index
    %3 = vector.load %arg3[%c0_5, %c0_6, %c0_7] : memref<16x2x64xf32, #tpu.memory_space<vmem>>, vector<16x2x64xf32>
    tpu.vector_store %arg3[%c0_5, %c0_6, %c0_7], %2 {strides = array<i32>} : memref<16x2x64xf32, #tpu.memory_space<vmem>>, vector<16x2x64xf32>,
    return
  }
  func.func @transform_0(%arg0: i32) -> (i32, i32, i32) {
    %c0_i32 = arith.constant 0 : i32
    %c0_i32_0 = arith.constant 0 : i32
    %c0_i32_1 = arith.constant 0 : i32
    return %arg0, %c0_i32, %c0_i32_0 : i32, i32, i32
  }
  func.func @transform_1(%arg0: i32) -> (i32, i32, i32) {
    %c0_i32 = arith.constant 0 : i32
    %c0_i32_0 = arith.constant 0 : i32
    %c0_i32_1 = arith.constant 0 : i32
    return %arg0, %c0_i32, %c0_i32_0 : i32, i32, i32
  }
  func.func @transform_2(%arg0: i32) -> (i32, i32, i32) {
    %c0_i32 = arith.constant 0 : i32
    %c0_i32_0 = arith.constant 0 : i32
    %c0_i32_1 = arith.constant 0 : i32
    return %arg0, %c0_i32, %c0_i32_0 : i32, i32, i32
  }
}

module attributes {stable_mosaic.version = 11 : i64} {
  func.func @_mix_kernel(%arg0: i32, %arg1: memref<256x32xf32, #tpu.memory_space<vmem>>, %arg2: memref<256x32xf32, #tpu.memory_space<vmem>>, %arg3: memref<32x32xbf16, #tpu.memory_space<vmem>>, %arg4: memref<1x32xf32, #tpu.memory_space<vmem>>, %arg5: memref<256x32xf32, #tpu.memory_space<vmem>>) attributes {dimension_semantics = [#tpu.dimension_semantics<parallel>], iteration_bounds = array<i64: 2>, scalar_prefetch = 0 : i64, scratch_operands = 0 : i64, tpu.core_type = #tpu.core_type<tc>, window_params = [{transform_indices = @transform_0, window_bounds = array<i64: 256, 32>}, {transform_indices = @transform_1, window_bounds = array<i64: 256, 32>}, {pipeline_mode = #tpu.pipeline_mode<synchronous>, transform_indices = @transform_2, window_bounds = array<i64: 32, 32>}, {pipeline_mode = #tpu.pipeline_mode<synchronous>, transform_indices = @transform_3, window_bounds = array<i64: 1, 32>}, {transform_indices = @transform_4, window_bounds = array<i64: 256, 32>}]} {
    %c0 = arith.constant 0 : index
    %c0_0 = arith.constant 0 : index
    %0 = vector.load %arg2[%c0, %c0_0] : memref<256x32xf32, #tpu.memory_space<vmem>>, vector<256x32xf32>
    %1 = arith.truncf %0 : vector<256x32xf32> to vector<256x32xbf16>
    %c0_1 = arith.constant 0 : index
    %c0_2 = arith.constant 0 : index
    %2 = vector.load %arg3[%c0_1, %c0_2] : memref<32x32xbf16, #tpu.memory_space<vmem>>, vector<32x32xbf16>
    %cst = arith.constant dense<0.000000e+00> : vector<256x32xf32>
    %3 = tpu.matmul %1, %2, %cst {dimension_numbers = #tpu.dot_dimension_numbers<[1], [0], [0], [1], [0, 0, 1, 1], [], []>} : vector<256x32xbf16>, vector<32x32xbf16>, vector<256x32xf32> -> vector<256x32xf32>
    %c0_3 = arith.constant 0 : index
    %c0_4 = arith.constant 0 : index
    %4 = vector.load %arg4[%c0_3, %c0_4] : memref<1x32xf32, #tpu.memory_space<vmem>>, vector<1x32xf32>
    %5 = vector.broadcast %4 : vector<1x32xf32> to vector<256x32xf32>
    %6 = arith.addf %3, %5 : vector<256x32xf32>
    %c0_5 = arith.constant 0 : index
    %c0_6 = arith.constant 0 : index
    %7 = vector.load %arg1[%c0_5, %c0_6] : memref<256x32xf32, #tpu.memory_space<vmem>>, vector<256x32xf32>
    %8 = arith.addf %6, %7 : vector<256x32xf32>
    %cst_7 = arith.constant 5.000000e-01 : f32
    %9 = vector.broadcast %cst_7 : f32 to vector<256x32xf32>
    %10 = arith.mulf %9, %8 : vector<256x32xf32>
    %cst_8 = arith.constant 4.471500e-02 : f32
    %11 = vector.broadcast %cst_8 : f32 to vector<256x32xf32>
    %12 = arith.mulf %11, %8 : vector<256x32xf32>
    %13 = arith.mulf %12, %8 : vector<256x32xf32>
    %14 = arith.mulf %13, %8 : vector<256x32xf32>
    %15 = arith.addf %8, %14 : vector<256x32xf32>
    %cst_9 = arith.constant 0.797884583 : f32
    %16 = vector.broadcast %cst_9 : f32 to vector<256x32xf32>
    %17 = arith.mulf %16, %15 : vector<256x32xf32>
    %18 = math.tanh %17 : vector<256x32xf32>
    %cst_10 = arith.constant 1.000000e+00 : f32
    %19 = vector.broadcast %cst_10 : f32 to vector<256x32xf32>
    %20 = arith.addf %19, %18 : vector<256x32xf32>
    %21 = arith.mulf %10, %20 : vector<256x32xf32>
    %c0_11 = arith.constant 0 : index
    %c0_12 = arith.constant 0 : index
    %22 = vector.load %arg5[%c0_11, %c0_12] : memref<256x32xf32, #tpu.memory_space<vmem>>, vector<256x32xf32>
    tpu.vector_store %arg5[%c0_11, %c0_12], %21 {strides = array<i32>} : memref<256x32xf32, #tpu.memory_space<vmem>>, vector<256x32xf32>,
    return
  }
  func.func @transform_0(%arg0: i32) -> (i32, i32) {
    %c0_i32 = arith.constant 0 : i32
    %c0_i32_0 = arith.constant 0 : i32
    return %arg0, %c0_i32 : i32, i32
  }
  func.func @transform_1(%arg0: i32) -> (i32, i32) {
    %c0_i32 = arith.constant 0 : i32
    %c0_i32_0 = arith.constant 0 : i32
    return %arg0, %c0_i32 : i32, i32
  }
  func.func @transform_2(%arg0: i32) -> (i32, i32) {
    %c0_i32 = arith.constant 0 : i32
    %c0_i32_0 = arith.constant 0 : i32
    %c0_i32_1 = arith.constant 0 : i32
    return %c0_i32, %c0_i32_0 : i32, i32
  }
  func.func @transform_3(%arg0: i32) -> (i32, i32) {
    %c0_i32 = arith.constant 0 : i32
    %c0_i32_0 = arith.constant 0 : i32
    %c0_i32_1 = arith.constant 0 : i32
    return %c0_i32, %c0_i32_0 : i32, i32
  }
  func.func @transform_4(%arg0: i32) -> (i32, i32) {
    %c0_i32 = arith.constant 0 : i32
    %c0_i32_0 = arith.constant 0 : i32
    return %arg0, %c0_i32 : i32, i32
  }
}

module attributes {stable_mosaic.version = 11 : i64} {
  func.func @_proj_kernel(%arg0: i32, %arg1: memref<256x32xf32, #tpu.memory_space<vmem>>, %arg2: memref<32x32xbf16, #tpu.memory_space<vmem>>, %arg3: memref<1x32xf32, #tpu.memory_space<vmem>>, %arg4: memref<32x2xbf16, #tpu.memory_space<vmem>>, %arg5: memref<1x2xf32, #tpu.memory_space<vmem>>, %arg6: memref<256x2xf32, #tpu.memory_space<vmem>>) attributes {dimension_semantics = [#tpu.dimension_semantics<parallel>], iteration_bounds = array<i64: 2>, scalar_prefetch = 0 : i64, scratch_operands = 0 : i64, tpu.core_type = #tpu.core_type<tc>, window_params = [{transform_indices = @transform_0, window_bounds = array<i64: 256, 32>}, {pipeline_mode = #tpu.pipeline_mode<synchronous>, transform_indices = @transform_1, window_bounds = array<i64: 32, 32>}, {pipeline_mode = #tpu.pipeline_mode<synchronous>, transform_indices = @transform_2, window_bounds = array<i64: 1, 32>}, {pipeline_mode = #tpu.pipeline_mode<synchronous>, transform_indices = @transform_3, window_bounds = array<i64: 32, 2>}, {pipeline_mode = #tpu.pipeline_mode<synchronous>, transform_indices = @transform_4, window_bounds = array<i64: 1, 2>}, {transform_indices = @transform_5, window_bounds = array<i64: 256, 2>}]} {
    %c0 = arith.constant 0 : index
    %c0_0 = arith.constant 0 : index
    %0 = vector.load %arg1[%c0, %c0_0] : memref<256x32xf32, #tpu.memory_space<vmem>>, vector<256x32xf32>
    %1 = arith.truncf %0 : vector<256x32xf32> to vector<256x32xbf16>
    %c0_1 = arith.constant 0 : index
    %c0_2 = arith.constant 0 : index
    %2 = vector.load %arg2[%c0_1, %c0_2] : memref<32x32xbf16, #tpu.memory_space<vmem>>, vector<32x32xbf16>
    %cst = arith.constant dense<0.000000e+00> : vector<256x32xf32>
    %3 = tpu.matmul %1, %2, %cst {dimension_numbers = #tpu.dot_dimension_numbers<[1], [0], [0], [1], [0, 0, 1, 1], [], []>} : vector<256x32xbf16>, vector<32x32xbf16>, vector<256x32xf32> -> vector<256x32xf32>
    %c0_3 = arith.constant 0 : index
    %c0_4 = arith.constant 0 : index
    %4 = vector.load %arg3[%c0_3, %c0_4] : memref<1x32xf32, #tpu.memory_space<vmem>>, vector<1x32xf32>
    %5 = vector.broadcast %4 : vector<1x32xf32> to vector<256x32xf32>
    %6 = arith.addf %3, %5 : vector<256x32xf32>
    %cst_5 = arith.constant 5.000000e-01 : f32
    %7 = vector.broadcast %cst_5 : f32 to vector<256x32xf32>
    %8 = arith.mulf %7, %6 : vector<256x32xf32>
    %cst_6 = arith.constant 4.471500e-02 : f32
    %9 = vector.broadcast %cst_6 : f32 to vector<256x32xf32>
    %10 = arith.mulf %9, %6 : vector<256x32xf32>
    %11 = arith.mulf %10, %6 : vector<256x32xf32>
    %12 = arith.mulf %11, %6 : vector<256x32xf32>
    %13 = arith.addf %6, %12 : vector<256x32xf32>
    %cst_7 = arith.constant 0.797884583 : f32
    %14 = vector.broadcast %cst_7 : f32 to vector<256x32xf32>
    %15 = arith.mulf %14, %13 : vector<256x32xf32>
    %16 = math.tanh %15 : vector<256x32xf32>
    %cst_8 = arith.constant 1.000000e+00 : f32
    %17 = vector.broadcast %cst_8 : f32 to vector<256x32xf32>
    %18 = arith.addf %17, %16 : vector<256x32xf32>
    %19 = arith.mulf %8, %18 : vector<256x32xf32>
    %20 = arith.truncf %19 : vector<256x32xf32> to vector<256x32xbf16>
    %c0_9 = arith.constant 0 : index
    %c0_10 = arith.constant 0 : index
    %21 = vector.load %arg4[%c0_9, %c0_10] : memref<32x2xbf16, #tpu.memory_space<vmem>>, vector<32x2xbf16>
    %cst_11 = arith.constant dense<0.000000e+00> : vector<256x2xf32>
    %22 = tpu.matmul %20, %21, %cst_11 {dimension_numbers = #tpu.dot_dimension_numbers<[1], [0], [0], [1], [0, 0, 1, 1], [], []>} : vector<256x32xbf16>, vector<32x2xbf16>, vector<256x2xf32> -> vector<256x2xf32>
    %c0_12 = arith.constant 0 : index
    %c0_13 = arith.constant 0 : index
    %23 = vector.load %arg5[%c0_12, %c0_13] : memref<1x2xf32, #tpu.memory_space<vmem>>, vector<1x2xf32>
    %24 = vector.broadcast %23 : vector<1x2xf32> to vector<256x2xf32>
    %25 = arith.addf %22, %24 : vector<256x2xf32>
    %c0_14 = arith.constant 0 : index
    %c0_15 = arith.constant 0 : index
    %26 = vector.load %arg6[%c0_14, %c0_15] : memref<256x2xf32, #tpu.memory_space<vmem>>, vector<256x2xf32>
    tpu.vector_store %arg6[%c0_14, %c0_15], %25 {strides = array<i32>} : memref<256x2xf32, #tpu.memory_space<vmem>>, vector<256x2xf32>,
    return
  }
  func.func @transform_0(%arg0: i32) -> (i32, i32) {
    %c0_i32 = arith.constant 0 : i32
    %c0_i32_0 = arith.constant 0 : i32
    return %arg0, %c0_i32 : i32, i32
  }
  func.func @transform_1(%arg0: i32) -> (i32, i32) {
    %c0_i32 = arith.constant 0 : i32
    %c0_i32_0 = arith.constant 0 : i32
    %c0_i32_1 = arith.constant 0 : i32
    return %c0_i32, %c0_i32_0 : i32, i32
  }
  func.func @transform_2(%arg0: i32) -> (i32, i32) {
    %c0_i32 = arith.constant 0 : i32
    %c0_i32_0 = arith.constant 0 : i32
    %c0_i32_1 = arith.constant 0 : i32
    return %c0_i32, %c0_i32_0 : i32, i32
  }
  func.func @transform_3(%arg0: i32) -> (i32, i32) {
    %c0_i32 = arith.constant 0 : i32
    %c0_i32_0 = arith.constant 0 : i32
    %c0_i32_1 = arith.constant 0 : i32
    return %c0_i32, %c0_i32_0 : i32, i32
  }
  func.func @transform_4(%arg0: i32) -> (i32, i32) {
    %c0_i32 = arith.constant 0 : i32
    %c0_i32_0 = arith.constant 0 : i32
    %c0_i32_1 = arith.constant 0 : i32
    return %c0_i32, %c0_i32_0 : i32, i32
  }
  func.func @transform_5(%arg0: i32) -> (i32, i32) {
    %c0_i32 = arith.constant 0 : i32
    %c0_i32_0 = arith.constant 0 : i32
    return %arg0, %c0_i32 : i32, i32
  }
}

</mosaic_0001>

<llo_original>
// kernel: fno_forward.6
$region0: #{fno_forward.6}
  #allocation0 [shape = 'u32[]', space=smem, size = 0x4, offset = 0x4, fixed_abs, tag = 'smem constant byte address 0x4 - core index']
  #allocation1 [shape = 'u32[72,128]{1,0:T(1,128)}', space=vmem, size = 0x9000, scoped, tag = 'internal scratch']
  %s0 = inlined_call_operand.vmem [shape: f32[512,4], index: 0, kind: input, shape index: {}]
  %s1 = inlined_call_operand.vmem [shape: bf16[4,16], index: 1, kind: input, shape index: {}]
  %s2 = inlined_call_operand.vmem [shape: f32[1,16], index: 2, kind: input, shape index: {}]
  %s3 = inlined_call_operand.vmem [shape: bf16[16,32], index: 3, kind: input, shape index: {}]
  %s4 = inlined_call_operand.vmem [shape: f32[1,32], index: 4, kind: input, shape index: {}]
  %s5 = inlined_call_operand.vmem [shape: f32[512,32], index: 5, kind: output, shape index: {}]
  %s6 = sld [smem:[#allocation0]]
  $region53: #{fno_forward.6} parent=0
    _
  %s8 = ssub.s32 1, %s6
  %s9 = scalar_select 0, %s8, %s6
  loop: start=0, step=1, limit=4
  $region2: #{fno_forward.6} parent=0 // loop_pre_header
    _
  $region3: #{fno_forward.6} parent=0 // loop_header
    %s11 = sphi 0, %s15
    %p12 = scmp.ge.s32.totalorder %s11, 4
    %s21 = sphi 0, %s23
    %s24 = sphi 0, %s21
    %s25 = sphi 0, %s24
    %s41 = sphi 0, %s25
    %s45 = sphi 0, %s45
    %s47 = sphi 0, %s45
    %s48 = sphi 0, %s47
    %s62 = sphi 0, %s48
    %s66 = sphi 0, %s66
    %s68 = sphi 0, %s66
    %s69 = sphi 0, %s68
    %s83 = sphi 0, %s69
    %s87 = sphi 0, %s87
    %s89 = sphi 0, %s87
    %s90 = sphi 0, %s89
    %s104 = sphi 0, %s90
    %s108 = sphi 0, %s108
    %s110 = sphi 0, %s108
    %s111 = sphi 0, %s110
    %s125 = sphi 0, %s111
    %s131 = sphi 0, %s133
    %s134 = sphi 0, %s131
    %s135 = sphi 0, %s134
    %s151 = sphi 0, %s135
  $region4: #{fno_forward.6} parent=0 // loop_header_branch
    %14 = sbr.rel (%p12) target = $region8
  $region5: #{fno_forward.6} parent=0 // loop_body
    %s16 = ssub.s32 %s11, 1
    %s17 = ssub.s32 %s11, 2
    %s18 = sadd.s32 %s11, 1
    %s19 = ssub.s32 %s11, %s18
    %p20 = scmp.eq.s32.totalorder %s19, 0
    %s22 = sadd.s32 %s21, 1
    %s23 = scalar_select %p20, %s21, %s22
    %p26 = pneg %p20
    %p27 = scmp.eq.s32.totalorder %s11, 1
    %p28 = por %p26, %p27
    %p29 = scmp.ne.s32.totalorder %s21, %s24
    %p30 = scmp.eq.s32.totalorder %s11, 0
    %p31 = por %p29, %p30
    %p32 = scmp.ne.s32.totalorder %s21, %s24
    %p33 = scmp.eq.s32.totalorder %s16, 1
    %p34 = por %p32, %p33
    %p35 = scmp.ne.s32.totalorder %s24, %s25
    %p36 = scmp.eq.s32.totalorder %s16, 0
    %p37 = por %p35, %p36
    %p38 = scmp.ne.s32.totalorder %s24, %s25
    %p39 = scmp.eq.s32.totalorder %s17, 1
    %p40 = por %p38, %p39
    %p42 = scmp.ne.s32.totalorder %s25, %s41
    %p43 = scmp.eq.s32.totalorder %s17, 0
    %p44 = por %p42, %p43
    %s46 = sadd.s32 %s45, 1
    %p49 = scmp.eq.s32.totalorder %s11, 1
    %p50 = scmp.ne.s32.totalorder %s45, %s47
    %p51 = scmp.eq.s32.totalorder %s11, 0
    %p52 = por %p50, %p51
    %p53 = scmp.ne.s32.totalorder %s45, %s47
    %p54 = scmp.eq.s32.totalorder %s16, 1
    %p55 = por %p53, %p54
    %p56 = scmp.ne.s32.totalorder %s47, %s48
    %p57 = scmp.eq.s32.totalorder %s16, 0
    %p58 = por %p56, %p57
    %p59 = scmp.ne.s32.totalorder %s47, %s48
    %p60 = scmp.eq.s32.totalorder %s17, 1
    %p61 = por %p59, %p60
    %p63 = scmp.ne.s32.totalorder %s48, %s62
    %p64 = scmp.eq.s32.totalorder %s17, 0
    %p65 = por %p63, %p64
    %s67 = sadd.s32 %s66, 1
    %p70 = scmp.eq.s32.totalorder %s11, 1
    %p71 = scmp.ne.s32.totalorder %s66, %s68
    %p72 = scmp.eq.s32.totalorder %s11, 0
    %p73 = por %p71, %p72
    %p74 = scmp.ne.s32.totalorder %s66, %s68
    %p75 = scmp.eq.s32.totalorder %s16, 1
    %p76 = por %p74, %p75
    %p77 = scmp.ne.s32.totalorder %s68, %s69
    %p78 = scmp.eq.s32.totalorder %s16, 0
    %p79 = por %p77, %p78
    %p80 = scmp.ne.s32.totalorder %s68, %s69
    %p81 = scmp.eq.s32.totalorder %s17, 1
    %p82 = por %p80, %p81
    %p84 = scmp.ne.s32.totalorder %s69, %s83
    %p85 = scmp.eq.s32.totalorder %s17, 0
    %p86 = por %p84, %p85
    %s88 = sadd.s32 %s87, 1
    %p91 = scmp.eq.s32.totalorder %s11, 1
    %p92 = scmp.ne.s32.totalorder %s87, %s89
    %p93 = scmp.eq.s32.totalorder %s11, 0
    %p94 = por %p92, %p93
    %p95 = scmp.ne.s32.totalorder %s87, %s89
    %p96 = scmp.eq.s32.totalorder %s16, 1
    %p97 = por %p95, %p96
    %p98 = scmp.ne.s32.totalorder %s89, %s90
    %p99 = scmp.eq.s32.totalorder %s16, 0
    %p100 = por %p98, %p99
    %p101 = scmp.ne.s32.totalorder %s89, %s90
    %p102 = scmp.eq.s32.totalorder %s17, 1
    %p103 = por %p101, %p102
    %p105 = scmp.ne.s32.totalorder %s90, %s104
    %p106 = scmp.eq.s32.totalorder %s17, 0
    %p107 = por %p105, %p106
    %s109 = sadd.s32 %s108, 1
    %p112 = scmp.eq.s32.totalorder %s11, 1
    %p113 = scmp.ne.s32.totalorder %s108, %s110
    %p114 = scmp.eq.s32.totalorder %s11, 0
    %p115 = por %p113, %p114
    %p116 = scmp.ne.s32.totalorder %s108, %s110
    %p117 = scmp.eq.s32.totalorder %s16, 1
    %p118 = por %p116, %p117
    %p119 = scmp.ne.s32.totalorder %s110, %s111
    %p120 = scmp.eq.s32.totalorder %s16, 0
    %p121 = por %p119, %p120
    %p122 = scmp.ne.s32.totalorder %s110, %s111
    %p123 = scmp.eq.s32.totalorder %s17, 1
    %p124 = por %p122, %p123
    %p126 = scmp.ne.s32.totalorder %s111, %s125
    %p127 = scmp.eq.s32.totalorder %s17, 0
    %p128 = por %p126, %p127
    %s129 = ssub.s32 %s11, %s18
    %p130 = scmp.eq.s32.totalorder %s129, 0
    %s132 = sadd.s32 %s131, 1
    %s133 = scalar_select %p130, %s131, %s132
    %p136 = pneg %p130
    %p137 = scmp.eq.s32.totalorder %s11, 1
    %p138 = por %p136, %p137
    %p139 = scmp.ne.s32.totalorder %s131, %s134
    %p140 = scmp.eq.s32.totalorder %s11, 0
    %p141 = por %p139, %p140
    %p142 = scmp.ne.s32.totalorder %s131, %s134
    %p143 = scmp.eq.s32.totalorder %s16, 1
    %p144 = por %p142, %p143
    %p145 = scmp.ne.s32.totalorder %s134, %s135
    %p146 = scmp.eq.s32.totalorder %s16, 0
    %p147 = por %p145, %p146
    %p148 = scmp.ne.s32.totalorder %s134, %s135
    %p149 = scmp.eq.s32.totalorder %s17, 1
    %p150 = por %p148, %p149
    %p152 = scmp.ne.s32.totalorder %s135, %s151
    %p153 = scmp.eq.s32.totalorder %s17, 0
    %p154 = por %p152, %p153
    %p155 = scmp.le.s32.totalorder 1, %s11
    %p156 = scmp.lt.s32.totalorder %s11, 3
    %p157 = pnand %p155, %p156
    %p158 = pneg %p157
    // Predicated region
    $region9: #{fno_forward.6} parent=5 // pred_check
      _
    $region10: #{fno_forward.6} parent=5 // pred_check_branch
      %160 = sbr.rel (%p157) target = $region12
    $region11: #{fno_forward.6} parent=5 // pred_region
      %s161 = ssub.s32 %s11, 1
      // Predicated region
      $region13: #{fno_forward.6} parent=11 // pred_check
        %p162 = pneg %p58
      $region14: #{fno_forward.6} parent=11 // pred_check_branch
        %164 = sbr.rel (%p162) target = $region16
      $region15: #{fno_forward.6} parent=11 // pred_region
        _
      $region16: #{fno_forward.6} parent=11 // pred_fallthru
        _
      // Predicated region
      $region17: #{fno_forward.6} parent=11 // pred_check
        %p165 = pneg %p79
      $region18: #{fno_forward.6} parent=11 // pred_check_branch
        %167 = sbr.rel (%p165) target = $region20
      $region19: #{fno_forward.6} parent=11 // pred_region
        _
      $region20: #{fno_forward.6} parent=11 // pred_fallthru
        _
      // Predicated region
      $region21: #{fno_forward.6} parent=11 // pred_check
        %p168 = pneg %p100
      $region22: #{fno_forward.6} parent=11 // pred_check_branch
        %170 = sbr.rel (%p168) target = $region24
      $region23: #{fno_forward.6} parent=11 // pred_region
        _
      $region24: #{fno_forward.6} parent=11 // pred_fallthru
        _
      // Predicated region
      $region25: #{fno_forward.6} parent=11 // pred_check
        %p171 = pneg %p121
      $region26: #{fno_forward.6} parent=11 // pred_check_branch
        %173 = sbr.rel (%p171) target = $region28
      $region27: #{fno_forward.6} parent=11 // pred_region
        _
      $region28: #{fno_forward.6} parent=11 // pred_fallthru
        _
    $region12: #{fno_forward.6} parent=5 // pred_fallthru
      _
    %p174 = scmp.lt.s32.totalorder %s11, 2
    // Predicated region
    $region29: #{fno_forward.6} parent=5 // pred_check
      %p175 = pneg %p174
    $region30: #{fno_forward.6} parent=5 // pred_check_branch
      %177 = sbr.rel (%p175) target = $region32
    $region31: #{fno_forward.6} parent=5 // pred_region
      // Predicated region
      $region33: #{fno_forward.6} parent=31 // pred_check
        %p178 = pneg %p31
      $region34: #{fno_forward.6} parent=31 // pred_check_branch
        %180 = sbr.rel (%p178) target = $region36
      $region35: #{fno_forward.6} parent=31 // pred_region
        %s181 = smul.u32 32, %s11
        %p182 = scmp.lt.s32.totalorder %s181, 63
        %s183 = scalar_select %p182, %s181, 63
        %s184 = smul.addr %s183, 8
        %s185 = scalar_lea.vmem %s0, %s184
        %s186 = smul.u32 32, %s11
      $region36: #{fno_forward.6} parent=31 // pred_fallthru
        _
    $region32: #{fno_forward.6} parent=5 // pred_fallthru
      _
    %p187 = scmp.le.s32.totalorder 1, %s11
    %p188 = scmp.lt.s32.totalorder %s11, 3
    %p189 = pnand %p187, %p188
    %p190 = pneg %p189
    // Predicated region
    $region37: #{fno_forward.6} parent=5 // pred_check
      _
    $region38: #{fno_forward.6} parent=5 // pred_check_branch
      %192 = sbr.rel (%p189) target = $region40
    $region39: #{fno_forward.6} parent=5 // pred_region
      %s193 = ssub.s32 %s11, 1
      %s194 = smul.u32 32, %s16
      %p195 = scmp.lt.s32.totalorder %s194, 63
      %s196 = scalar_select %p195, %s194, 63
      %s197 = smul.addr %s196, 8
      %s198 = scalar_lea.vmem %s0, %s197
      %p199 = pneg %p37
      %p200 = pneg %p34
      %p201 = pneg %p58
      %p202 = pneg %p55
      %p203 = pneg %p79
      %p204 = pneg %p76
      %p205 = pneg %p100
      %p206 = pneg %p97
      %p207 = pneg %p121
      %p208 = pneg %p118
      %p209 = pneg %p147
      %p210 = pneg %p144
      %s211 = smul.u32 32, %s16
      %p212 = scmp.lt.s32.totalorder %s211, 63
      %s213 = scalar_select %p212, %s211, 63
      %s214 = smul.addr %s213, 8
      %s215 = scalar_lea.vmem %s5, %s214
      %s216 = smul.u32 32, %s16
      %p217 = scmp.lt.s32.totalorder %s216, 63
      %s218 = scalar_select %p217, %s216, 63
      %s219 = smul.addr %s218, 8
      %s220 = scalar_lea.vmem %s0, %s219
      %s221 = smul.u32 32, %s16
      %s222 = smul.u32 32, %s16
      %p223 = scmp.lt.s32.totalorder %s222, 63
      %s224 = scalar_select %p223, %s222, 63
      %s225 = smul.addr %s224, 8
      %s226 = scalar_lea.vmem %s5, %s225
      %s227 = smul.u32 32, %s16
      %v229 = vld [vmem:[%s220] sm:$0xff]
      %v230 = vld [vmem:[%s220 + $0x8] sm:$0xff]
      %v231 = vld [vmem:[%s220 + $0x10] sm:$0xff]
      %v232 = vld [vmem:[%s220 + $0x18] sm:$0xff]
      %v233 = vld [vmem:[%s220 + $0x20] sm:$0xff]
      %v234 = vld [vmem:[%s220 + $0x28] sm:$0xff]
      %v235 = vld [vmem:[%s220 + $0x30] sm:$0xff]
      %v236 = vld [vmem:[%s220 + $0x38] sm:$0xff]
      %v237 = vld [vmem:[%s220 + $0x40] sm:$0xff]
      %v238 = vld [vmem:[%s220 + $0x48] sm:$0xff]
      %v239 = vld [vmem:[%s220 + $0x50] sm:$0xff]
      %v240 = vld [vmem:[%s220 + $0x58] sm:$0xff]
      %v241 = vld [vmem:[%s220 + $0x60] sm:$0xff]
      %v242 = vld [vmem:[%s220 + $0x68] sm:$0xff]
      %v243 = vld [vmem:[%s220 + $0x70] sm:$0xff]
      %v244 = vld [vmem:[%s220 + $0x78] sm:$0xff]
      %v245 = vld [vmem:[%s220 + $0x80] sm:$0xff]
      %v246 = vld [vmem:[%s220 + $0x88] sm:$0xff]
      %v247 = vld [vmem:[%s220 + $0x90] sm:$0xff]
      %v248 = vld [vmem:[%s220 + $0x98] sm:$0xff]
      %v249 = vld [vmem:[%s220 + $0xa0] sm:$0xff]
      %v250 = vld [vmem:[%s220 + $0xa8] sm:$0xff]
      %v251 = vld [vmem:[%s220 + $0xb0] sm:$0xff]
      %v252 = vld [vmem:[%s220 + $0xb8] sm:$0xff]
      %v253 = vld [vmem:[%s220 + $0xc0] sm:$0xff]
      %v254 = vld [vmem:[%s220 + $0xc8] sm:$0xff]
      %v255 = vld [vmem:[%s220 + $0xd0] sm:$0xff]
      %v256 = vld [vmem:[%s220 + $0xd8] sm:$0xff]
      %v257 = vld [vmem:[%s220 + $0xe0] sm:$0xff]
      %v258 = vld [vmem:[%s220 + $0xe8] sm:$0xff]
      %v259 = vld [vmem:[%s220 + $0xf0] sm:$0xff]
      %v260 = vld [vmem:[%s220 + $0xf8] sm:$0xff]
      %v261 = vpack.c.bf16 %v230, %v229
      %v262 = vpack.c.bf16 %v232, %v231
      %v263 = vpack.c.bf16 %v234, %v233
      %v264 = vpack.c.bf16 %v236, %v235
      %v265 = vpack.c.bf16 %v238, %v237
      %v266 = vpack.c.bf16 %v240, %v239
      %v267 = vpack.c.bf16 %v242, %v241
      %v268 = vpack.c.bf16 %v244, %v243
      %v269 = vpack.c.bf16 %v246, %v245
      %v270 = vpack.c.bf16 %v248, %v247
      %v271 = vpack.c.bf16 %v250, %v249
      %v272 = vpack.c.bf16 %v252, %v251
      %v273 = vpack.c.bf16 %v254, %v253
      %v274 = vpack.c.bf16 %v256, %v255
      %v275 = vpack.c.bf16 %v258, %v257
      %v276 = vpack.c.bf16 %v260, %v259
      %v277 = vld [vmem:[%s1] sm:$0x3]
      %v278 = vld [vmem:[%s2] sm:$0x1]
      %v280 = vperm.slane %v278, 0
      %vm282 = vcmask 31744
      %v284 = vsel %vm282, %v261, 0
      %v287 = vsel %vm282, %v262, 0
      %v290 = vsel %vm282, %v263, 0
      %v293 = vsel %vm282, %v264, 0
      %v296 = vsel %vm282, %v265, 0
      %v299 = vsel %vm282, %v266, 0
      %v302 = vsel %vm282, %v267, 0
      %v305 = vsel %vm282, %v268, 0
      %v308 = vsel %vm282, %v269, 0
      %v311 = vsel %vm282, %v270, 0
      %v314 = vsel %vm282, %v271, 0
      %v317 = vsel %vm282, %v272, 0
      %v320 = vsel %vm282, %v273, 0
      %v323 = vsel %vm282, %v274, 0
      %v326 = vsel %vm282, %v275, 0
      %v329 = vsel %vm282, %v276, 0
      %vm331 = vcmask 1041408
      %v333 = vsel %vm331, %v277, 0
      %335 = vmatpush.bf16.msra.mxu0 0
      %336 = vmatpush.bf16.msra.mxu0 0
      %337 = vmatpush.bf16.msra.mxu0 0
      %338 = vmatpush.bf16.msra.mxu0 0
      %339 = vmatpush.bf16.msra.mxu0 0
      %340 = vmatpush.bf16.msra.mxu0 0
      %341 = vmatpush.bf16.msra.mxu0 0
      %342 = vmatpush.bf16.msra.mxu0 %v333
      %343 = vmatmul.bf16.gmra.mxu0 %v284
      %v344 = vpop.f32.mrf.mxu0
      %v345 = vadd.f32 %v280, %v344
      %v346 = vpop.f32.mrf.mxu0
      %v347 = vadd.f32 %v280, %v346
      %348 = vmatmul.bf16.gmra.mxu0 %v287
      %v349 = vpop.f32.mrf.mxu0
      %v350 = vadd.f32 %v280, %v349
      %v351 = vpop.f32.mrf.mxu0
      %v352 = vadd.f32 %v280, %v351
      %353 = vmatmul.bf16.gmra.mxu0 %v290
      %v354 = vpop.f32.mrf.mxu0
      %v355 = vadd.f32 %v280, %v354
      %v356 = vpop.f32.mrf.mxu0
      %v357 = vadd.f32 %v280, %v356
      %358 = vmatmul.bf16.gmra.mxu0 %v293
      %v359 = vpop.f32.mrf.mxu0
      %v360 = vadd.f32 %v280, %v359
      %v361 = vpop.f32.mrf.mxu0
      %v362 = vadd.f32 %v280, %v361
      %363 = vmatmul.bf16.gmra.mxu0 %v296
      %v364 = vpop.f32.mrf.mxu0
      %v365 = vadd.f32 %v280, %v364
      %v366 = vpop.f32.mrf.mxu0
      %v367 = vadd.f32 %v280, %v366
      %368 = vmatmul.bf16.gmra.mxu0 %v299
      %v369 = vpop.f32.mrf.mxu0
      %v370 = vadd.f32 %v280, %v369
      %v371 = vpop.f32.mrf.mxu0
      %v372 = vadd.f32 %v280, %v371
      %373 = vmatmul.bf16.gmra.mxu0 %v302
      %v374 = vpop.f32.mrf.mxu0
      %v375 = vadd.f32 %v280, %v374
      %v376 = vpop.f32.mrf.mxu0
      %v377 = vadd.f32 %v280, %v376
      %378 = vmatmul.bf16.gmra.mxu0 %v305
      %v379 = vpop.f32.mrf.mxu0
      %v380 = vadd.f32 %v280, %v379
      %v381 = vpop.f32.mrf.mxu0
      %v382 = vadd.f32 %v280, %v381
      %383 = vmatmul.bf16.gmra.mxu0 %v308
      %v384 = vpop.f32.mrf.mxu0
      %v385 = vadd.f32 %v280, %v384
      %v386 = vpop.f32.mrf.mxu0
      %v387 = vadd.f32 %v280, %v386
      %388 = vmatmul.bf16.gmra.mxu0 %v311
      %v389 = vpop.f32.mrf.mxu0
      %v390 = vadd.f32 %v280, %v389
      %v391 = vpop.f32.mrf.mxu0
      %v392 = vadd.f32 %v280, %v391
      %393 = vmatmul.bf16.gmra.mxu0 %v314
      %v394 = vpop.f32.mrf.mxu0
      %v395 = vadd.f32 %v280, %v394
      %v396 = vpop.f32.mrf.mxu0
      %v397 = vadd.f32 %v280, %v396
      %398 = vmatmul.bf16.gmra.mxu0 %v317
      %v399 = vpop.f32.mrf.mxu0
      %v400 = vadd.f32 %v280, %v399
      %v401 = vpop.f32.mrf.mxu0
      %v402 = vadd.f32 %v280, %v401
      %403 = vmatmul.bf16.gmra.mxu0 %v320
      %v404 = vpop.f32.mrf.mxu0
      %v405 = vadd.f32 %v280, %v404
      %v406 = vpop.f32.mrf.mxu0
      %v407 = vadd.f32 %v280, %v406
      %408 = vmatmul.bf16.gmra.mxu0 %v323
      %v409 = vpop.f32.mrf.mxu0
      %v410 = vadd.f32 %v280, %v409
      %v411 = vpop.f32.mrf.mxu0
      %v412 = vadd.f32 %v280, %v411
      %413 = vmatmul.bf16.gmra.mxu0 %v326
      %v414 = vpop.f32.mrf.mxu0
      %v415 = vadd.f32 %v280, %v414
      %v416 = vpop.f32.mrf.mxu0
      %v417 = vadd.f32 %v280, %v416
      %418 = vmatmul.bf16.gmra.mxu0 %v329
      %v419 = vpop.f32.mrf.mxu0
      %v420 = vadd.f32 %v280, %v419
      %v421 = vpop.f32.mrf.mxu0
      %v422 = vadd.f32 %v280, %v421
      %423 = vdwg.mxu0
      %v424 = vpack.c.bf16 %v347, %v345
      %v425 = vpack.c.bf16 %v352, %v350
      %v426 = vpack.c.bf16 %v357, %v355
      %v427 = vpack.c.bf16 %v362, %v360
      %v428 = vpack.c.bf16 %v367, %v365
      %v429 = vpack.c.bf16 %v372, %v370
      %v430 = vpack.c.bf16 %v377, %v375
      %v431 = vpack.c.bf16 %v382, %v380
      %v432 = vpack.c.bf16 %v387, %v385
      %v433 = vpack.c.bf16 %v392, %v390
      %v434 = vpack.c.bf16 %v397, %v395
      %v435 = vpack.c.bf16 %v402, %v400
      %v436 = vpack.c.bf16 %v407, %v405
      %v437 = vpack.c.bf16 %v412, %v410
      %v438 = vpack.c.bf16 %v417, %v415
      %v439 = vpack.c.bf16 %v422, %v420
      %v440 = vld [vmem:[%s3] sm:$0xf]
      %v441 = vld [vmem:[%s3 + $0x4] sm:$0xf]
      %v442 = vld [vmem:[%s4] sm:$0x1]
      %v444 = vperm.slane %v442, 0
      %v448 = vunpack.c.l.b16 %v440
      %v449 = vunpack.c.l.b16 %v441
      %v450 = vpack.c.b16 %v449, %v448
      %vm452 = vcmask 130048
      %v454 = vsel %vm452, %v424, 0
      %v457 = vsel %vm452, %v425, 0
      %v460 = vsel %vm452, %v426, 0
      %v463 = vsel %vm452, %v427, 0
      %v466 = vsel %vm452, %v428, 0
      %v469 = vsel %vm452, %v429, 0
      %v472 = vsel %vm452, %v430, 0
      %v475 = vsel %vm452, %v431, 0
      %v478 = vsel %vm452, %v432, 0
      %v481 = vsel %vm452, %v433, 0
      %v484 = vsel %vm452, %v434, 0
      %v487 = vsel %vm452, %v435, 0
      %v490 = vsel %vm452, %v436, 0
      %v493 = vsel %vm452, %v437, 0
      %v496 = vsel %vm452, %v438, 0
      %v499 = vsel %vm452, %v439, 0
      %501 = vmatpush.bf16.msra.mxu0 0
      %502 = vmatpush.bf16.msra.mxu0 0
      %503 = vmatpush.bf16.msra.mxu0 0
      %504 = vmatpush.bf16.msra.mxu0 0
      %505 = vmatpush.bf16.msra.mxu0 0
      %506 = vmatpush.bf16.msra.mxu0 0
      %507 = vmatpush.bf16.msra.mxu0 0
      %508 = vmatpush.bf16.msra.mxu0 %v450
      %509 = vmatmul.bf16.gmra.mxu0 %v454
      %v510 = vpop.f32.mrf.mxu0
      %v511 = vadd.f32 %v444, %v510
      %v512 = vpop.f32.mrf.mxu0
      %v513 = vadd.f32 %v444, %v512
      %514 = vmatmul.bf16.gmra.mxu0 %v457
      %v515 = vpop.f32.mrf.mxu0
      %v516 = vadd.f32 %v444, %v515
      %v517 = vpop.f32.mrf.mxu0
      %v518 = vadd.f32 %v444, %v517
      %519 = vmatmul.bf16.gmra.mxu0 %v460
      %v520 = vpop.f32.mrf.mxu0
      %v521 = vadd.f32 %v444, %v520
      %v522 = vpop.f32.mrf.mxu0
      %v523 = vadd.f32 %v444, %v522
      %524 = vmatmul.bf16.gmra.mxu0 %v463
      %v525 = vpop.f32.mrf.mxu0
      %v526 = vadd.f32 %v444, %v525
      %v527 = vpop.f32.mrf.mxu0
      %v528 = vadd.f32 %v444, %v527
      %529 = vmatmul.bf16.gmra.mxu0 %v466
      %v530 = vpop.f32.mrf.mxu0
      %v531 = vadd.f32 %v444, %v530
      %v532 = vpop.f32.mrf.mxu0
      %v533 = vadd.f32 %v444, %v532
      %534 = vmatmul.bf16.gmra.mxu0 %v469
      %v535 = vpop.f32.mrf.mxu0
      %v536 = vadd.f32 %v444, %v535
      %v537 = vpop.f32.mrf.mxu0
      %v538 = vadd.f32 %v444, %v537
      %539 = vmatmul.bf16.gmra.mxu0 %v472
      %v540 = vpop.f32.mrf.mxu0
      %v541 = vadd.f32 %v444, %v540
      %v542 = vpop.f32.mrf.mxu0
      %v543 = vadd.f32 %v444, %v542
      %544 = vmatmul.bf16.gmra.mxu0 %v475
      %v545 = vpop.f32.mrf.mxu0
      %v546 = vadd.f32 %v444, %v545
      %v547 = vpop.f32.mrf.mxu0
      %v548 = vadd.f32 %v444, %v547
      %549 = vmatmul.bf16.gmra.mxu0 %v478
      %v550 = vpop.f32.mrf.mxu0
      %v551 = vadd.f32 %v444, %v550
      %v552 = vpop.f32.mrf.mxu0
      %v553 = vadd.f32 %v444, %v552
      %554 = vmatmul.bf16.gmra.mxu0 %v481
      %v555 = vpop.f32.mrf.mxu0
      %v556 = vadd.f32 %v444, %v555
      %v557 = vpop.f32.mrf.mxu0
      %v558 = vadd.f32 %v444, %v557
      %559 = vmatmul.bf16.gmra.mxu0 %v484
      %v560 = vpop.f32.mrf.mxu0
      %v561 = vadd.f32 %v444, %v560
      %v562 = vpop.f32.mrf.mxu0
      %v563 = vadd.f32 %v444, %v562
      %564 = vmatmul.bf16.gmra.mxu0 %v487
      %v565 = vpop.f32.mrf.mxu0
      %v566 = vadd.f32 %v444, %v565
      %v567 = vpop.f32.mrf.mxu0
      %v568 = vadd.f32 %v444, %v567
      %569 = vmatmul.bf16.gmra.mxu0 %v490
      %v570 = vpop.f32.mrf.mxu0
      %v571 = vadd.f32 %v444, %v570
      %v572 = vpop.f32.mrf.mxu0
      %v573 = vadd.f32 %v444, %v572
      %574 = vmatmul.bf16.gmra.mxu0 %v493
      %v575 = vpop.f32.mrf.mxu0
      %v576 = vadd.f32 %v444, %v575
      %v577 = vpop.f32.mrf.mxu0
      %v578 = vadd.f32 %v444, %v577
      %579 = vmatmul.bf16.gmra.mxu0 %v496
      %v580 = vpop.f32.mrf.mxu0
      %v581 = vadd.f32 %v444, %v580
      %v582 = vpop.f32.mrf.mxu0
      %v583 = vadd.f32 %v444, %v582
      %584 = vmatmul.bf16.gmra.mxu0 %v499
      %v585 = vpop.f32.mrf.mxu0
      %v586 = vadd.f32 %v444, %v585
      %v587 = vpop.f32.mrf.mxu0
      %v588 = vadd.f32 %v444, %v587
      %589 = vdwg.mxu0
      %vm590 = vcmask 261120
      %591 = vst.msk [vmem:[%s226] sm:$0xff] %vm590, %v511
      %592 = vst.msk [vmem:[%s226 + $0x8] sm:$0xff] %vm590, %v513
      %593 = vst.msk [vmem:[%s226 + $0x10] sm:$0xff] %vm590, %v516
      %594 = vst.msk [vmem:[%s226 + $0x18] sm:$0xff] %vm590, %v518
      %595 = vst.msk [vmem:[%s226 + $0x20] sm:$0xff] %vm590, %v521
      %596 = vst.msk [vmem:[%s226 + $0x28] sm:$0xff] %vm590, %v523
      %597 = vst.msk [vmem:[%s226 + $0x30] sm:$0xff] %vm590, %v526
      %598 = vst.msk [vmem:[%s226 + $0x38] sm:$0xff] %vm590, %v528
      %599 = vst.msk [vmem:[%s226 + $0x40] sm:$0xff] %vm590, %v531
      %600 = vst.msk [vmem:[%s226 + $0x48] sm:$0xff] %vm590, %v533
      %601 = vst.msk [vmem:[%s226 + $0x50] sm:$0xff] %vm590, %v536
      %602 = vst.msk [vmem:[%s226 + $0x58] sm:$0xff] %vm590, %v538
      %603 = vst.msk [vmem:[%s226 + $0x60] sm:$0xff] %vm590, %v541
      %604 = vst.msk [vmem:[%s226 + $0x68] sm:$0xff] %vm590, %v543
      %605 = vst.msk [vmem:[%s226 + $0x70] sm:$0xff] %vm590, %v546
      %606 = vst.msk [vmem:[%s226 + $0x78] sm:$0xff] %vm590, %v548
      %607 = vst.msk [vmem:[%s226 + $0x80] sm:$0xff] %vm590, %v551
      %608 = vst.msk [vmem:[%s226 + $0x88] sm:$0xff] %vm590, %v553
      %609 = vst.msk [vmem:[%s226 + $0x90] sm:$0xff] %vm590, %v556
      %610 = vst.msk [vmem:[%s226 + $0x98] sm:$0xff] %vm590, %v558
      %611 = vst.msk [vmem:[%s226 + $0xa0] sm:$0xff] %vm590, %v561
      %612 = vst.msk [vmem:[%s226 + $0xa8] sm:$0xff] %vm590, %v563
      %613 = vst.msk [vmem:[%s226 + $0xb0] sm:$0xff] %vm590, %v566
      %614 = vst.msk [vmem:[%s226 + $0xb8] sm:$0xff] %vm590, %v568
      %615 = vst.msk [vmem:[%s226 + $0xc0] sm:$0xff] %vm590, %v571
      %616 = vst.msk [vmem:[%s226 + $0xc8] sm:$0xff] %vm590, %v573
      %617 = vst.msk [vmem:[%s226 + $0xd0] sm:$0xff] %vm590, %v576
      %618 = vst.msk [vmem:[%s226 + $0xd8] sm:$0xff] %vm590, %v578
      %619 = vst.msk [vmem:[%s226 + $0xe0] sm:$0xff] %vm590, %v581
      %620 = vst.msk [vmem:[%s226 + $0xe8] sm:$0xff] %vm590, %v583
      %621 = vst.msk [vmem:[%s226 + $0xf0] sm:$0xff] %vm590, %v586
      %622 = vst.msk [vmem:[%s226 + $0xf8] sm:$0xff] %vm590, %v588
      %s623 = smul.u32 32, %s16
      %p624 = scmp.lt.s32.totalorder %s623, 63
      %s625 = scalar_select %p624, %s623, 63
      %s626 = smul.addr %s625, 8
      %s627 = scalar_lea.vmem %s5, %s626
      // Predicated region
      $region41: #{fno_forward.6} parent=39 // pred_check
        %p628 = pneg %p144
      $region42: #{fno_forward.6} parent=39 // pred_check_branch
        %630 = sbr.rel (%p628) target = $region44
      $region43: #{fno_forward.6} parent=39 // pred_region
        %s631 = smul.u32 32, %s16
      $region44: #{fno_forward.6} parent=39 // pred_fallthru
        _
    $region40: #{fno_forward.6} parent=5 // pred_fallthru
      _
    %p632 = scmp.le.s32.totalorder 2, %s11
    // Predicated region
    $region45: #{fno_forward.6} parent=5 // pred_check
      %p633 = pneg %p632
    $region46: #{fno_forward.6} parent=5 // pred_check_branch
      %635 = sbr.rel (%p633) target = $region48
    $region47: #{fno_forward.6} parent=5 // pred_region
      %s636 = ssub.s32 %s11, 2
      // Predicated region
      $region49: #{fno_forward.6} parent=47 // pred_check
        %p637 = pneg %p150
      $region50: #{fno_forward.6} parent=47 // pred_check_branch
        %639 = sbr.rel (%p637) target = $region52
      $region51: #{fno_forward.6} parent=47 // pred_region
        %s640 = smul.u32 32, %s17
        %p641 = scmp.lt.s32.totalorder %s640, 63
        %s642 = scalar_select %p641, %s640, 63
        %s643 = smul.addr %s642, 8
        %s644 = scalar_lea.vmem %s5, %s643
      $region52: #{fno_forward.6} parent=47 // pred_fallthru
        _
    $region48: #{fno_forward.6} parent=5 // pred_fallthru
      _
  $region6: #{fno_forward.6} parent=0 // loop_footer
    %s15 = sadd.s32 1, %s11
  $region7: #{fno_forward.6} parent=0 // loop_footer_branch
    %10 = sbr.rel target = $region3
  $region8: #{fno_forward.6} parent=0 // loop_exit
    _

// kernel: fno_forward.7
$region0: #{fno_forward.7}
  #allocation0 [shape = 'u32[]', space=smem, size = 0x4, offset = 0x4, fixed_abs, tag = 'smem constant byte address 0x4 - core index']
  #allocation1 [shape = 'u32[72,128]{1,0:T(1,128)}', space=vmem, size = 0x9000, scoped, tag = 'internal scratch']
  %s0 = inlined_call_operand.vmem [shape: f32[32,2,64], index: 0, kind: input, shape index: {}]
  %s1 = inlined_call_operand.vmem [shape: f32[32,64,64], index: 1, kind: input, shape index: {}]
  %s2 = inlined_call_operand.vmem [shape: f32[32,2,64], index: 2, kind: output, shape index: {}]
  %s3 = sld [smem:[#allocation0]]
  $region41: #{fno_forward.7} parent=0
    _
  %s5 = ssub.s32 1, %s3
  %s6 = scalar_select 0, %s5, %s3
  loop: start=0, step=1, limit=4
  $region2: #{fno_forward.7} parent=0 // loop_pre_header
    _
  $region3: #{fno_forward.7} parent=0 // loop_header
    %s8 = sphi 0, %s12
    %p9 = scmp.ge.s32.totalorder %s8, 4
    %s18 = sphi 0, %s20
    %s21 = sphi 0, %s18
    %s22 = sphi 0, %s21
    %s38 = sphi 0, %s22
    %s44 = sphi 0, %s46
    %s47 = sphi 0, %s44
    %s48 = sphi 0, %s47
    %s64 = sphi 0, %s48
    %s70 = sphi 0, %s72
    %s73 = sphi 0, %s70
    %s74 = sphi 0, %s73
    %s90 = sphi 0, %s74
  $region4: #{fno_forward.7} parent=0 // loop_header_branch
    %11 = sbr.rel (%p9) target = $region8
  $region5: #{fno_forward.7} parent=0 // loop_body
    %s13 = ssub.s32 %s8, 1
    %s14 = ssub.s32 %s8, 2
    %s15 = sadd.s32 %s8, 1
    %s16 = ssub.s32 %s8, %s15
    %p17 = scmp.eq.s32.totalorder %s16, 0
    %s19 = sadd.s32 %s18, 1
    %s20 = scalar_select %p17, %s18, %s19
    %p23 = pneg %p17
    %p24 = scmp.eq.s32.totalorder %s8, 1
    %p25 = por %p23, %p24
    %p26 = scmp.ne.s32.totalorder %s18, %s21
    %p27 = scmp.eq.s32.totalorder %s8, 0
    %p28 = por %p26, %p27
    %p29 = scmp.ne.s32.totalorder %s18, %s21
    %p30 = scmp.eq.s32.totalorder %s13, 1
    %p31 = por %p29, %p30
    %p32 = scmp.ne.s32.totalorder %s21, %s22
    %p33 = scmp.eq.s32.totalorder %s13, 0
    %p34 = por %p32, %p33
    %p35 = scmp.ne.s32.totalorder %s21, %s22
    %p36 = scmp.eq.s32.totalorder %s14, 1
    %p37 = por %p35, %p36
    %p39 = scmp.ne.s32.totalorder %s22, %s38
    %p40 = scmp.eq.s32.totalorder %s14, 0
    %p41 = por %p39, %p40
    %s42 = ssub.s32 %s8, %s15
    %p43 = scmp.eq.s32.totalorder %s42, 0
    %s45 = sadd.s32 %s44, 1
    %s46 = scalar_select %p43, %s44, %s45
    %p49 = pneg %p43
    %p50 = scmp.eq.s32.totalorder %s8, 1
    %p51 = por %p49, %p50
    %p52 = scmp.ne.s32.totalorder %s44, %s47
    %p53 = scmp.eq.s32.totalorder %s8, 0
    %p54 = por %p52, %p53
    %p55 = scmp.ne.s32.totalorder %s44, %s47
    %p56 = scmp.eq.s32.totalorder %s13, 1
    %p57 = por %p55, %p56
    %p58 = scmp.ne.s32.totalorder %s47, %s48
    %p59 = scmp.eq.s32.totalorder %s13, 0
    %p60 = por %p58, %p59
    %p61 = scmp.ne.s32.totalorder %s47, %s48
    %p62 = scmp.eq.s32.totalorder %s14, 1
    %p63 = por %p61, %p62
    %p65 = scmp.ne.s32.totalorder %s48, %s64
    %p66 = scmp.eq.s32.totalorder %s14, 0
    %p67 = por %p65, %p66
    %s68 = ssub.s32 %s8, %s15
    %p69 = scmp.eq.s32.totalorder %s68, 0
    %s71 = sadd.s32 %s70, 1
    %s72 = scalar_select %p69, %s70, %s71
    %p75 = pneg %p69
    %p76 = scmp.eq.s32.totalorder %s8, 1
    %p77 = por %p75, %p76
    %p78 = scmp.ne.s32.totalorder %s70, %s73
    %p79 = scmp.eq.s32.totalorder %s8, 0
    %p80 = por %p78, %p79
    %p81 = scmp.ne.s32.totalorder %s70, %s73
    %p82 = scmp.eq.s32.totalorder %s13, 1
    %p83 = por %p81, %p82
    %p84 = scmp.ne.s32.totalorder %s73, %s74
    %p85 = scmp.eq.s32.totalorder %s13, 0
    %p86 = por %p84, %p85
    %p87 = scmp.ne.s32.totalorder %s73, %s74
    %p88 = scmp.eq.s32.totalorder %s14, 1
    %p89 = por %p87, %p88
    %p91 = scmp.ne.s32.totalorder %s74, %s90
    %p92 = scmp.eq.s32.totalorder %s14, 0
    %p93 = por %p91, %p92
    %p94 = scmp.le.s32.totalorder 1, %s8
    %p95 = scmp.lt.s32.totalorder %s8, 3
    %p96 = pnand %p94, %p95
    %p97 = pneg %p96
    // Predicated region
    $region9: #{fno_forward.7} parent=5 // pred_check
      _
    $region10: #{fno_forward.7} parent=5 // pred_check_branch
      %99 = sbr.rel (%p96) target = $region12
    $region11: #{fno_forward.7} parent=5 // pred_region
      %s100 = ssub.s32 %s8, 1
    $region12: #{fno_forward.7} parent=5 // pred_fallthru
      _
    %p101 = scmp.lt.s32.totalorder %s8, 2
    // Predicated region
    $region13: #{fno_forward.7} parent=5 // pred_check
      %p102 = pneg %p101
    $region14: #{fno_forward.7} parent=5 // pred_check_branch
      %104 = sbr.rel (%p102) target = $region16
    $region15: #{fno_forward.7} parent=5 // pred_region
      // Predicated region
      $region17: #{fno_forward.7} parent=15 // pred_check
        %p105 = pneg %p28
      $region18: #{fno_forward.7} parent=15 // pred_check_branch
        %107 = sbr.rel (%p105) target = $region20
      $region19: #{fno_forward.7} parent=15 // pred_region
        %s108 = smul.u32 16, %s8
        %p109 = scmp.lt.s32.totalorder %s108, 31
        %s110 = scalar_select %p109, %s108, 31
        %s111 = smul.addr %s110, 2
        %s112 = scalar_lea.vmem %s0, %s111
        %s113 = smul.u32 16, %s8
      $region20: #{fno_forward.7} parent=15 // pred_fallthru
        _
      // Predicated region
      $region21: #{fno_forward.7} parent=15 // pred_check
        %p114 = pneg %p54
      $region22: #{fno_forward.7} parent=15 // pred_check_branch
        %116 = sbr.rel (%p114) target = $region24
      $region23: #{fno_forward.7} parent=15 // pred_region
        %s117 = smul.u32 16, %s8
        %p118 = scmp.lt.s32.totalorder %s117, 31
        %s119 = scalar_select %p118, %s117, 31
        %s120 = smul.addr %s119, 8
        %s121 = smul.addr %s120, 8
        %s122 = scalar_lea.vmem %s1, %s121
        %s123 = smul.u32 16, %s8
      $region24: #{fno_forward.7} parent=15 // pred_fallthru
        _
    $region16: #{fno_forward.7} parent=5 // pred_fallthru
      _
    %p124 = scmp.le.s32.totalorder 1, %s8
    %p125 = scmp.lt.s32.totalorder %s8, 3
    %p126 = pnand %p124, %p125
    %p127 = pneg %p126
    // Predicated region
    $region25: #{fno_forward.7} parent=5 // pred_check
      _
    $region26: #{fno_forward.7} parent=5 // pred_check_branch
      %129 = sbr.rel (%p126) target = $region28
    $region27: #{fno_forward.7} parent=5 // pred_region
      %s130 = ssub.s32 %s8, 1
      %s131 = smul.u32 16, %s13
      %p132 = scmp.lt.s32.totalorder %s131, 31
      %s133 = scalar_select %p132, %s131, 31
      %s134 = smul.addr %s133, 2
      %s135 = scalar_lea.vmem %s0, %s134
      %p136 = pneg %p34
      %p137 = pneg %p31
      %s138 = smul.u32 16, %s13
      %p139 = scmp.lt.s32.totalorder %s138, 31
      %s140 = scalar_select %p139, %s138, 31
      %s141 = smul.addr %s140, 8
      %s142 = smul.addr %s141, 8
      %s143 = scalar_lea.vmem %s1, %s142
      %p144 = pneg %p60
      %p145 = pneg %p57
      %p146 = pneg %p86
      %p147 = pneg %p83
      %s148 = smul.u32 16, %s13
      %p149 = scmp.lt.s32.totalorder %s148, 31
      %s150 = scalar_select %p149, %s148, 31
      %s151 = smul.addr %s150, 2
      %s152 = scalar_lea.vmem %s2, %s151
      %s153 = smul.u32 16, %s13
      %p154 = scmp.lt.s32.totalorder %s153, 31
      %s155 = scalar_select %p154, %s153, 31
      %s156 = smul.addr %s155, 2
      %s157 = scalar_lea.vmem %s0, %s156
      %s158 = smul.u32 16, %s13
      %s159 = smul.u32 16, %s13
      %p160 = scmp.lt.s32.totalorder %s159, 31
      %s161 = scalar_select %p160, %s159, 31
      %s162 = smul.addr %s161, 8
      %s163 = smul.addr %s162, 8
      %s164 = scalar_lea.vmem %s1, %s163
      %s165 = smul.u32 16, %s13
      %s166 = smul.u32 16, %s13
      %p167 = scmp.lt.s32.totalorder %s166, 31
      %s168 = scalar_select %p167, %s166, 31
      %s169 = smul.addr %s168, 2
      %s170 = scalar_lea.vmem %s2, %s169
      %s171 = smul.u32 16, %s13
      %v172 = vld [vmem:[%s157] sm:$0x3]
      %v173 = vld [vmem:[%s157 + $0x2] sm:$0x3]
      %v174 = vld [vmem:[%s157 + $0x4] sm:$0x3]
      %v175 = vld [vmem:[%s157 + $0x6] sm:$0x3]
      %v176 = vld [vmem:[%s157 + $0x8] sm:$0x3]
      %v177 = vld [vmem:[%s157 + $0xa] sm:$0x3]
      %v178 = vld [vmem:[%s157 + $0xc] sm:$0x3]
      %v179 = vld [vmem:[%s157 + $0xe] sm:$0x3]
      %v180 = vld [vmem:[%s157 + $0x10] sm:$0x3]
      %v181 = vld [vmem:[%s157 + $0x12] sm:$0x3]
      %v182 = vld [vmem:[%s157 + $0x14] sm:$0x3]
      %v183 = vld [vmem:[%s157 + $0x16] sm:$0x3]
      %v184 = vld [vmem:[%s157 + $0x18] sm:$0x3]
      %v185 = vld [vmem:[%s157 + $0x1a] sm:$0x3]
      %v186 = vld [vmem:[%s157 + $0x1c] sm:$0x3]
      %v187 = vld [vmem:[%s157 + $0x1e] sm:$0x3]
      %v188 = vld [vmem:[%s164] sm:$0xff]
      %v189 = vld [vmem:[%s164 + $0x8] sm:$0xff]
      %v190 = vld [vmem:[%s164 + $0x10] sm:$0xff]
      %v191 = vld [vmem:[%s164 + $0x18] sm:$0xff]
      %v192 = vld [vmem:[%s164 + $0x20] sm:$0xff]
      %v193 = vld [vmem:[%s164 + $0x28] sm:$0xff]
      %v194 = vld [vmem:[%s164 + $0x30] sm:$0xff]
      %v195 = vld [vmem:[%s164 + $0x38] sm:$0xff]
      %v196 = vld [vmem:[%s164 + $0x40] sm:$0xff]
      %v197 = vld [vmem:[%s164 + $0x48] sm:$0xff]
      %v198 = vld [vmem:[%s164 + $0x50] sm:$0xff]
      %v199 = vld [vmem:[%s164 + $0x58] sm:$0xff]
      %v200 = vld [vmem:[%s164 + $0x60] sm:$0xff]
      %v201 = vld [vmem:[%s164 + $0x68] sm:$0xff]
      %v202 = vld [vmem:[%s164 + $0x70] sm:$0xff]
      %v203 = vld [vmem:[%s164 + $0x78] sm:$0xff]
      %v204 = vld [vmem:[%s164 + $0x80] sm:$0xff]
      %v205 = vld [vmem:[%s164 + $0x88] sm:$0xff]
      %v206 = vld [vmem:[%s164 + $0x90] sm:$0xff]
      %v207 = vld [vmem:[%s164 + $0x98] sm:$0xff]
      %v208 = vld [vmem:[%s164 + $0xa0] sm:$0xff]
      %v209 = vld [vmem:[%s164 + $0xa8] sm:$0xff]
      %v210 = vld [vmem:[%s164 + $0xb0] sm:$0xff]
      %v211 = vld [vmem:[%s164 + $0xb8] sm:$0xff]
      %v212 = vld [vmem:[%s164 + $0xc0] sm:$0xff]
      %v213 = vld [vmem:[%s164 + $0xc8] sm:$0xff]
      %v214 = vld [vmem:[%s164 + $0xd0] sm:$0xff]
      %v215 = vld [vmem:[%s164 + $0xd8] sm:$0xff]
      %v216 = vld [vmem:[%s164 + $0xe0] sm:$0xff]
      %v217 = vld [vmem:[%s164 + $0xe8] sm:$0xff]
      %v218 = vld [vmem:[%s164 + $0xf0] sm:$0xff]
      %v219 = vld [vmem:[%s164 + $0xf8] sm:$0xff]
      %v220 = vld [vmem:[%s164 + $0x100] sm:$0xff]
      %v221 = vld [vmem:[%s164 + $0x108] sm:$0xff]
      %v222 = vld [vmem:[%s164 + $0x110] sm:$0xff]
      %v223 = vld [vmem:[%s164 + $0x118] sm:$0xff]
      %v224 = vld [vmem:[%s164 + $0x120] sm:$0xff]
      %v225 = vld [vmem:[%s164 + $0x128] sm:$0xff]
      %v226 = vld [vmem:[%s164 + $0x130] sm:$0xff]
      %v227 = vld [vmem:[%s164 + $0x138] sm:$0xff]
      %v228 = vld [vmem:[%s164 + $0x140] sm:$0xff]
      %v229 = vld [vmem:[%s164 + $0x148] sm:$0xff]
      %v230 = vld [vmem:[%s164 + $0x150] sm:$0xff]
      %v231 = vld [vmem:[%s164 + $0x158] sm:$0xff]
      %v232 = vld [vmem:[%s164 + $0x160] sm:$0xff]
      %v233 = vld [vmem:[%s164 + $0x168] sm:$0xff]
      %v234 = vld [vmem:[%s164 + $0x170] sm:$0xff]
      %v235 = vld [vmem:[%s164 + $0x178] sm:$0xff]
      %v236 = vld [vmem:[%s164 + $0x180] sm:$0xff]
      %v237 = vld [vmem:[%s164 + $0x188] sm:$0xff]
      %v238 = vld [vmem:[%s164 + $0x190] sm:$0xff]
      %v239 = vld [vmem:[%s164 + $0x198] sm:$0xff]
      %v240 = vld [vmem:[%s164 + $0x1a0] sm:$0xff]
      %v241 = vld [vmem:[%s164 + $0x1a8] sm:$0xff]
      %v242 = vld [vmem:[%s164 + $0x1b0] sm:$0xff]
      %v243 = vld [vmem:[%s164 + $0x1b8] sm:$0xff]
      %v244 = vld [vmem:[%s164 + $0x1c0] sm:$0xff]
      %v245 = vld [vmem:[%s164 + $0x1c8] sm:$0xff]
      %v246 = vld [vmem:[%s164 + $0x1d0] sm:$0xff]
      %v247 = vld [vmem:[%s164 + $0x1d8] sm:$0xff]
      %v248 = vld [vmem:[%s164 + $0x1e0] sm:$0xff]
      %v249 = vld [vmem:[%s164 + $0x1e8] sm:$0xff]
      %v250 = vld [vmem:[%s164 + $0x1f0] sm:$0xff]
      %v251 = vld [vmem:[%s164 + $0x1f8] sm:$0xff]
      %v252 = vld [vmem:[%s164 + $0x200] sm:$0xff]
      %v253 = vld [vmem:[%s164 + $0x208] sm:$0xff]
      %v254 = vld [vmem:[%s164 + $0x210] sm:$0xff]
      %v255 = vld [vmem:[%s164 + $0x218] sm:$0xff]
      %v256 = vld [vmem:[%s164 + $0x220] sm:$0xff]
      %v257 = vld [vmem:[%s164 + $0x228] sm:$0xff]
      %v258 = vld [vmem:[%s164 + $0x230] sm:$0xff]
      %v259 = vld [vmem:[%s164 + $0x238] sm:$0xff]
      %v260 = vld [vmem:[%s164 + $0x240] sm:$0xff]
      %v261 = vld [vmem:[%s164 + $0x248] sm:$0xff]
      %v262 = vld [vmem:[%s164 + $0x250] sm:$0xff]
      %v263 = vld [vmem:[%s164 + $0x258] sm:$0xff]
      %v264 = vld [vmem:[%s164 + $0x260] sm:$0xff]
      %v265 = vld [vmem:[%s164 + $0x268] sm:$0xff]
      %v266 = vld [vmem:[%s164 + $0x270] sm:$0xff]
      %v267 = vld [vmem:[%s164 + $0x278] sm:$0xff]
      %v268 = vld [vmem:[%s164 + $0x280] sm:$0xff]
      %v269 = vld [vmem:[%s164 + $0x288] sm:$0xff]
      %v270 = vld [vmem:[%s164 + $0x290] sm:$0xff]
      %v271 = vld [vmem:[%s164 + $0x298] sm:$0xff]
      %v272 = vld [vmem:[%s164 + $0x2a0] sm:$0xff]
      %v273 = vld [vmem:[%s164 + $0x2a8] sm:$0xff]
      %v274 = vld [vmem:[%s164 + $0x2b0] sm:$0xff]
      %v275 = vld [vmem:[%s164 + $0x2b8] sm:$0xff]
      %v276 = vld [vmem:[%s164 + $0x2c0] sm:$0xff]
      %v277 = vld [vmem:[%s164 + $0x2c8] sm:$0xff]
      %v278 = vld [vmem:[%s164 + $0x2d0] sm:$0xff]
      %v279 = vld [vmem:[%s164 + $0x2d8] sm:$0xff]
      %v280 = vld [vmem:[%s164 + $0x2e0] sm:$0xff]
      %v281 = vld [vmem:[%s164 + $0x2e8] sm:$0xff]
      %v282 = vld [vmem:[%s164 + $0x2f0] sm:$0xff]
      %v283 = vld [vmem:[%s164 + $0x2f8] sm:$0xff]
      %v284 = vld [vmem:[%s164 + $0x300] sm:$0xff]
      %v285 = vld [vmem:[%s164 + $0x308] sm:$0xff]
      %v286 = vld [vmem:[%s164 + $0x310] sm:$0xff]
      %v287 = vld [vmem:[%s164 + $0x318] sm:$0xff]
      %v288 = vld [vmem:[%s164 + $0x320] sm:$0xff]
      %v289 = vld [vmem:[%s164 + $0x328] sm:$0xff]
      %v290 = vld [vmem:[%s164 + $0x330] sm:$0xff]
      %v291 = vld [vmem:[%s164 + $0x338] sm:$0xff]
      %v292 = vld [vmem:[%s164 + $0x340] sm:$0xff]
      %v293 = vld [vmem:[%s164 + $0x348] sm:$0xff]
      %v294 = vld [vmem:[%s164 + $0x350] sm:$0xff]
      %v295 = vld [vmem:[%s164 + $0x358] sm:$0xff]
      %v296 = vld [vmem:[%s164 + $0x360] sm:$0xff]
      %v297 = vld [vmem:[%s164 + $0x368] sm:$0xff]
      %v298 = vld [vmem:[%s164 + $0x370] sm:$0xff]
      %v299 = vld [vmem:[%s164 + $0x378] sm:$0xff]
      %v300 = vld [vmem:[%s164 + $0x380] sm:$0xff]
      %v301 = vld [vmem:[%s164 + $0x388] sm:$0xff]
      %v302 = vld [vmem:[%s164 + $0x390] sm:$0xff]
      %v303 = vld [vmem:[%s164 + $0x398] sm:$0xff]
      %v304 = vld [vmem:[%s164 + $0x3a0] sm:$0xff]
      %v305 = vld [vmem:[%s164 + $0x3a8] sm:$0xff]
      %v306 = vld [vmem:[%s164 + $0x3b0] sm:$0xff]
      %v307 = vld [vmem:[%s164 + $0x3b8] sm:$0xff]
      %v308 = vld [vmem:[%s164 + $0x3c0] sm:$0xff]
      %v309 = vld [vmem:[%s164 + $0x3c8] sm:$0xff]
      %v310 = vld [vmem:[%s164 + $0x3d0] sm:$0xff]
      %v311 = vld [vmem:[%s164 + $0x3d8] sm:$0xff]
      %v312 = vld [vmem:[%s164 + $0x3e0] sm:$0xff]
      %v313 = vld [vmem:[%s164 + $0x3e8] sm:$0xff]
      %v314 = vld [vmem:[%s164 + $0x3f0] sm:$0xff]
      %v315 = vld [vmem:[%s164 + $0x3f8] sm:$0xff]
      %vm316 = vcmask 523264
      %v318 = vsel %vm316, %v172, 0
      %320 = vmatpush.msra.mxu0 0.0
      %321 = vmatpush.msra.mxu0 0.0
      %322 = vmatpush.msra.mxu0 0.0
      %323 = vmatpush.msra.mxu0 0.0
      %324 = vmatpush.msra.mxu0 0.0
      %325 = vmatpush.msra.mxu0 0.0
      %326 = vmatpush.msra.mxu0 0.0
      %327 = vmatpush.msra.mxu0 0.0
      %328 = vmatpush.msra.mxu0 %v195
      %329 = vmatpush.msra.mxu0 %v194
      %330 = vmatpush.msra.mxu0 %v193
      %331 = vmatpush.msra.mxu0 %v192
      %332 = vmatpush.msra.mxu0 %v191
      %333 = vmatpush.msra.mxu0 %v190
      %334 = vmatpush.msra.mxu0 %v189
      %335 = vmatpush.msra.mxu0 %v188
      %336 = vmatmul.f32.gmra.mxu0 %v318
      %v337 = vpop.f32.mrf.mxu0
      %v338 = vadd.f32 0.0, %v337
      %339 = vdwg.mxu0
      %v341 = vsel %vm316, %v173, 0
      %343 = vmatpush.msra.mxu0 0.0
      %344 = vmatpush.msra.mxu0 0.0
      %345 = vmatpush.msra.mxu0 0.0
      %346 = vmatpush.msra.mxu0 0.0
      %347 = vmatpush.msra.mxu0 0.0
      %348 = vmatpush.msra.mxu0 0.0
      %349 = vmatpush.msra.mxu0 0.0
      %350 = vmatpush.msra.mxu0 0.0
      %351 = vmatpush.msra.mxu0 %v203
      %352 = vmatpush.msra.mxu0 %v202
      %353 = vmatpush.msra.mxu0 %v201
      %354 = vmatpush.msra.mxu0 %v200
      %355 = vmatpush.msra.mxu0 %v199
      %356 = vmatpush.msra.mxu0 %v198
      %357 = vmatpush.msra.mxu0 %v197
      %358 = vmatpush.msra.mxu0 %v196
      %359 = vmatmul.f32.gmra.mxu0 %v341
      %v360 = vpop.f32.mrf.mxu0
      %v361 = vadd.f32 0.0, %v360
      %362 = vdwg.mxu0
      %v364 = vsel %vm316, %v174, 0
      %366 = vmatpush.msra.mxu0 0.0
      %367 = vmatpush.msra.mxu0 0.0
      %368 = vmatpush.msra.mxu0 0.0
      %369 = vmatpush.msra.mxu0 0.0
      %370 = vmatpush.msra.mxu0 0.0
      %371 = vmatpush.msra.mxu0 0.0
      %372 = vmatpush.msra.mxu0 0.0
      %373 = vmatpush.msra.mxu0 0.0
      %374 = vmatpush.msra.mxu0 %v211
      %375 = vmatpush.msra.mxu0 %v210
      %376 = vmatpush.msra.mxu0 %v209
      %377 = vmatpush.msra.mxu0 %v208
      %378 = vmatpush.msra.mxu0 %v207
      %379 = vmatpush.msra.mxu0 %v206
      %380 = vmatpush.msra.mxu0 %v205
      %381 = vmatpush.msra.mxu0 %v204
      %382 = vmatmul.f32.gmra.mxu0 %v364
      %v383 = vpop.f32.mrf.mxu0
      %v384 = vadd.f32 0.0, %v383
      %385 = vdwg.mxu0
      %v387 = vsel %vm316, %v175, 0
      %389 = vmatpush.msra.mxu0 0.0
      %390 = vmatpush.msra.mxu0 0.0
      %391 = vmatpush.msra.mxu0 0.0
      %392 = vmatpush.msra.mxu0 0.0
      %393 = vmatpush.msra.mxu0 0.0
      %394 = vmatpush.msra.mxu0 0.0
      %395 = vmatpush.msra.mxu0 0.0
      %396 = vmatpush.msra.mxu0 0.0
      %397 = vmatpush.msra.mxu0 %v219
      %398 = vmatpush.msra.mxu0 %v218
      %399 = vmatpush.msra.mxu0 %v217
      %400 = vmatpush.msra.mxu0 %v216
      %401 = vmatpush.msra.mxu0 %v215
      %402 = vmatpush.msra.mxu0 %v214
      %403 = vmatpush.msra.mxu0 %v213
      %404 = vmatpush.msra.mxu0 %v212
      %405 = vmatmul.f32.gmra.mxu0 %v387
      %v406 = vpop.f32.mrf.mxu0
      %v407 = vadd.f32 0.0, %v406
      %408 = vdwg.mxu0
      %v410 = vsel %vm316, %v176, 0
      %412 = vmatpush.msra.mxu0 0.0
      %413 = vmatpush.msra.mxu0 0.0
      %414 = vmatpush.msra.mxu0 0.0
      %415 = vmatpush.msra.mxu0 0.0
      %416 = vmatpush.msra.mxu0 0.0
      %417 = vmatpush.msra.mxu0 0.0
      %418 = vmatpush.msra.mxu0 0.0
      %419 = vmatpush.msra.mxu0 0.0
      %420 = vmatpush.msra.mxu0 %v227
      %421 = vmatpush.msra.mxu0 %v226
      %422 = vmatpush.msra.mxu0 %v225
      %423 = vmatpush.msra.mxu0 %v224
      %424 = vmatpush.msra.mxu0 %v223
      %425 = vmatpush.msra.mxu0 %v222
      %426 = vmatpush.msra.mxu0 %v221
      %427 = vmatpush.msra.mxu0 %v220
      %428 = vmatmul.f32.gmra.mxu0 %v410
      %v429 = vpop.f32.mrf.mxu0
      %v430 = vadd.f32 0.0, %v429
      %431 = vdwg.mxu0
      %v433 = vsel %vm316, %v177, 0
      %435 = vmatpush.msra.mxu0 0.0
      %436 = vmatpush.msra.mxu0 0.0
      %437 = vmatpush.msra.mxu0 0.0
      %438 = vmatpush.msra.mxu0 0.0
      %439 = vmatpush.msra.mxu0 0.0
      %440 = vmatpush.msra.mxu0 0.0
      %441 = vmatpush.msra.mxu0 0.0
      %442 = vmatpush.msra.mxu0 0.0
      %443 = vmatpush.msra.mxu0 %v235
      %444 = vmatpush.msra.mxu0 %v234
      %445 = vmatpush.msra.mxu0 %v233
      %446 = vmatpush.msra.mxu0 %v232
      %447 = vmatpush.msra.mxu0 %v231
      %448 = vmatpush.msra.mxu0 %v230
      %449 = vmatpush.msra.mxu0 %v229
      %450 = vmatpush.msra.mxu0 %v228
      %451 = vmatmul.f32.gmra.mxu0 %v433
      %v452 = vpop.f32.mrf.mxu0
      %v453 = vadd.f32 0.0, %v452
      %454 = vdwg.mxu0
      %v456 = vsel %vm316, %v178, 0
      %458 = vmatpush.msra.mxu0 0.0
      %459 = vmatpush.msra.mxu0 0.0
      %460 = vmatpush.msra.mxu0 0.0
      %461 = vmatpush.msra.mxu0 0.0
      %462 = vmatpush.msra.mxu0 0.0
      %463 = vmatpush.msra.mxu0 0.0
      %464 = vmatpush.msra.mxu0 0.0
      %465 = vmatpush.msra.mxu0 0.0
      %466 = vmatpush.msra.mxu0 %v243
      %467 = vmatpush.msra.mxu0 %v242
      %468 = vmatpush.msra.mxu0 %v241
      %469 = vmatpush.msra.mxu0 %v240
      %470 = vmatpush.msra.mxu0 %v239
      %471 = vmatpush.msra.mxu0 %v238
      %472 = vmatpush.msra.mxu0 %v237
      %473 = vmatpush.msra.mxu0 %v236
      %474 = vmatmul.f32.gmra.mxu0 %v456
      %v475 = vpop.f32.mrf.mxu0
      %v476 = vadd.f32 0.0, %v475
      %477 = vdwg.mxu0
      %v479 = vsel %vm316, %v179, 0
      %481 = vmatpush.msra.mxu0 0.0
      %482 = vmatpush.msra.mxu0 0.0
      %483 = vmatpush.msra.mxu0 0.0
      %484 = vmatpush.msra.mxu0 0.0
      %485 = vmatpush.msra.mxu0 0.0
      %486 = vmatpush.msra.mxu0 0.0
      %487 = vmatpush.msra.mxu0 0.0
      %488 = vmatpush.msra.mxu0 0.0
      %489 = vmatpush.msra.mxu0 %v251
      %490 = vmatpush.msra.mxu0 %v250
      %491 = vmatpush.msra.mxu0 %v249
      %492 = vmatpush.msra.mxu0 %v248
      %493 = vmatpush.msra.mxu0 %v247
      %494 = vmatpush.msra.mxu0 %v246
      %495 = vmatpush.msra.mxu0 %v245
      %496 = vmatpush.msra.mxu0 %v244
      %497 = vmatmul.f32.gmra.mxu0 %v479
      %v498 = vpop.f32.mrf.mxu0
      %v499 = vadd.f32 0.0, %v498
      %500 = vdwg.mxu0
      %v502 = vsel %vm316, %v180, 0
      %504 = vmatpush.msra.mxu0 0.0
      %505 = vmatpush.msra.mxu0 0.0
      %506 = vmatpush.msra.mxu0 0.0
      %507 = vmatpush.msra.mxu0 0.0
      %508 = vmatpush.msra.mxu0 0.0
      %509 = vmatpush.msra.mxu0 0.0
      %510 = vmatpush.msra.mxu0 0.0
      %511 = vmatpush.msra.mxu0 0.0
      %512 = vmatpush.msra.mxu0 %v259
      %513 = vmatpush.msra.mxu0 %v258
      %514 = vmatpush.msra.mxu0 %v257
      %515 = vmatpush.msra.mxu0 %v256
      %516 = vmatpush.msra.mxu0 %v255
      %517 = vmatpush.msra.mxu0 %v254
      %518 = vmatpush.msra.mxu0 %v253
      %519 = vmatpush.msra.mxu0 %v252
      %520 = vmatmul.f32.gmra.mxu0 %v502
      %v521 = vpop.f32.mrf.mxu0
      %v522 = vadd.f32 0.0, %v521
      %523 = vdwg.mxu0
      %v525 = vsel %vm316, %v181, 0
      %527 = vmatpush.msra.mxu0 0.0
      %528 = vmatpush.msra.mxu0 0.0
      %529 = vmatpush.msra.mxu0 0.0
      %530 = vmatpush.msra.mxu0 0.0
      %531 = vmatpush.msra.mxu0 0.0
      %532 = vmatpush.msra.mxu0 0.0
      %533 = vmatpush.msra.mxu0 0.0
      %534 = vmatpush.msra.mxu0 0.0
      %535 = vmatpush.msra.mxu0 %v267
      %536 = vmatpush.msra.mxu0 %v266
      %537 = vmatpush.msra.mxu0 %v265
      %538 = vmatpush.msra.mxu0 %v264
      %539 = vmatpush.msra.mxu0 %v263
      %540 = vmatpush.msra.mxu0 %v262
      %541 = vmatpush.msra.mxu0 %v261
      %542 = vmatpush.msra.mxu0 %v260
      %543 = vmatmul.f32.gmra.mxu0 %v525
      %v544 = vpop.f32.mrf.mxu0
      %v545 = vadd.f32 0.0, %v544
      %546 = vdwg.mxu0
      %v548 = vsel %vm316, %v182, 0
      %550 = vmatpush.msra.mxu0 0.0
      %551 = vmatpush.msra.mxu0 0.0
      %552 = vmatpush.msra.mxu0 0.0
      %553 = vmatpush.msra.mxu0 0.0
      %554 = vmatpush.msra.mxu0 0.0
      %555 = vmatpush.msra.mxu0 0.0
      %556 = vmatpush.msra.mxu0 0.0
      %557 = vmatpush.msra.mxu0 0.0
      %558 = vmatpush.msra.mxu0 %v275
      %559 = vmatpush.msra.mxu0 %v274
      %560 = vmatpush.msra.mxu0 %v273
      %561 = vmatpush.msra.mxu0 %v272
      %562 = vmatpush.msra.mxu0 %v271
      %563 = vmatpush.msra.mxu0 %v270
      %564 = vmatpush.msra.mxu0 %v269
      %565 = vmatpush.msra.mxu0 %v268
      %566 = vmatmul.f32.gmra.mxu0 %v548
      %v567 = vpop.f32.mrf.mxu0
      %v568 = vadd.f32 0.0, %v567
      %569 = vdwg.mxu0
      %v571 = vsel %vm316, %v183, 0
      %573 = vmatpush.msra.mxu0 0.0
      %574 = vmatpush.msra.mxu0 0.0
      %575 = vmatpush.msra.mxu0 0.0
      %576 = vmatpush.msra.mxu0 0.0
      %577 = vmatpush.msra.mxu0 0.0
      %578 = vmatpush.msra.mxu0 0.0
      %579 = vmatpush.msra.mxu0 0.0
      %580 = vmatpush.msra.mxu0 0.0
      %581 = vmatpush.msra.mxu0 %v283
      %582 = vmatpush.msra.mxu0 %v282
      %583 = vmatpush.msra.mxu0 %v281
      %584 = vmatpush.msra.mxu0 %v280
      %585 = vmatpush.msra.mxu0 %v279
      %586 = vmatpush.msra.mxu0 %v278
      %587 = vmatpush.msra.mxu0 %v277
      %588 = vmatpush.msra.mxu0 %v276
      %589 = vmatmul.f32.gmra.mxu0 %v571
      %v590 = vpop.f32.mrf.mxu0
      %v591 = vadd.f32 0.0, %v590
      %592 = vdwg.mxu0
      %v594 = vsel %vm316, %v184, 0
      %596 = vmatpush.msra.mxu0 0.0
      %597 = vmatpush.msra.mxu0 0.0
      %598 = vmatpush.msra.mxu0 0.0
      %599 = vmatpush.msra.mxu0 0.0
      %600 = vmatpush.msra.mxu0 0.0
      %601 = vmatpush.msra.mxu0 0.0
      %602 = vmatpush.msra.mxu0 0.0
      %603 = vmatpush.msra.mxu0 0.0
      %604 = vmatpush.msra.mxu0 %v291
      %605 = vmatpush.msra.mxu0 %v290
      %606 = vmatpush.msra.mxu0 %v289
      %607 = vmatpush.msra.mxu0 %v288
      %608 = vmatpush.msra.mxu0 %v287
      %609 = vmatpush.msra.mxu0 %v286
      %610 = vmatpush.msra.mxu0 %v285
      %611 = vmatpush.msra.mxu0 %v284
      %612 = vmatmul.f32.gmra.mxu0 %v594
      %v613 = vpop.f32.mrf.mxu0
      %v614 = vadd.f32 0.0, %v613
      %615 = vdwg.mxu0
      %v617 = vsel %vm316, %v185, 0
      %619 = vmatpush.msra.mxu0 0.0
      %620 = vmatpush.msra.mxu0 0.0
      %621 = vmatpush.msra.mxu0 0.0
      %622 = vmatpush.msra.mxu0 0.0
      %623 = vmatpush.msra.mxu0 0.0
      %624 = vmatpush.msra.mxu0 0.0
      %625 = vmatpush.msra.mxu0 0.0
      %626 = vmatpush.msra.mxu0 0.0
      %627 = vmatpush.msra.mxu0 %v299
      %628 = vmatpush.msra.mxu0 %v298
      %629 = vmatpush.msra.mxu0 %v297
      %630 = vmatpush.msra.mxu0 %v296
      %631 = vmatpush.msra.mxu0 %v295
      %632 = vmatpush.msra.mxu0 %v294
      %633 = vmatpush.msra.mxu0 %v293
      %634 = vmatpush.msra.mxu0 %v292
      %635 = vmatmul.f32.gmra.mxu0 %v617
      %v636 = vpop.f32.mrf.mxu0
      %v637 = vadd.f32 0.0, %v636
      %638 = vdwg.mxu0
      %v640 = vsel %vm316, %v186, 0
      %642 = vmatpush.msra.mxu0 0.0
      %643 = vmatpush.msra.mxu0 0.0
      %644 = vmatpush.msra.mxu0 0.0
      %645 = vmatpush.msra.mxu0 0.0
      %646 = vmatpush.msra.mxu0 0.0
      %647 = vmatpush.msra.mxu0 0.0
      %648 = vmatpush.msra.mxu0 0.0
      %649 = vmatpush.msra.mxu0 0.0
      %650 = vmatpush.msra.mxu0 %v307
      %651 = vmatpush.msra.mxu0 %v306
      %652 = vmatpush.msra.mxu0 %v305
      %653 = vmatpush.msra.mxu0 %v304
      %654 = vmatpush.msra.mxu0 %v303
      %655 = vmatpush.msra.mxu0 %v302
      %656 = vmatpush.msra.mxu0 %v301
      %657 = vmatpush.msra.mxu0 %v300
      %658 = vmatmul.f32.gmra.mxu0 %v640
      %v659 = vpop.f32.mrf.mxu0
      %v660 = vadd.f32 0.0, %v659
      %661 = vdwg.mxu0
      %v663 = vsel %vm316, %v187, 0
      %665 = vmatpush.msra.mxu0 0.0
      %666 = vmatpush.msra.mxu0 0.0
      %667 = vmatpush.msra.mxu0 0.0
      %668 = vmatpush.msra.mxu0 0.0
      %669 = vmatpush.msra.mxu0 0.0
      %670 = vmatpush.msra.mxu0 0.0
      %671 = vmatpush.msra.mxu0 0.0
      %672 = vmatpush.msra.mxu0 0.0
      %673 = vmatpush.msra.mxu0 %v315
      %674 = vmatpush.msra.mxu0 %v314
      %675 = vmatpush.msra.mxu0 %v313
      %676 = vmatpush.msra.mxu0 %v312
      %677 = vmatpush.msra.mxu0 %v311
      %678 = vmatpush.msra.mxu0 %v310
      %679 = vmatpush.msra.mxu0 %v309
      %680 = vmatpush.msra.mxu0 %v308
      %681 = vmatmul.f32.gmra.mxu0 %v663
      %v682 = vpop.f32.mrf.mxu0
      %v683 = vadd.f32 0.0, %v682
      %684 = vdwg.mxu0
      %vm685 = vcmask 517120
      %686 = vst.msk [vmem:[%s170] sm:$0x3] %vm685, %v338
      %687 = vst.msk [vmem:[%s170 + $0x2] sm:$0x3] %vm685, %v361
      %688 = vst.msk [vmem:[%s170 + $0x4] sm:$0x3] %vm685, %v384
      %689 = vst.msk [vmem:[%s170 + $0x6] sm:$0x3] %vm685, %v407
      %690 = vst.msk [vmem:[%s170 + $0x8] sm:$0x3] %vm685, %v430
      %691 = vst.msk [vmem:[%s170 + $0xa] sm:$0x3] %vm685, %v453
      %692 = vst.msk [vmem:[%s170 + $0xc] sm:$0x3] %vm685, %v476
      %693 = vst.msk [vmem:[%s170 + $0xe] sm:$0x3] %vm685, %v499
      %694 = vst.msk [vmem:[%s170 + $0x10] sm:$0x3] %vm685, %v522
      %695 = vst.msk [vmem:[%s170 + $0x12] sm:$0x3] %vm685, %v545
      %696 = vst.msk [vmem:[%s170 + $0x14] sm:$0x3] %vm685, %v568
      %697 = vst.msk [vmem:[%s170 + $0x16] sm:$0x3] %vm685, %v591
      %698 = vst.msk [vmem:[%s170 + $0x18] sm:$0x3] %vm685, %v614
      %699 = vst.msk [vmem:[%s170 + $0x1a] sm:$0x3] %vm685, %v637
      %700 = vst.msk [vmem:[%s170 + $0x1c] sm:$0x3] %vm685, %v660
      %701 = vst.msk [vmem:[%s170 + $0x1e] sm:$0x3] %vm685, %v683
      %s702 = smul.u32 16, %s13
      %p703 = scmp.lt.s32.totalorder %s702, 31
      %s704 = scalar_select %p703, %s702, 31
      %s705 = smul.addr %s704, 2
      %s706 = scalar_lea.vmem %s2, %s705
      // Predicated region
      $region29: #{fno_forward.7} parent=27 // pred_check
        %p707 = pneg %p83
      $region30: #{fno_forward.7} parent=27 // pred_check_branch
        %709 = sbr.rel (%p707) target = $region32
      $region31: #{fno_forward.7} parent=27 // pred_region
        %s710 = smul.u32 16, %s13
      $region32: #{fno_forward.7} parent=27 // pred_fallthru
        _
    $region28: #{fno_forward.7} parent=5 // pred_fallthru
      _
    %p711 = scmp.le.s32.totalorder 2, %s8
    // Predicated region
    $region33: #{fno_forward.7} parent=5 // pred_check
      %p712 = pneg %p711
    $region34: #{fno_forward.7} parent=5 // pred_check_branch
      %714 = sbr.rel (%p712) target = $region36
    $region35: #{fno_forward.7} parent=5 // pred_region
      %s715 = ssub.s32 %s8, 2
      // Predicated region
      $region37: #{fno_forward.7} parent=35 // pred_check
        %p716 = pneg %p89
      $region38: #{fno_forward.7} parent=35 // pred_check_branch
        %718 = sbr.rel (%p716) target = $region40
      $region39: #{fno_forward.7} parent=35 // pred_region
        %s719 = smul.u32 16, %s14
        %p720 = scmp.lt.s32.totalorder %s719, 31
        %s721 = scalar_select %p720, %s719, 31
        %s722 = smul.addr %s721, 2
        %s723 = scalar_lea.vmem %s2, %s722
      $region40: #{fno_forward.7} parent=35 // pred_fallthru
        _
    $region36: #{fno_forward.7} parent=5 // pred_fallthru
      _
  $region6: #{fno_forward.7} parent=0 // loop_footer
    %s12 = sadd.s32 1, %s8
  $region7: #{fno_forward.7} parent=0 // loop_footer_branch
    %7 = sbr.rel target = $region3
  $region8: #{fno_forward.7} parent=0 // loop_exit
    _

// kernel: reverse.4
$region0: #{reverse.4}
  #allocation0 [shape = 's32[1]{0}', space=sflag, size = 0x4, scoped, tag = 'scoped memory for reverse.4']
  %s0 = inlined_call_operand.vmem [shape: f32[2,32,16,7], index: 0, kind: input, shape index: {}]
  %s1 = inlined_call_operand.vmem [shape: f32[2,32,16,7], index: 1, kind: output, shape index: {}]
  %s2 = scalar_lea.vmem %s0, 96
  %v3 = vld [vmem:[%s2] sm:$0xff]
  %4 = vst [vmem:[%s1] sm:$0xff] %v3
  %s5 = scalar_lea.vmem %s0, 208
  %v6 = vld [vmem:[%s5] sm:$0xff]
  %s7 = scalar_lea.vmem %s1, 112
  %8 = vst [vmem:[%s7] sm:$0xff] %v6
  %s9 = scalar_lea.vmem %s0, 80
  %v10 = vld [vmem:[%s9] sm:$0xff]
  %s11 = scalar_lea.vmem %s1, 16
  %12 = vst [vmem:[%s11] sm:$0xff] %v10
  %s13 = scalar_lea.vmem %s0, 192
  %v14 = vld [vmem:[%s13] sm:$0xff]
  %s15 = scalar_lea.vmem %s1, 128
  %16 = vst [vmem:[%s15] sm:$0xff] %v14
  %s17 = scalar_lea.vmem %s0, 64
  %v18 = vld [vmem:[%s17] sm:$0xff]
  %s19 = scalar_lea.vmem %s1, 32
  %20 = vst [vmem:[%s19] sm:$0xff] %v18
  %s21 = scalar_lea.vmem %s0, 176
  %v22 = vld [vmem:[%s21] sm:$0xff]
  %s23 = scalar_lea.vmem %s1, 144
  %24 = vst [vmem:[%s23] sm:$0xff] %v22
  %s25 = scalar_lea.vmem %s0, 48
  %v26 = vld [vmem:[%s25] sm:$0xff]
  %s27 = scalar_lea.vmem %s1, 48
  %28 = vst [vmem:[%s27] sm:$0xff] %v26
  %s29 = scalar_lea.vmem %s0, 160
  %v30 = vld [vmem:[%s29] sm:$0xff]
  %s31 = scalar_lea.vmem %s1, 160
  %32 = vst [vmem:[%s31] sm:$0xff] %v30
  %s33 = scalar_lea.vmem %s0, 32
  %v34 = vld [vmem:[%s33] sm:$0xff]
  %s35 = scalar_lea.vmem %s1, 64
  %36 = vst [vmem:[%s35] sm:$0xff] %v34
  %s37 = scalar_lea.vmem %s0, 144
  %v38 = vld [vmem:[%s37] sm:$0xff]
  %s39 = scalar_lea.vmem %s1, 176
  %40 = vst [vmem:[%s39] sm:$0xff] %v38
  %s41 = scalar_lea.vmem %s0, 16
  %v42 = vld [vmem:[%s41] sm:$0xff]
  %s43 = scalar_lea.vmem %s1, 80
  %44 = vst [vmem:[%s43] sm:$0xff] %v42
  %s45 = scalar_lea.vmem %s0, 128
  %v46 = vld [vmem:[%s45] sm:$0xff]
  %s47 = scalar_lea.vmem %s1, 192
  %48 = vst [vmem:[%s47] sm:$0xff] %v46
  %v49 = vld [vmem:[%s0] sm:$0xff]
  %s50 = scalar_lea.vmem %s1, 96
  %51 = vst [vmem:[%s50] sm:$0xff] %v49
  %s52 = scalar_lea.vmem %s0, 112
  %v53 = vld [vmem:[%s52] sm:$0xff]
  %s54 = scalar_lea.vmem %s1, 208
  %55 = vst [vmem:[%s54] sm:$0xff] %v53
  %s56 = scalar_lea.vmem %s0, 104
  %v57 = vld [vmem:[%s56] sm:$0xff]
  %s58 = scalar_lea.vmem %s1, 8
  %59 = vst [vmem:[%s58] sm:$0xff] %v57
  %s60 = scalar_lea.vmem %s0, 216
  %v61 = vld [vmem:[%s60] sm:$0xff]
  %s62 = scalar_lea.vmem %s1, 120
  %63 = vst [vmem:[%s62] sm:$0xff] %v61
  %s64 = scalar_lea.vmem %s0, 88
  %v65 = vld [vmem:[%s64] sm:$0xff]
  %s66 = scalar_lea.vmem %s1, 24
  %67 = vst [vmem:[%s66] sm:$0xff] %v65
  %s68 = scalar_lea.vmem %s0, 200
  %v69 = vld [vmem:[%s68] sm:$0xff]
  %s70 = scalar_lea.vmem %s1, 136
  %71 = vst [vmem:[%s70] sm:$0xff] %v69
  %s72 = scalar_lea.vmem %s0, 72
  %v73 = vld [vmem:[%s72] sm:$0xff]
  %s74 = scalar_lea.vmem %s1, 40
  %75 = vst [vmem:[%s74] sm:$0xff] %v73
  %s76 = scalar_lea.vmem %s0, 184
  %v77 = vld [vmem:[%s76] sm:$0xff]
  %s78 = scalar_lea.vmem %s1, 152
  %79 = vst [vmem:[%s78] sm:$0xff] %v77
  %s80 = scalar_lea.vmem %s0, 56
  %v81 = vld [vmem:[%s80] sm:$0xff]
  %s82 = scalar_lea.vmem %s1, 56
  %83 = vst [vmem:[%s82] sm:$0xff] %v81
  %s84 = scalar_lea.vmem %s0, 168
  %v85 = vld [vmem:[%s84] sm:$0xff]
  %s86 = scalar_lea.vmem %s1, 168
  %87 = vst [vmem:[%s86] sm:$0xff] %v85
  %s88 = scalar_lea.vmem %s0, 40
  %v89 = vld [vmem:[%s88] sm:$0xff]
  %s90 = scalar_lea.vmem %s1, 72
  %91 = vst [vmem:[%s90] sm:$0xff] %v89
  %s92 = scalar_lea.vmem %s0, 152
  %v93 = vld [vmem:[%s92] sm:$0xff]
  %s94 = scalar_lea.vmem %s1, 184
  %95 = vst [vmem:[%s94] sm:$0xff] %v93
  %s96 = scalar_lea.vmem %s0, 24
  %v97 = vld [vmem:[%s96] sm:$0xff]
  %s98 = scalar_lea.vmem %s1, 88
  %99 = vst [vmem:[%s98] sm:$0xff] %v97
  %s100 = scalar_lea.vmem %s0, 136
  %v101 = vld [vmem:[%s100] sm:$0xff]
  %s102 = scalar_lea.vmem %s1, 200
  %103 = vst [vmem:[%s102] sm:$0xff] %v101
  %s104 = scalar_lea.vmem %s0, 8
  %v105 = vld [vmem:[%s104] sm:$0xff]
  %s106 = scalar_lea.vmem %s1, 104
  %107 = vst [vmem:[%s106] sm:$0xff] %v105
  %s108 = scalar_lea.vmem %s0, 120
  %v109 = vld [vmem:[%s108] sm:$0xff]
  %s110 = scalar_lea.vmem %s1, 216
  %111 = vst [vmem:[%s110] sm:$0xff] %v109

// kernel: fno_forward.8
$region0: #{fno_forward.8}
  #allocation0 [shape = 'u32[]', space=smem, size = 0x4, offset = 0x4, fixed_abs, tag = 'smem constant byte address 0x4 - core index']
  #allocation1 [shape = 'u32[72,128]{1,0:T(1,128)}', space=vmem, size = 0x9000, scoped, tag = 'internal scratch']
  %s0 = inlined_call_operand.vmem [shape: f32[512,32], index: 0, kind: input, shape index: {}]
  %s1 = inlined_call_operand.vmem [shape: f32[512,32], index: 1, kind: input, shape index: {}]
  %s2 = inlined_call_operand.vmem [shape: bf16[32,32], index: 2, kind: input, shape index: {}]
  %s3 = inlined_call_operand.vmem [shape: f32[1,32], index: 3, kind: input, shape index: {}]
  %s4 = inlined_call_operand.vmem [shape: f32[512,32], index: 4, kind: output, shape index: {}]
  %s5 = sld [smem:[#allocation0]]
  $region49: #{fno_forward.8} parent=0
    _
  %s7 = ssub.s32 1, %s5
  %s8 = scalar_select 0, %s7, %s5
  loop: start=0, step=1, limit=4
  $region2: #{fno_forward.8} parent=0 // loop_pre_header
    _
  $region3: #{fno_forward.8} parent=0 // loop_header
    %s10 = sphi 0, %s14
    %p11 = scmp.ge.s32.totalorder %s10, 4
    %s20 = sphi 0, %s22
    %s23 = sphi 0, %s20
    %s24 = sphi 0, %s23
    %s40 = sphi 0, %s24
    %s46 = sphi 0, %s48
    %s49 = sphi 0, %s46
    %s50 = sphi 0, %s49
    %s66 = sphi 0, %s50
    %s70 = sphi 0, %s70
    %s72 = sphi 0, %s70
    %s73 = sphi 0, %s72
    %s87 = sphi 0, %s73
    %s91 = sphi 0, %s91
    %s93 = sphi 0, %s91
    %s94 = sphi 0, %s93
    %s108 = sphi 0, %s94
    %s114 = sphi 0, %s116
    %s117 = sphi 0, %s114
    %s118 = sphi 0, %s117
    %s134 = sphi 0, %s118
  $region4: #{fno_forward.8} parent=0 // loop_header_branch
    %13 = sbr.rel (%p11) target = $region8
  $region5: #{fno_forward.8} parent=0 // loop_body
    %s15 = ssub.s32 %s10, 1
    %s16 = ssub.s32 %s10, 2
    %s17 = sadd.s32 %s10, 1
    %s18 = ssub.s32 %s10, %s17
    %p19 = scmp.eq.s32.totalorder %s18, 0
    %s21 = sadd.s32 %s20, 1
    %s22 = scalar_select %p19, %s20, %s21
    %p25 = pneg %p19
    %p26 = scmp.eq.s32.totalorder %s10, 1
    %p27 = por %p25, %p26
    %p28 = scmp.ne.s32.totalorder %s20, %s23
    %p29 = scmp.eq.s32.totalorder %s10, 0
    %p30 = por %p28, %p29
    %p31 = scmp.ne.s32.totalorder %s20, %s23
    %p32 = scmp.eq.s32.totalorder %s15, 1
    %p33 = por %p31, %p32
    %p34 = scmp.ne.s32.totalorder %s23, %s24
    %p35 = scmp.eq.s32.totalorder %s15, 0
    %p36 = por %p34, %p35
    %p37 = scmp.ne.s32.totalorder %s23, %s24
    %p38 = scmp.eq.s32.totalorder %s16, 1
    %p39 = por %p37, %p38
    %p41 = scmp.ne.s32.totalorder %s24, %s40
    %p42 = scmp.eq.s32.totalorder %s16, 0
    %p43 = por %p41, %p42
    %s44 = ssub.s32 %s10, %s17
    %p45 = scmp.eq.s32.totalorder %s44, 0
    %s47 = sadd.s32 %s46, 1
    %s48 = scalar_select %p45, %s46, %s47
    %p51 = pneg %p45
    %p52 = scmp.eq.s32.totalorder %s10, 1
    %p53 = por %p51, %p52
    %p54 = scmp.ne.s32.totalorder %s46, %s49
    %p55 = scmp.eq.s32.totalorder %s10, 0
    %p56 = por %p54, %p55
    %p57 = scmp.ne.s32.totalorder %s46, %s49
    %p58 = scmp.eq.s32.totalorder %s15, 1
    %p59 = por %p57, %p58
    %p60 = scmp.ne.s32.totalorder %s49, %s50
    %p61 = scmp.eq.s32.totalorder %s15, 0
    %p62 = por %p60, %p61
    %p63 = scmp.ne.s32.totalorder %s49, %s50
    %p64 = scmp.eq.s32.totalorder %s16, 1
    %p65 = por %p63, %p64
    %p67 = scmp.ne.s32.totalorder %s50, %s66
    %p68 = scmp.eq.s32.totalorder %s16, 0
    %p69 = por %p67, %p68
    %s71 = sadd.s32 %s70, 1
    %p74 = scmp.eq.s32.totalorder %s10, 1
    %p75 = scmp.ne.s32.totalorder %s70, %s72
    %p76 = scmp.eq.s32.totalorder %s10, 0
    %p77 = por %p75, %p76
    %p78 = scmp.ne.s32.totalorder %s70, %s72
    %p79 = scmp.eq.s32.totalorder %s15, 1
    %p80 = por %p78, %p79
    %p81 = scmp.ne.s32.totalorder %s72, %s73
    %p82 = scmp.eq.s32.totalorder %s15, 0
    %p83 = por %p81, %p82
    %p84 = scmp.ne.s32.totalorder %s72, %s73
    %p85 = scmp.eq.s32.totalorder %s16, 1
    %p86 = por %p84, %p85
    %p88 = scmp.ne.s32.totalorder %s73, %s87
    %p89 = scmp.eq.s32.totalorder %s16, 0
    %p90 = por %p88, %p89
    %s92 = sadd.s32 %s91, 1
    %p95 = scmp.eq.s32.totalorder %s10, 1
    %p96 = scmp.ne.s32.totalorder %s91, %s93
    %p97 = scmp.eq.s32.totalorder %s10, 0
    %p98 = por %p96, %p97
    %p99 = scmp.ne.s32.totalorder %s91, %s93
    %p100 = scmp.eq.s32.totalorder %s15, 1
    %p101 = por %p99, %p100
    %p102 = scmp.ne.s32.totalorder %s93, %s94
    %p103 = scmp.eq.s32.totalorder %s15, 0
    %p104 = por %p102, %p103
    %p105 = scmp.ne.s32.totalorder %s93, %s94
    %p106 = scmp.eq.s32.totalorder %s16, 1
    %p107 = por %p105, %p106
    %p109 = scmp.ne.s32.totalorder %s94, %s108
    %p110 = scmp.eq.s32.totalorder %s16, 0
    %p111 = por %p109, %p110
    %s112 = ssub.s32 %s10, %s17
    %p113 = scmp.eq.s32.totalorder %s112, 0
    %s115 = sadd.s32 %s114, 1
    %s116 = scalar_select %p113, %s114, %s115
    %p119 = pneg %p113
    %p120 = scmp.eq.s32.totalorder %s10, 1
    %p121 = por %p119, %p120
    %p122 = scmp.ne.s32.totalorder %s114, %s117
    %p123 = scmp.eq.s32.totalorder %s10, 0
    %p124 = por %p122, %p123
    %p125 = scmp.ne.s32.totalorder %s114, %s117
    %p126 = scmp.eq.s32.totalorder %s15, 1
    %p127 = por %p125, %p126
    %p128 = scmp.ne.s32.totalorder %s117, %s118
    %p129 = scmp.eq.s32.totalorder %s15, 0
    %p130 = por %p128, %p129
    %p131 = scmp.ne.s32.totalorder %s117, %s118
    %p132 = scmp.eq.s32.totalorder %s16, 1
    %p133 = por %p131, %p132
    %p135 = scmp.ne.s32.totalorder %s118, %s134
    %p136 = scmp.eq.s32.totalorder %s16, 0
    %p137 = por %p135, %p136
    %p138 = scmp.le.s32.totalorder 1, %s10
    %p139 = scmp.lt.s32.totalorder %s10, 3
    %p140 = pnand %p138, %p139
    %p141 = pneg %p140
    // Predicated region
    $region9: #{fno_forward.8} parent=5 // pred_check
      _
    $region10: #{fno_forward.8} parent=5 // pred_check_branch
      %143 = sbr.rel (%p140) target = $region12
    $region11: #{fno_forward.8} parent=5 // pred_region
      %s144 = ssub.s32 %s10, 1
      // Predicated region
      $region13: #{fno_forward.8} parent=11 // pred_check
        %p145 = pneg %p83
      $region14: #{fno_forward.8} parent=11 // pred_check_branch
        %147 = sbr.rel (%p145) target = $region16
      $region15: #{fno_forward.8} parent=11 // pred_region
        _
      $region16: #{fno_forward.8} parent=11 // pred_fallthru
        _
      // Predicated region
      $region17: #{fno_forward.8} parent=11 // pred_check
        %p148 = pneg %p104
      $region18: #{fno_forward.8} parent=11 // pred_check_branch
        %150 = sbr.rel (%p148) target = $region20
      $region19: #{fno_forward.8} parent=11 // pred_region
        _
      $region20: #{fno_forward.8} parent=11 // pred_fallthru
        _
    $region12: #{fno_forward.8} parent=5 // pred_fallthru
      _
    %p151 = scmp.lt.s32.totalorder %s10, 2
    // Predicated region
    $region21: #{fno_forward.8} parent=5 // pred_check
      %p152 = pneg %p151
    $region22: #{fno_forward.8} parent=5 // pred_check_branch
      %154 = sbr.rel (%p152) target = $region24
    $region23: #{fno_forward.8} parent=5 // pred_region
      // Predicated region
      $region25: #{fno_forward.8} parent=23 // pred_check
        %p155 = pneg %p30
      $region26: #{fno_forward.8} parent=23 // pred_check_branch
        %157 = sbr.rel (%p155) target = $region28
      $region27: #{fno_forward.8} parent=23 // pred_region
        %s158 = smul.u32 32, %s10
        %p159 = scmp.lt.s32.totalorder %s158, 63
        %s160 = scalar_select %p159, %s158, 63
        %s161 = smul.addr %s160, 8
        %s162 = scalar_lea.vmem %s0, %s161
        %s163 = smul.u32 32, %s10
      $region28: #{fno_forward.8} parent=23 // pred_fallthru
        _
      // Predicated region
      $region29: #{fno_forward.8} parent=23 // pred_check
        %p164 = pneg %p56
      $region30: #{fno_forward.8} parent=23 // pred_check_branch
        %166 = sbr.rel (%p164) target = $region32
      $region31: #{fno_forward.8} parent=23 // pred_region
        %s167 = smul.u32 32, %s10
        %p168 = scmp.lt.s32.totalorder %s167, 63
        %s169 = scalar_select %p168, %s167, 63
        %s170 = smul.addr %s169, 8
        %s171 = scalar_lea.vmem %s1, %s170
        %s172 = smul.u32 32, %s10
      $region32: #{fno_forward.8} parent=23 // pred_fallthru
        _
    $region24: #{fno_forward.8} parent=5 // pred_fallthru
      _
    %p173 = scmp.le.s32.totalorder 1, %s10
    %p174 = scmp.lt.s32.totalorder %s10, 3
    %p175 = pnand %p173, %p174
    %p176 = pneg %p175
    // Predicated region
    $region33: #{fno_forward.8} parent=5 // pred_check
      _
    $region34: #{fno_forward.8} parent=5 // pred_check_branch
      %178 = sbr.rel (%p175) target = $region36
    $region35: #{fno_forward.8} parent=5 // pred_region
      %s179 = ssub.s32 %s10, 1
      %s180 = smul.u32 32, %s15
      %p181 = scmp.lt.s32.totalorder %s180, 63
      %s182 = scalar_select %p181, %s180, 63
      %s183 = smul.addr %s182, 8
      %s184 = scalar_lea.vmem %s0, %s183
      %p185 = pneg %p36
      %p186 = pneg %p33
      %s187 = smul.u32 32, %s15
      %p188 = scmp.lt.s32.totalorder %s187, 63
      %s189 = scalar_select %p188, %s187, 63
      %s190 = smul.addr %s189, 8
      %s191 = scalar_lea.vmem %s1, %s190
      %p192 = pneg %p62
      %p193 = pneg %p59
      %p194 = pneg %p83
      %p195 = pneg %p80
      %p196 = pneg %p104
      %p197 = pneg %p101
      %p198 = pneg %p130
      %p199 = pneg %p127
      %s200 = smul.u32 32, %s15
      %p201 = scmp.lt.s32.totalorder %s200, 63
      %s202 = scalar_select %p201, %s200, 63
      %s203 = smul.addr %s202, 8
      %s204 = scalar_lea.vmem %s4, %s203
      %s205 = smul.u32 32, %s15
      %p206 = scmp.lt.s32.totalorder %s205, 63
      %s207 = scalar_select %p206, %s205, 63
      %s208 = smul.addr %s207, 8
      %s209 = scalar_lea.vmem %s0, %s208
      %s210 = smul.u32 32, %s15
      %s211 = smul.u32 32, %s15
      %p212 = scmp.lt.s32.totalorder %s211, 63
      %s213 = scalar_select %p212, %s211, 63
      %s214 = smul.addr %s213, 8
      %s215 = scalar_lea.vmem %s1, %s214
      %s216 = smul.u32 32, %s15
      %s217 = smul.u32 32, %s15
      %p218 = scmp.lt.s32.totalorder %s217, 63
      %s219 = scalar_select %p218, %s217, 63
      %s220 = smul.addr %s219, 8
      %s221 = scalar_lea.vmem %s4, %s220
      %s222 = smul.u32 32, %s15
      %v224 = vld [vmem:[%s215] sm:$0xff]
      %v225 = vld [vmem:[%s215 + $0x8] sm:$0xff]
      %v226 = vld [vmem:[%s215 + $0x10] sm:$0xff]
      %v227 = vld [vmem:[%s215 + $0x18] sm:$0xff]
      %v228 = vld [vmem:[%s215 + $0x20] sm:$0xff]
      %v229 = vld [vmem:[%s215 + $0x28] sm:$0xff]
      %v230 = vld [vmem:[%s215 + $0x30] sm:$0xff]
      %v231 = vld [vmem:[%s215 + $0x38] sm:$0xff]
      %v232 = vld [vmem:[%s215 + $0x40] sm:$0xff]
      %v233 = vld [vmem:[%s215 + $0x48] sm:$0xff]
      %v234 = vld [vmem:[%s215 + $0x50] sm:$0xff]
      %v235 = vld [vmem:[%s215 + $0x58] sm:$0xff]
      %v236 = vld [vmem:[%s215 + $0x60] sm:$0xff]
      %v237 = vld [vmem:[%s215 + $0x68] sm:$0xff]
      %v238 = vld [vmem:[%s215 + $0x70] sm:$0xff]
      %v239 = vld [vmem:[%s215 + $0x78] sm:$0xff]
      %v240 = vld [vmem:[%s215 + $0x80] sm:$0xff]
      %v241 = vld [vmem:[%s215 + $0x88] sm:$0xff]
      %v242 = vld [vmem:[%s215 + $0x90] sm:$0xff]
      %v243 = vld [vmem:[%s215 + $0x98] sm:$0xff]
      %v244 = vld [vmem:[%s215 + $0xa0] sm:$0xff]
      %v245 = vld [vmem:[%s215 + $0xa8] sm:$0xff]
      %v246 = vld [vmem:[%s215 + $0xb0] sm:$0xff]
      %v247 = vld [vmem:[%s215 + $0xb8] sm:$0xff]
      %v248 = vld [vmem:[%s215 + $0xc0] sm:$0xff]
      %v249 = vld [vmem:[%s215 + $0xc8] sm:$0xff]
      %v250 = vld [vmem:[%s215 + $0xd0] sm:$0xff]
      %v251 = vld [vmem:[%s215 + $0xd8] sm:$0xff]
      %v252 = vld [vmem:[%s215 + $0xe0] sm:$0xff]
      %v253 = vld [vmem:[%s215 + $0xe8] sm:$0xff]
      %v254 = vld [vmem:[%s215 + $0xf0] sm:$0xff]
      %v255 = vld [vmem:[%s215 + $0xf8] sm:$0xff]
      %v256 = vpack.c.bf16 %v225, %v224
      %v257 = vpack.c.bf16 %v227, %v226
      %v258 = vpack.c.bf16 %v229, %v228
      %v259 = vpack.c.bf16 %v231, %v230
      %v260 = vpack.c.bf16 %v233, %v232
      %v261 = vpack.c.bf16 %v235, %v234
      %v262 = vpack.c.bf16 %v237, %v236
      %v263 = vpack.c.bf16 %v239, %v238
      %v264 = vpack.c.bf16 %v241, %v240
      %v265 = vpack.c.bf16 %v243, %v242
      %v266 = vpack.c.bf16 %v245, %v244
      %v267 = vpack.c.bf16 %v247, %v246
      %v268 = vpack.c.bf16 %v249, %v248
      %v269 = vpack.c.bf16 %v251, %v250
      %v270 = vpack.c.bf16 %v253, %v252
      %v271 = vpack.c.bf16 %v255, %v254
      %v272 = vld [vmem:[%s2] sm:$0xf]
      %v273 = vld [vmem:[%s2 + $0x4] sm:$0xf]
      %v274 = vld [vmem:[%s2 + $0x8] sm:$0xf]
      %v275 = vld [vmem:[%s2 + $0xc] sm:$0xf]
      %v276 = vld [vmem:[%s3] sm:$0x1]
      %v278 = vperm.slane %v276, 0
      %v284 = vunpack.c.l.b16 %v272
      %v285 = vunpack.c.l.b16 %v273
      %v286 = vunpack.c.l.b16 %v274
      %v287 = vunpack.c.l.b16 %v275
      %v288 = vpack.c.b16 %v285, %v284
      %v289 = vpack.c.b16 %v287, %v286
      %vm292 = vcmask 261120
      %v294 = vsel %vm292, %v256, 0
      %v297 = vsel %vm292, %v257, 0
      %v300 = vsel %vm292, %v258, 0
      %v303 = vsel %vm292, %v259, 0
      %v306 = vsel %vm292, %v260, 0
      %v309 = vsel %vm292, %v261, 0
      %v312 = vsel %vm292, %v262, 0
      %v315 = vsel %vm292, %v263, 0
      %v318 = vsel %vm292, %v264, 0
      %v321 = vsel %vm292, %v265, 0
      %v324 = vsel %vm292, %v266, 0
      %v327 = vsel %vm292, %v267, 0
      %v330 = vsel %vm292, %v268, 0
      %v333 = vsel %vm292, %v269, 0
      %v336 = vsel %vm292, %v270, 0
      %v339 = vsel %vm292, %v271, 0
      %341 = vmatpush.bf16.msra.mxu0 0
      %342 = vmatpush.bf16.msra.mxu0 0
      %343 = vmatpush.bf16.msra.mxu0 0
      %344 = vmatpush.bf16.msra.mxu0 0
      %345 = vmatpush.bf16.msra.mxu0 0
      %346 = vmatpush.bf16.msra.mxu0 0
      %347 = vmatpush.bf16.msra.mxu0 %v289
      %348 = vmatpush.bf16.msra.mxu0 %v288
      %349 = vmatmul.bf16.gmra.mxu0 %v294
      %v350 = vpop.f32.mrf.mxu0
      %v351 = vadd.f32 %v278, %v350
      %v352 = vpop.f32.mrf.mxu0
      %v353 = vadd.f32 %v278, %v352
      %354 = vmatmul.bf16.gmra.mxu0 %v297
      %v355 = vpop.f32.mrf.mxu0
      %v356 = vadd.f32 %v278, %v355
      %v357 = vpop.f32.mrf.mxu0
      %v358 = vadd.f32 %v278, %v357
      %359 = vmatmul.bf16.gmra.mxu0 %v300
      %v360 = vpop.f32.mrf.mxu0
      %v361 = vadd.f32 %v278, %v360
      %v362 = vpop.f32.mrf.mxu0
      %v363 = vadd.f32 %v278, %v362
      %364 = vmatmul.bf16.gmra.mxu0 %v303
      %v365 = vpop.f32.mrf.mxu0
      %v366 = vadd.f32 %v278, %v365
      %v367 = vpop.f32.mrf.mxu0
      %v368 = vadd.f32 %v278, %v367
      %369 = vmatmul.bf16.gmra.mxu0 %v306
      %v370 = vpop.f32.mrf.mxu0
      %v371 = vadd.f32 %v278, %v370
      %v372 = vpop.f32.mrf.mxu0
      %v373 = vadd.f32 %v278, %v372
      %374 = vmatmul.bf16.gmra.mxu0 %v309
      %v375 = vpop.f32.mrf.mxu0
      %v376 = vadd.f32 %v278, %v375
      %v377 = vpop.f32.mrf.mxu0
      %v378 = vadd.f32 %v278, %v377
      %379 = vmatmul.bf16.gmra.mxu0 %v312
      %v380 = vpop.f32.mrf.mxu0
      %v381 = vadd.f32 %v278, %v380
      %v382 = vpop.f32.mrf.mxu0
      %v383 = vadd.f32 %v278, %v382
      %384 = vmatmul.bf16.gmra.mxu0 %v315
      %v385 = vpop.f32.mrf.mxu0
      %v386 = vadd.f32 %v278, %v385
      %v387 = vpop.f32.mrf.mxu0
      %v388 = vadd.f32 %v278, %v387
      %389 = vmatmul.bf16.gmra.mxu0 %v318
      %v390 = vpop.f32.mrf.mxu0
      %v391 = vadd.f32 %v278, %v390
      %v392 = vpop.f32.mrf.mxu0
      %v393 = vadd.f32 %v278, %v392
      %394 = vmatmul.bf16.gmra.mxu0 %v321
      %v395 = vpop.f32.mrf.mxu0
      %v396 = vadd.f32 %v278, %v395
      %v397 = vpop.f32.mrf.mxu0
      %v398 = vadd.f32 %v278, %v397
      %399 = vmatmul.bf16.gmra.mxu0 %v324
      %v400 = vpop.f32.mrf.mxu0
      %v401 = vadd.f32 %v278, %v400
      %v402 = vpop.f32.mrf.mxu0
      %v403 = vadd.f32 %v278, %v402
      %404 = vmatmul.bf16.gmra.mxu0 %v327
      %v405 = vpop.f32.mrf.mxu0
      %v406 = vadd.f32 %v278, %v405
      %v407 = vpop.f32.mrf.mxu0
      %v408 = vadd.f32 %v278, %v407
      %409 = vmatmul.bf16.gmra.mxu0 %v330
      %v410 = vpop.f32.mrf.mxu0
      %v411 = vadd.f32 %v278, %v410
      %v412 = vpop.f32.mrf.mxu0
      %v413 = vadd.f32 %v278, %v412
      %414 = vmatmul.bf16.gmra.mxu0 %v333
      %v415 = vpop.f32.mrf.mxu0
      %v416 = vadd.f32 %v278, %v415
      %v417 = vpop.f32.mrf.mxu0
      %v418 = vadd.f32 %v278, %v417
      %419 = vmatmul.bf16.gmra.mxu0 %v336
      %v420 = vpop.f32.mrf.mxu0
      %v421 = vadd.f32 %v278, %v420
      %v422 = vpop.f32.mrf.mxu0
      %v423 = vadd.f32 %v278, %v422
      %424 = vmatmul.bf16.gmra.mxu0 %v339
      %v425 = vpop.f32.mrf.mxu0
      %v426 = vadd.f32 %v278, %v425
      %v427 = vpop.f32.mrf.mxu0
      %v428 = vadd.f32 %v278, %v427
      %429 = vdwg.mxu0
      %v430 = vld [vmem:[%s209] sm:$0xff]
      %v431 = vld [vmem:[%s209 + $0x8] sm:$0xff]
      %v432 = vld [vmem:[%s209 + $0x10] sm:$0xff]
      %v433 = vld [vmem:[%s209 + $0x18] sm:$0xff]
      %v434 = vld [vmem:[%s209 + $0x20] sm:$0xff]
      %v435 = vld [vmem:[%s209 + $0x28] sm:$0xff]
      %v436 = vld [vmem:[%s209 + $0x30] sm:$0xff]
      %v437 = vld [vmem:[%s209 + $0x38] sm:$0xff]
      %v438 = vld [vmem:[%s209 + $0x40] sm:$0xff]
      %v439 = vld [vmem:[%s209 + $0x48] sm:$0xff]
      %v440 = vld [vmem:[%s209 + $0x50] sm:$0xff]
      %v441 = vld [vmem:[%s209 + $0x58] sm:$0xff]
      %v442 = vld [vmem:[%s209 + $0x60] sm:$0xff]
      %v443 = vld [vmem:[%s209 + $0x68] sm:$0xff]
      %v444 = vld [vmem:[%s209 + $0x70] sm:$0xff]
      %v445 = vld [vmem:[%s209 + $0x78] sm:$0xff]
      %v446 = vld [vmem:[%s209 + $0x80] sm:$0xff]
      %v447 = vld [vmem:[%s209 + $0x88] sm:$0xff]
      %v448 = vld [vmem:[%s209 + $0x90] sm:$0xff]
      %v449 = vld [vmem:[%s209 + $0x98] sm:$0xff]
      %v450 = vld [vmem:[%s209 + $0xa0] sm:$0xff]
      %v451 = vld [vmem:[%s209 + $0xa8] sm:$0xff]
      %v452 = vld [vmem:[%s209 + $0xb0] sm:$0xff]
      %v453 = vld [vmem:[%s209 + $0xb8] sm:$0xff]
      %v454 = vld [vmem:[%s209 + $0xc0] sm:$0xff]
      %v455 = vld [vmem:[%s209 + $0xc8] sm:$0xff]
      %v456 = vld [vmem:[%s209 + $0xd0] sm:$0xff]
      %v457 = vld [vmem:[%s209 + $0xd8] sm:$0xff]
      %v458 = vld [vmem:[%s209 + $0xe0] sm:$0xff]
      %v459 = vld [vmem:[%s209 + $0xe8] sm:$0xff]
      %v460 = vld [vmem:[%s209 + $0xf0] sm:$0xff]
      %v461 = vld [vmem:[%s209 + $0xf8] sm:$0xff]
      %v462 = vadd.f32 %v351, %v430
      %v463 = vadd.f32 %v353, %v431
      %v464 = vadd.f32 %v356, %v432
      %v465 = vadd.f32 %v358, %v433
      %v466 = vadd.f32 %v361, %v434
      %v467 = vadd.f32 %v363, %v435
      %v468 = vadd.f32 %v366, %v436
      %v469 = vadd.f32 %v368, %v437
      %v470 = vadd.f32 %v371, %v438
      %v471 = vadd.f32 %v373, %v439
      %v472 = vadd.f32 %v376, %v440
      %v473 = vadd.f32 %v378, %v441
      %v474 = vadd.f32 %v381, %v442
      %v475 = vadd.f32 %v383, %v443
      %v476 = vadd.f32 %v386, %v444
      %v477 = vadd.f32 %v388, %v445
      %v478 = vadd.f32 %v391, %v446
      %v479 = vadd.f32 %v393, %v447
      %v480 = vadd.f32 %v396, %v448
      %v481 = vadd.f32 %v398, %v449
      %v482 = vadd.f32 %v401, %v450
      %v483 = vadd.f32 %v403, %v451
      %v484 = vadd.f32 %v406, %v452
      %v485 = vadd.f32 %v408, %v453
      %v486 = vadd.f32 %v411, %v454
      %v487 = vadd.f32 %v413, %v455
      %v488 = vadd.f32 %v416, %v456
      %v489 = vadd.f32 %v418, %v457
      %v490 = vadd.f32 %v421, %v458
      %v491 = vadd.f32 %v423, %v459
      %v492 = vadd.f32 %v426, %v460
      %v493 = vadd.f32 %v428, %v461
      %v494 = vmul.f32 %v462, 0.5
      %v495 = vmul.f32 %v463, 0.5
      %v496 = vmul.f32 %v464, 0.5
      %v497 = vmul.f32 %v465, 0.5
      %v498 = vmul.f32 %v466, 0.5
      %v499 = vmul.f32 %v467, 0.5
      %v500 = vmul.f32 %v468, 0.5
      %v501 = vmul.f32 %v469, 0.5
      %v502 = vmul.f32 %v470, 0.5
      %v503 = vmul.f32 %v471, 0.5
      %v504 = vmul.f32 %v472, 0.5
      %v505 = vmul.f32 %v473, 0.5
      %v506 = vmul.f32 %v474, 0.5
      %v507 = vmul.f32 %v475, 0.5
      %v508 = vmul.f32 %v476, 0.5
      %v509 = vmul.f32 %v477, 0.5
      %v510 = vmul.f32 %v478, 0.5
      %v511 = vmul.f32 %v479, 0.5
      %v512 = vmul.f32 %v480, 0.5
      %v513 = vmul.f32 %v481, 0.5
      %v514 = vmul.f32 %v482, 0.5
      %v515 = vmul.f32 %v483, 0.5
      %v516 = vmul.f32 %v484, 0.5
      %v517 = vmul.f32 %v485, 0.5
      %v518 = vmul.f32 %v486, 0.5
      %v519 = vmul.f32 %v487, 0.5
      %v520 = vmul.f32 %v488, 0.5
      %v521 = vmul.f32 %v489, 0.5
      %v522 = vmul.f32 %v490, 0.5
      %v523 = vmul.f32 %v491, 0.5
      %v524 = vmul.f32 %v492, 0.5
      %v525 = vmul.f32 %v493, 0.5
      %v526 = vmul.f32 %v462, 0.044715
      %v527 = vmul.f32 %v463, 0.044715
      %v528 = vmul.f32 %v464, 0.044715
      %v529 = vmul.f32 %v465, 0.044715
      %v530 = vmul.f32 %v466, 0.044715
      %v531 = vmul.f32 %v467, 0.044715
      %v532 = vmul.f32 %v468, 0.044715
      %v533 = vmul.f32 %v469, 0.044715
      %v534 = vmul.f32 %v470, 0.044715
      %v535 = vmul.f32 %v471, 0.044715
      %v536 = vmul.f32 %v472, 0.044715
      %v537 = vmul.f32 %v473, 0.044715
      %v538 = vmul.f32 %v474, 0.044715
      %v539 = vmul.f32 %v475, 0.044715
      %v540 = vmul.f32 %v476, 0.044715
      %v541 = vmul.f32 %v477, 0.044715
      %v542 = vmul.f32 %v478, 0.044715
      %v543 = vmul.f32 %v479, 0.044715
      %v544 = vmul.f32 %v480, 0.044715
      %v545 = vmul.f32 %v481, 0.044715
      %v546 = vmul.f32 %v482, 0.044715
      %v547 = vmul.f32 %v483, 0.044715
      %v548 = vmul.f32 %v484, 0.044715
      %v549 = vmul.f32 %v485, 0.044715
      %v550 = vmul.f32 %v486, 0.044715
      %v551 = vmul.f32 %v487, 0.044715
      %v552 = vmul.f32 %v488, 0.044715
      %v553 = vmul.f32 %v489, 0.044715
      %v554 = vmul.f32 %v490, 0.044715
      %v555 = vmul.f32 %v491, 0.044715
      %v556 = vmul.f32 %v492, 0.044715
      %v557 = vmul.f32 %v493, 0.044715
      %v558 = vmul.f32 %v526, %v462
      %v559 = vmul.f32 %v527, %v463
      %v560 = vmul.f32 %v528, %v464
      %v561 = vmul.f32 %v529, %v465
      %v562 = vmul.f32 %v530, %v466
      %v563 = vmul.f32 %v531, %v467
      %v564 = vmul.f32 %v532, %v468
      %v565 = vmul.f32 %v533, %v469
      %v566 = vmul.f32 %v534, %v470
      %v567 = vmul.f32 %v535, %v471
      %v568 = vmul.f32 %v536, %v472
      %v569 = vmul.f32 %v537, %v473
      %v570 = vmul.f32 %v538, %v474
      %v571 = vmul.f32 %v539, %v475
      %v572 = vmul.f32 %v540, %v476
      %v573 = vmul.f32 %v541, %v477
      %v574 = vmul.f32 %v542, %v478
      %v575 = vmul.f32 %v543, %v479
      %v576 = vmul.f32 %v544, %v480
      %v577 = vmul.f32 %v545, %v481
      %v578 = vmul.f32 %v546, %v482
      %v579 = vmul.f32 %v547, %v483
      %v580 = vmul.f32 %v548, %v484
      %v581 = vmul.f32 %v549, %v485
      %v582 = vmul.f32 %v550, %v486
      %v583 = vmul.f32 %v551, %v487
      %v584 = vmul.f32 %v552, %v488
      %v585 = vmul.f32 %v553, %v489
      %v586 = vmul.f32 %v554, %v490
      %v587 = vmul.f32 %v555, %v491
      %v588 = vmul.f32 %v556, %v492
      %v589 = vmul.f32 %v557, %v493
      %v590 = vmul.f32 %v558, %v462
      %v591 = vmul.f32 %v559, %v463
      %v592 = vmul.f32 %v560, %v464
      %v593 = vmul.f32 %v561, %v465
      %v594 = vmul.f32 %v562, %v466
      %v595 = vmul.f32 %v563, %v467
      %v596 = vmul.f32 %v564, %v468
      %v597 = vmul.f32 %v565, %v469
      %v598 = vmul.f32 %v566, %v470
      %v599 = vmul.f32 %v567, %v471
      %v600 = vmul.f32 %v568, %v472
      %v601 = vmul.f32 %v569, %v473
      %v602 = vmul.f32 %v570, %v474
      %v603 = vmul.f32 %v571, %v475
      %v604 = vmul.f32 %v572, %v476
      %v605 = vmul.f32 %v573, %v477
      %v606 = vmul.f32 %v574, %v478
      %v607 = vmul.f32 %v575, %v479
      %v608 = vmul.f32 %v576, %v480
      %v609 = vmul.f32 %v577, %v481
      %v610 = vmul.f32 %v578, %v482
      %v611 = vmul.f32 %v579, %v483
      %v612 = vmul.f32 %v580, %v484
      %v613 = vmul.f32 %v581, %v485
      %v614 = vmul.f32 %v582, %v486
      %v615 = vmul.f32 %v583, %v487
      %v616 = vmul.f32 %v584, %v488
      %v617 = vmul.f32 %v585, %v489
      %v618 = vmul.f32 %v586, %v490
      %v619 = vmul.f32 %v587, %v491
      %v620 = vmul.f32 %v588, %v492
      %v621 = vmul.f32 %v589, %v493
      %v622 = vadd.f32 %v462, %v590
      %v623 = vadd.f32 %v463, %v591
      %v624 = vadd.f32 %v464, %v592
      %v625 = vadd.f32 %v465, %v593
      %v626 = vadd.f32 %v466, %v594
      %v627 = vadd.f32 %v467, %v595
      %v628 = vadd.f32 %v468, %v596
      %v629 = vadd.f32 %v469, %v597
      %v630 = vadd.f32 %v470, %v598
      %v631 = vadd.f32 %v471, %v599
      %v632 = vadd.f32 %v472, %v600
      %v633 = vadd.f32 %v473, %v601
      %v634 = vadd.f32 %v474, %v602
      %v635 = vadd.f32 %v475, %v603
      %v636 = vadd.f32 %v476, %v604
      %v637 = vadd.f32 %v477, %v605
      %v638 = vadd.f32 %v478, %v606
      %v639 = vadd.f32 %v479, %v607
      %v640 = vadd.f32 %v480, %v608
      %v641 = vadd.f32 %v481, %v609
      %v642 = vadd.f32 %v482, %v610
      %v643 = vadd.f32 %v483, %v611
      %v644 = vadd.f32 %v484, %v612
      %v645 = vadd.f32 %v485, %v613
      %v646 = vadd.f32 %v486, %v614
      %v647 = vadd.f32 %v487, %v615
      %v648 = vadd.f32 %v488, %v616
      %v649 = vadd.f32 %v489, %v617
      %v650 = vadd.f32 %v490, %v618
      %v651 = vadd.f32 %v491, %v619
      %v652 = vadd.f32 %v492, %v620
      %v653 = vadd.f32 %v493, %v621
      %v654 = vmul.f32 %v622, 0.7978846
      %v655 = vmul.f32 %v623, 0.7978846
      %v656 = vmul.f32 %v624, 0.7978846
      %v657 = vmul.f32 %v625, 0.7978846
      %v658 = vmul.f32 %v626, 0.7978846
      %v659 = vmul.f32 %v627, 0.7978846
      %v660 = vmul.f32 %v628, 0.7978846
      %v661 = vmul.f32 %v629, 0.7978846
      %v662 = vmul.f32 %v630, 0.7978846
      %v663 = vmul.f32 %v631, 0.7978846
      %v664 = vmul.f32 %v632, 0.7978846
      %v665 = vmul.f32 %v633, 0.7978846
      %v666 = vmul.f32 %v634, 0.7978846
      %v667 = vmul.f32 %v635, 0.7978846
      %v668 = vmul.f32 %v636, 0.7978846
      %v669 = vmul.f32 %v637, 0.7978846
      %v670 = vmul.f32 %v638, 0.7978846
      %v671 = vmul.f32 %v639, 0.7978846
      %v672 = vmul.f32 %v640, 0.7978846
      %v673 = vmul.f32 %v641, 0.7978846
      %v674 = vmul.f32 %v642, 0.7978846
      %v675 = vmul.f32 %v643, 0.7978846
      %v676 = vmul.f32 %v644, 0.7978846
      %v677 = vmul.f32 %v645, 0.7978846
      %v678 = vmul.f32 %v646, 0.7978846
      %v679 = vmul.f32 %v647, 0.7978846
      %v680 = vmul.f32 %v648, 0.7978846
      %v681 = vmul.f32 %v649, 0.7978846
      %v682 = vmul.f32 %v650, 0.7978846
      %v683 = vmul.f32 %v651, 0.7978846
      %v684 = vmul.f32 %v652, 0.7978846
      %v685 = vmul.f32 %v653, 0.7978846
      %v686 = vtanh.pop %v654
      %v687 = vtanh.pop %v655
      %v688 = vtanh.pop %v656
      %v689 = vtanh.pop %v657
      %v690 = vtanh.pop %v658
      %v691 = vtanh.pop %v659
      %v692 = vtanh.pop %v660
      %v693 = vtanh.pop %v661
      %v694 = vtanh.pop %v662
      %v695 = vtanh.pop %v663
      %v696 = vtanh.pop %v664
      %v697 = vtanh.pop %v665
      %v698 = vtanh.pop %v666
      %v699 = vtanh.pop %v667
      %v700 = vtanh.pop %v668
      %v701 = vtanh.pop %v669
      %v702 = vtanh.pop %v670
      %v703 = vtanh.pop %v671
      %v704 = vtanh.pop %v672
      %v705 = vtanh.pop %v673
      %v706 = vtanh.pop %v674
      %v707 = vtanh.pop %v675
      %v708 = vtanh.pop %v676
      %v709 = vtanh.pop %v677
      %v710 = vtanh.pop %v678
      %v711 = vtanh.pop %v679
      %v712 = vtanh.pop %v680
      %v713 = vtanh.pop %v681
      %v714 = vtanh.pop %v682
      %v715 = vtanh.pop %v683
      %v716 = vtanh.pop %v684
      %v717 = vtanh.pop %v685
      %v718 = vadd.f32 %v686, 1.0
      %v719 = vadd.f32 %v687, 1.0
      %v720 = vadd.f32 %v688, 1.0
      %v721 = vadd.f32 %v689, 1.0
      %v722 = vadd.f32 %v690, 1.0
      %v723 = vadd.f32 %v691, 1.0
      %v724 = vadd.f32 %v692, 1.0
      %v725 = vadd.f32 %v693, 1.0
      %v726 = vadd.f32 %v694, 1.0
      %v727 = vadd.f32 %v695, 1.0
      %v728 = vadd.f32 %v696, 1.0
      %v729 = vadd.f32 %v697, 1.0
      %v730 = vadd.f32 %v698, 1.0
      %v731 = vadd.f32 %v699, 1.0
      %v732 = vadd.f32 %v700, 1.0
      %v733 = vadd.f32 %v701, 1.0
      %v734 = vadd.f32 %v702, 1.0
      %v735 = vadd.f32 %v703, 1.0
      %v736 = vadd.f32 %v704, 1.0
      %v737 = vadd.f32 %v705, 1.0
      %v738 = vadd.f32 %v706, 1.0
      %v739 = vadd.f32 %v707, 1.0
      %v740 = vadd.f32 %v708, 1.0
      %v741 = vadd.f32 %v709, 1.0
      %v742 = vadd.f32 %v710, 1.0
      %v743 = vadd.f32 %v711, 1.0
      %v744 = vadd.f32 %v712, 1.0
      %v745 = vadd.f32 %v713, 1.0
      %v746 = vadd.f32 %v714, 1.0
      %v747 = vadd.f32 %v715, 1.0
      %v748 = vadd.f32 %v716, 1.0
      %v749 = vadd.f32 %v717, 1.0
      %v750 = vmul.f32 %v494, %v718
      %v751 = vmul.f32 %v495, %v719
      %v752 = vmul.f32 %v496, %v720
      %v753 = vmul.f32 %v497, %v721
      %v754 = vmul.f32 %v498, %v722
      %v755 = vmul.f32 %v499, %v723
      %v756 = vmul.f32 %v500, %v724
      %v757 = vmul.f32 %v501, %v725
      %v758 = vmul.f32 %v502, %v726
      %v759 = vmul.f32 %v503, %v727
      %v760 = vmul.f32 %v504, %v728
      %v761 = vmul.f32 %v505, %v729
      %v762 = vmul.f32 %v506, %v730
      %v763 = vmul.f32 %v507, %v731
      %v764 = vmul.f32 %v508, %v732
      %v765 = vmul.f32 %v509, %v733
      %v766 = vmul.f32 %v510, %v734
      %v767 = vmul.f32 %v511, %v735
      %v768 = vmul.f32 %v512, %v736
      %v769 = vmul.f32 %v513, %v737
      %v770 = vmul.f32 %v514, %v738
      %v771 = vmul.f32 %v515, %v739
      %v772 = vmul.f32 %v516, %v740
      %v773 = vmul.f32 %v517, %v741
      %v774 = vmul.f32 %v518, %v742
      %v775 = vmul.f32 %v519, %v743
      %v776 = vmul.f32 %v520, %v744
      %v777 = vmul.f32 %v521, %v745
      %v778 = vmul.f32 %v522, %v746
      %v779 = vmul.f32 %v523, %v747
      %v780 = vmul.f32 %v524, %v748
      %v781 = vmul.f32 %v525, %v749
      %782 = vst.msk [vmem:[%s221] sm:$0xff] %vm292, %v750
      %783 = vst.msk [vmem:[%s221 + $0x8] sm:$0xff] %vm292, %v751
      %784 = vst.msk [vmem:[%s221 + $0x10] sm:$0xff] %vm292, %v752
      %785 = vst.msk [vmem:[%s221 + $0x18] sm:$0xff] %vm292, %v753
      %786 = vst.msk [vmem:[%s221 + $0x20] sm:$0xff] %vm292, %v754
      %787 = vst.msk [vmem:[%s221 + $0x28] sm:$0xff] %vm292, %v755
      %788 = vst.msk [vmem:[%s221 + $0x30] sm:$0xff] %vm292, %v756
      %789 = vst.msk [vmem:[%s221 + $0x38] sm:$0xff] %vm292, %v757
      %790 = vst.msk [vmem:[%s221 + $0x40] sm:$0xff] %vm292, %v758
      %791 = vst.msk [vmem:[%s221 + $0x48] sm:$0xff] %vm292, %v759
      %792 = vst.msk [vmem:[%s221 + $0x50] sm:$0xff] %vm292, %v760
      %793 = vst.msk [vmem:[%s221 + $0x58] sm:$0xff] %vm292, %v761
      %794 = vst.msk [vmem:[%s221 + $0x60] sm:$0xff] %vm292, %v762
      %795 = vst.msk [vmem:[%s221 + $0x68] sm:$0xff] %vm292, %v763
      %796 = vst.msk [vmem:[%s221 + $0x70] sm:$0xff] %vm292, %v764
      %797 = vst.msk [vmem:[%s221 + $0x78] sm:$0xff] %vm292, %v765
      %798 = vst.msk [vmem:[%s221 + $0x80] sm:$0xff] %vm292, %v766
      %799 = vst.msk [vmem:[%s221 + $0x88] sm:$0xff] %vm292, %v767
      %800 = vst.msk [vmem:[%s221 + $0x90] sm:$0xff] %vm292, %v768
      %801 = vst.msk [vmem:[%s221 + $0x98] sm:$0xff] %vm292, %v769
      %802 = vst.msk [vmem:[%s221 + $0xa0] sm:$0xff] %vm292, %v770
      %803 = vst.msk [vmem:[%s221 + $0xa8] sm:$0xff] %vm292, %v771
      %804 = vst.msk [vmem:[%s221 + $0xb0] sm:$0xff] %vm292, %v772
      %805 = vst.msk [vmem:[%s221 + $0xb8] sm:$0xff] %vm292, %v773
      %806 = vst.msk [vmem:[%s221 + $0xc0] sm:$0xff] %vm292, %v774
      %807 = vst.msk [vmem:[%s221 + $0xc8] sm:$0xff] %vm292, %v775
      %808 = vst.msk [vmem:[%s221 + $0xd0] sm:$0xff] %vm292, %v776
      %809 = vst.msk [vmem:[%s221 + $0xd8] sm:$0xff] %vm292, %v777
      %810 = vst.msk [vmem:[%s221 + $0xe0] sm:$0xff] %vm292, %v778
      %811 = vst.msk [vmem:[%s221 + $0xe8] sm:$0xff] %vm292, %v779
      %812 = vst.msk [vmem:[%s221 + $0xf0] sm:$0xff] %vm292, %v780
      %813 = vst.msk [vmem:[%s221 + $0xf8] sm:$0xff] %vm292, %v781
      %s814 = smul.u32 32, %s15
      %p815 = scmp.lt.s32.totalorder %s814, 63
      %s816 = scalar_select %p815, %s814, 63
      %s817 = smul.addr %s816, 8
      %s818 = scalar_lea.vmem %s4, %s817
      // Predicated region
      $region37: #{fno_forward.8} parent=35 // pred_check
        %p819 = pneg %p127
      $region38: #{fno_forward.8} parent=35 // pred_check_branch
        %821 = sbr.rel (%p819) target = $region40
      $region39: #{fno_forward.8} parent=35 // pred_region
        %s822 = smul.u32 32, %s15
      $region40: #{fno_forward.8} parent=35 // pred_fallthru
        _
    $region36: #{fno_forward.8} parent=5 // pred_fallthru
      _
    %p823 = scmp.le.s32.totalorder 2, %s10
    // Predicated region
    $region41: #{fno_forward.8} parent=5 // pred_check
      %p824 = pneg %p823
    $region42: #{fno_forward.8} parent=5 // pred_check_branch
      %826 = sbr.rel (%p824) target = $region44
    $region43: #{fno_forward.8} parent=5 // pred_region
      %s827 = ssub.s32 %s10, 2
      // Predicated region
      $region45: #{fno_forward.8} parent=43 // pred_check
        %p828 = pneg %p133
      $region46: #{fno_forward.8} parent=43 // pred_check_branch
        %830 = sbr.rel (%p828) target = $region48
      $region47: #{fno_forward.8} parent=43 // pred_region
        %s831 = smul.u32 32, %s16
        %p832 = scmp.lt.s32.totalorder %s831, 63
        %s833 = scalar_select %p832, %s831, 63
        %s834 = smul.addr %s833, 8
        %s835 = scalar_lea.vmem %s4, %s834
      $region48: #{fno_forward.8} parent=43 // pred_fallthru
        _
    $region44: #{fno_forward.8} parent=5 // pred_fallthru
      _
  $region6: #{fno_forward.8} parent=0 // loop_footer
    %s14 = sadd.s32 1, %s10
  $region7: #{fno_forward.8} parent=0 // loop_footer_branch
    %9 = sbr.rel target = $region3
  $region8: #{fno_forward.8} parent=0 // loop_exit
    _

// kernel: fno_forward.11
$region0: #{fno_forward.11}
  #allocation0 [shape = 'u32[]', space=smem, size = 0x4, offset = 0x4, fixed_abs, tag = 'smem constant byte address 0x4 - core index']
  #allocation1 [shape = 'u32[72,128]{1,0:T(1,128)}', space=vmem, size = 0x9000, scoped, tag = 'internal scratch']
  %s0 = inlined_call_operand.vmem [shape: f32[512,32], index: 0, kind: input, shape index: {}]
  %s1 = inlined_call_operand.vmem [shape: bf16[32,32], index: 1, kind: input, shape index: {}]
  %s2 = inlined_call_operand.vmem [shape: f32[1,32], index: 2, kind: input, shape index: {}]
  %s3 = inlined_call_operand.vmem [shape: bf16[32,2], index: 3, kind: input, shape index: {}]
  %s4 = inlined_call_operand.vmem [shape: f32[1,2], index: 4, kind: input, shape index: {}]
  %s5 = inlined_call_operand.vmem [shape: f32[512,2], index: 5, kind: output, shape index: {}]
  %s6 = sld [smem:[#allocation0]]
  $region53: #{fno_forward.11} parent=0
    _
  %s8 = ssub.s32 1, %s6
  %s9 = scalar_select 0, %s8, %s6
  loop: start=0, step=1, limit=4
  $region2: #{fno_forward.11} parent=0 // loop_pre_header
    _
  $region3: #{fno_forward.11} parent=0 // loop_header
    %s11 = sphi 0, %s15
    %p12 = scmp.ge.s32.totalorder %s11, 4
    %s21 = sphi 0, %s23
    %s24 = sphi 0, %s21
    %s25 = sphi 0, %s24
    %s41 = sphi 0, %s25
    %s45 = sphi 0, %s45
    %s47 = sphi 0, %s45
    %s48 = sphi 0, %s47
    %s62 = sphi 0, %s48
    %s66 = sphi 0, %s66
    %s68 = sphi 0, %s66
    %s69 = sphi 0, %s68
    %s83 = sphi 0, %s69
    %s87 = sphi 0, %s87
    %s89 = sphi 0, %s87
    %s90 = sphi 0, %s89
    %s104 = sphi 0, %s90
    %s108 = sphi 0, %s108
    %s110 = sphi 0, %s108
    %s111 = sphi 0, %s110
    %s125 = sphi 0, %s111
    %s131 = sphi 0, %s133
    %s134 = sphi 0, %s131
    %s135 = sphi 0, %s134
    %s151 = sphi 0, %s135
  $region4: #{fno_forward.11} parent=0 // loop_header_branch
    %14 = sbr.rel (%p12) target = $region8
  $region5: #{fno_forward.11} parent=0 // loop_body
    %s16 = ssub.s32 %s11, 1
    %s17 = ssub.s32 %s11, 2
    %s18 = sadd.s32 %s11, 1
    %s19 = ssub.s32 %s11, %s18
    %p20 = scmp.eq.s32.totalorder %s19, 0
    %s22 = sadd.s32 %s21, 1
    %s23 = scalar_select %p20, %s21, %s22
    %p26 = pneg %p20
    %p27 = scmp.eq.s32.totalorder %s11, 1
    %p28 = por %p26, %p27
    %p29 = scmp.ne.s32.totalorder %s21, %s24
    %p30 = scmp.eq.s32.totalorder %s11, 0
    %p31 = por %p29, %p30
    %p32 = scmp.ne.s32.totalorder %s21, %s24
    %p33 = scmp.eq.s32.totalorder %s16, 1
    %p34 = por %p32, %p33
    %p35 = scmp.ne.s32.totalorder %s24, %s25
    %p36 = scmp.eq.s32.totalorder %s16, 0
    %p37 = por %p35, %p36
    %p38 = scmp.ne.s32.totalorder %s24, %s25
    %p39 = scmp.eq.s32.totalorder %s17, 1
    %p40 = por %p38, %p39
    %p42 = scmp.ne.s32.totalorder %s25, %s41
    %p43 = scmp.eq.s32.totalorder %s17, 0
    %p44 = por %p42, %p43
    %s46 = sadd.s32 %s45, 1
    %p49 = scmp.eq.s32.totalorder %s11, 1
    %p50 = scmp.ne.s32.totalorder %s45, %s47
    %p51 = scmp.eq.s32.totalorder %s11, 0
    %p52 = por %p50, %p51
    %p53 = scmp.ne.s32.totalorder %s45, %s47
    %p54 = scmp.eq.s32.totalorder %s16, 1
    %p55 = por %p53, %p54
    %p56 = scmp.ne.s32.totalorder %s47, %s48
    %p57 = scmp.eq.s32.totalorder %s16, 0
    %p58 = por %p56, %p57
    %p59 = scmp.ne.s32.totalorder %s47, %s48
    %p60 = scmp.eq.s32.totalorder %s17, 1
    %p61 = por %p59, %p60
    %p63 = scmp.ne.s32.totalorder %s48, %s62
    %p64 = scmp.eq.s32.totalorder %s17, 0
    %p65 = por %p63, %p64
    %s67 = sadd.s32 %s66, 1
    %p70 = scmp.eq.s32.totalorder %s11, 1
    %p71 = scmp.ne.s32.totalorder %s66, %s68
    %p72 = scmp.eq.s32.totalorder %s11, 0
    %p73 = por %p71, %p72
    %p74 = scmp.ne.s32.totalorder %s66, %s68
    %p75 = scmp.eq.s32.totalorder %s16, 1
    %p76 = por %p74, %p75
    %p77 = scmp.ne.s32.totalorder %s68, %s69
    %p78 = scmp.eq.s32.totalorder %s16, 0
    %p79 = por %p77, %p78
    %p80 = scmp.ne.s32.totalorder %s68, %s69
    %p81 = scmp.eq.s32.totalorder %s17, 1
    %p82 = por %p80, %p81
    %p84 = scmp.ne.s32.totalorder %s69, %s83
    %p85 = scmp.eq.s32.totalorder %s17, 0
    %p86 = por %p84, %p85
    %s88 = sadd.s32 %s87, 1
    %p91 = scmp.eq.s32.totalorder %s11, 1
    %p92 = scmp.ne.s32.totalorder %s87, %s89
    %p93 = scmp.eq.s32.totalorder %s11, 0
    %p94 = por %p92, %p93
    %p95 = scmp.ne.s32.totalorder %s87, %s89
    %p96 = scmp.eq.s32.totalorder %s16, 1
    %p97 = por %p95, %p96
    %p98 = scmp.ne.s32.totalorder %s89, %s90
    %p99 = scmp.eq.s32.totalorder %s16, 0
    %p100 = por %p98, %p99
    %p101 = scmp.ne.s32.totalorder %s89, %s90
    %p102 = scmp.eq.s32.totalorder %s17, 1
    %p103 = por %p101, %p102
    %p105 = scmp.ne.s32.totalorder %s90, %s104
    %p106 = scmp.eq.s32.totalorder %s17, 0
    %p107 = por %p105, %p106
    %s109 = sadd.s32 %s108, 1
    %p112 = scmp.eq.s32.totalorder %s11, 1
    %p113 = scmp.ne.s32.totalorder %s108, %s110
    %p114 = scmp.eq.s32.totalorder %s11, 0
    %p115 = por %p113, %p114
    %p116 = scmp.ne.s32.totalorder %s108, %s110
    %p117 = scmp.eq.s32.totalorder %s16, 1
    %p118 = por %p116, %p117
    %p119 = scmp.ne.s32.totalorder %s110, %s111
    %p120 = scmp.eq.s32.totalorder %s16, 0
    %p121 = por %p119, %p120
    %p122 = scmp.ne.s32.totalorder %s110, %s111
    %p123 = scmp.eq.s32.totalorder %s17, 1
    %p124 = por %p122, %p123
    %p126 = scmp.ne.s32.totalorder %s111, %s125
    %p127 = scmp.eq.s32.totalorder %s17, 0
    %p128 = por %p126, %p127
    %s129 = ssub.s32 %s11, %s18
    %p130 = scmp.eq.s32.totalorder %s129, 0
    %s132 = sadd.s32 %s131, 1
    %s133 = scalar_select %p130, %s131, %s132
    %p136 = pneg %p130
    %p137 = scmp.eq.s32.totalorder %s11, 1
    %p138 = por %p136, %p137
    %p139 = scmp.ne.s32.totalorder %s131, %s134
    %p140 = scmp.eq.s32.totalorder %s11, 0
    %p141 = por %p139, %p140
    %p142 = scmp.ne.s32.totalorder %s131, %s134
    %p143 = scmp.eq.s32.totalorder %s16, 1
    %p144 = por %p142, %p143
    %p145 = scmp.ne.s32.totalorder %s134, %s135
    %p146 = scmp.eq.s32.totalorder %s16, 0
    %p147 = por %p145, %p146
    %p148 = scmp.ne.s32.totalorder %s134, %s135
    %p149 = scmp.eq.s32.totalorder %s17, 1
    %p150 = por %p148, %p149
    %p152 = scmp.ne.s32.totalorder %s135, %s151
    %p153 = scmp.eq.s32.totalorder %s17, 0
    %p154 = por %p152, %p153
    %p155 = scmp.le.s32.totalorder 1, %s11
    %p156 = scmp.lt.s32.totalorder %s11, 3
    %p157 = pnand %p155, %p156
    %p158 = pneg %p157
    // Predicated region
    $region9: #{fno_forward.11} parent=5 // pred_check
      _
    $region10: #{fno_forward.11} parent=5 // pred_check_branch
      %160 = sbr.rel (%p157) target = $region12
    $region11: #{fno_forward.11} parent=5 // pred_region
      %s161 = ssub.s32 %s11, 1
      // Predicated region
      $region13: #{fno_forward.11} parent=11 // pred_check
        %p162 = pneg %p58
      $region14: #{fno_forward.11} parent=11 // pred_check_branch
        %164 = sbr.rel (%p162) target = $region16
      $region15: #{fno_forward.11} parent=11 // pred_region
        _
      $region16: #{fno_forward.11} parent=11 // pred_fallthru
        _
      // Predicated region
      $region17: #{fno_forward.11} parent=11 // pred_check
        %p165 = pneg %p79
      $region18: #{fno_forward.11} parent=11 // pred_check_branch
        %167 = sbr.rel (%p165) target = $region20
      $region19: #{fno_forward.11} parent=11 // pred_region
        _
      $region20: #{fno_forward.11} parent=11 // pred_fallthru
        _
      // Predicated region
      $region21: #{fno_forward.11} parent=11 // pred_check
        %p168 = pneg %p100
      $region22: #{fno_forward.11} parent=11 // pred_check_branch
        %170 = sbr.rel (%p168) target = $region24
      $region23: #{fno_forward.11} parent=11 // pred_region
        _
      $region24: #{fno_forward.11} parent=11 // pred_fallthru
        _
      // Predicated region
      $region25: #{fno_forward.11} parent=11 // pred_check
        %p171 = pneg %p121
      $region26: #{fno_forward.11} parent=11 // pred_check_branch
        %173 = sbr.rel (%p171) target = $region28
      $region27: #{fno_forward.11} parent=11 // pred_region
        _
      $region28: #{fno_forward.11} parent=11 // pred_fallthru
        _
    $region12: #{fno_forward.11} parent=5 // pred_fallthru
      _
    %p174 = scmp.lt.s32.totalorder %s11, 2
    // Predicated region
    $region29: #{fno_forward.11} parent=5 // pred_check
      %p175 = pneg %p174
    $region30: #{fno_forward.11} parent=5 // pred_check_branch
      %177 = sbr.rel (%p175) target = $region32
    $region31: #{fno_forward.11} parent=5 // pred_region
      // Predicated region
      $region33: #{fno_forward.11} parent=31 // pred_check
        %p178 = pneg %p31
      $region34: #{fno_forward.11} parent=31 // pred_check_branch
        %180 = sbr.rel (%p178) target = $region36
      $region35: #{fno_forward.11} parent=31 // pred_region
        %s181 = smul.u32 32, %s11
        %p182 = scmp.lt.s32.totalorder %s181, 63
        %s183 = scalar_select %p182, %s181, 63
        %s184 = smul.addr %s183, 8
        %s185 = scalar_lea.vmem %s0, %s184
        %s186 = smul.u32 32, %s11
      $region36: #{fno_forward.11} parent=31 // pred_fallthru
        _
    $region32: #{fno_forward.11} parent=5 // pred_fallthru
      _
    %p187 = scmp.le.s32.totalorder 1, %s11
    %p188 = scmp.lt.s32.totalorder %s11, 3
    %p189 = pnand %p187, %p188
    %p190 = pneg %p189
    // Predicated region
    $region37: #{fno_forward.11} parent=5 // pred_check
      _
    $region38: #{fno_forward.11} parent=5 // pred_check_branch
      %192 = sbr.rel (%p189) target = $region40
    $region39: #{fno_forward.11} parent=5 // pred_region
      %s193 = ssub.s32 %s11, 1
      %s194 = smul.u32 32, %s16
      %p195 = scmp.lt.s32.totalorder %s194, 63
      %s196 = scalar_select %p195, %s194, 63
      %s197 = smul.addr %s196, 8
      %s198 = scalar_lea.vmem %s0, %s197
      %p199 = pneg %p37
      %p200 = pneg %p34
      %p201 = pneg %p58
      %p202 = pneg %p55
      %p203 = pneg %p79
      %p204 = pneg %p76
      %p205 = pneg %p100
      %p206 = pneg %p97
      %p207 = pneg %p121
      %p208 = pneg %p118
      %p209 = pneg %p147
      %p210 = pneg %p144
      %s211 = smul.u32 32, %s16
      %p212 = scmp.lt.s32.totalorder %s211, 63
      %s213 = scalar_select %p212, %s211, 63
      %s214 = smul.addr %s213, 8
      %s215 = scalar_lea.vmem %s5, %s214
      %s216 = smul.u32 32, %s16
      %p217 = scmp.lt.s32.totalorder %s216, 63
      %s218 = scalar_select %p217, %s216, 63
      %s219 = smul.addr %s218, 8
      %s220 = scalar_lea.vmem %s0, %s219
      %s221 = smul.u32 32, %s16
      %s222 = smul.u32 32, %s16
      %p223 = scmp.lt.s32.totalorder %s222, 63
      %s224 = scalar_select %p223, %s222, 63
      %s225 = smul.addr %s224, 8
      %s226 = scalar_lea.vmem %s5, %s225
      %s227 = smul.u32 32, %s16
      %v229 = vld [vmem:[%s220] sm:$0xff]
      %v230 = vld [vmem:[%s220 + $0x8] sm:$0xff]
      %v231 = vld [vmem:[%s220 + $0x10] sm:$0xff]
      %v232 = vld [vmem:[%s220 + $0x18] sm:$0xff]
      %v233 = vld [vmem:[%s220 + $0x20] sm:$0xff]
      %v234 = vld [vmem:[%s220 + $0x28] sm:$0xff]
      %v235 = vld [vmem:[%s220 + $0x30] sm:$0xff]
      %v236 = vld [vmem:[%s220 + $0x38] sm:$0xff]
      %v237 = vld [vmem:[%s220 + $0x40] sm:$0xff]
      %v238 = vld [vmem:[%s220 + $0x48] sm:$0xff]
      %v239 = vld [vmem:[%s220 + $0x50] sm:$0xff]
      %v240 = vld [vmem:[%s220 + $0x58] sm:$0xff]
      %v241 = vld [vmem:[%s220 + $0x60] sm:$0xff]
      %v242 = vld [vmem:[%s220 + $0x68] sm:$0xff]
      %v243 = vld [vmem:[%s220 + $0x70] sm:$0xff]
      %v244 = vld [vmem:[%s220 + $0x78] sm:$0xff]
      %v245 = vld [vmem:[%s220 + $0x80] sm:$0xff]
      %v246 = vld [vmem:[%s220 + $0x88] sm:$0xff]
      %v247 = vld [vmem:[%s220 + $0x90] sm:$0xff]
      %v248 = vld [vmem:[%s220 + $0x98] sm:$0xff]
      %v249 = vld [vmem:[%s220 + $0xa0] sm:$0xff]
      %v250 = vld [vmem:[%s220 + $0xa8] sm:$0xff]
      %v251 = vld [vmem:[%s220 + $0xb0] sm:$0xff]
      %v252 = vld [vmem:[%s220 + $0xb8] sm:$0xff]
      %v253 = vld [vmem:[%s220 + $0xc0] sm:$0xff]
      %v254 = vld [vmem:[%s220 + $0xc8] sm:$0xff]
      %v255 = vld [vmem:[%s220 + $0xd0] sm:$0xff]
      %v256 = vld [vmem:[%s220 + $0xd8] sm:$0xff]
      %v257 = vld [vmem:[%s220 + $0xe0] sm:$0xff]
      %v258 = vld [vmem:[%s220 + $0xe8] sm:$0xff]
      %v259 = vld [vmem:[%s220 + $0xf0] sm:$0xff]
      %v260 = vld [vmem:[%s220 + $0xf8] sm:$0xff]
      %v261 = vpack.c.bf16 %v230, %v229
      %v262 = vpack.c.bf16 %v232, %v231
      %v263 = vpack.c.bf16 %v234, %v233
      %v264 = vpack.c.bf16 %v236, %v235
      %v265 = vpack.c.bf16 %v238, %v237
      %v266 = vpack.c.bf16 %v240, %v239
      %v267 = vpack.c.bf16 %v242, %v241
      %v268 = vpack.c.bf16 %v244, %v243
      %v269 = vpack.c.bf16 %v246, %v245
      %v270 = vpack.c.bf16 %v248, %v247
      %v271 = vpack.c.bf16 %v250, %v249
      %v272 = vpack.c.bf16 %v252, %v251
      %v273 = vpack.c.bf16 %v254, %v253
      %v274 = vpack.c.bf16 %v256, %v255
      %v275 = vpack.c.bf16 %v258, %v257
      %v276 = vpack.c.bf16 %v260, %v259
      %v277 = vld [vmem:[%s1] sm:$0xf]
      %v278 = vld [vmem:[%s1 + $0x4] sm:$0xf]
      %v279 = vld [vmem:[%s1 + $0x8] sm:$0xf]
      %v280 = vld [vmem:[%s1 + $0xc] sm:$0xf]
      %v281 = vld [vmem:[%s2] sm:$0x1]
      %v283 = vperm.slane %v281, 0
      %v289 = vunpack.c.l.b16 %v277
      %v290 = vunpack.c.l.b16 %v278
      %v291 = vunpack.c.l.b16 %v279
      %v292 = vunpack.c.l.b16 %v280
      %v293 = vpack.c.b16 %v290, %v289
      %v294 = vpack.c.b16 %v292, %v291
      %vm297 = vcmask 261120
      %v299 = vsel %vm297, %v261, 0
      %v302 = vsel %vm297, %v262, 0
      %v305 = vsel %vm297, %v263, 0
      %v308 = vsel %vm297, %v264, 0
      %v311 = vsel %vm297, %v265, 0
      %v314 = vsel %vm297, %v266, 0
      %v317 = vsel %vm297, %v267, 0
      %v320 = vsel %vm297, %v268, 0
      %v323 = vsel %vm297, %v269, 0
      %v326 = vsel %vm297, %v270, 0
      %v329 = vsel %vm297, %v271, 0
      %v332 = vsel %vm297, %v272, 0
      %v335 = vsel %vm297, %v273, 0
      %v338 = vsel %vm297, %v274, 0
      %v341 = vsel %vm297, %v275, 0
      %v344 = vsel %vm297, %v276, 0
      %346 = vmatpush.bf16.msra.mxu0 0
      %347 = vmatpush.bf16.msra.mxu0 0
      %348 = vmatpush.bf16.msra.mxu0 0
      %349 = vmatpush.bf16.msra.mxu0 0
      %350 = vmatpush.bf16.msra.mxu0 0
      %351 = vmatpush.bf16.msra.mxu0 0
      %352 = vmatpush.bf16.msra.mxu0 %v294
      %353 = vmatpush.bf16.msra.mxu0 %v293
      %354 = vmatmul.bf16.gmra.mxu0 %v299
      %v355 = vpop.f32.mrf.mxu0
      %v356 = vadd.f32 %v283, %v355
      %v357 = vpop.f32.mrf.mxu0
      %v358 = vadd.f32 %v283, %v357
      %359 = vmatmul.bf16.gmra.mxu0 %v302
      %v360 = vpop.f32.mrf.mxu0
      %v361 = vadd.f32 %v283, %v360
      %v362 = vpop.f32.mrf.mxu0
      %v363 = vadd.f32 %v283, %v362
      %364 = vmatmul.bf16.gmra.mxu0 %v305
      %v365 = vpop.f32.mrf.mxu0
      %v366 = vadd.f32 %v283, %v365
      %v367 = vpop.f32.mrf.mxu0
      %v368 = vadd.f32 %v283, %v367
      %369 = vmatmul.bf16.gmra.mxu0 %v308
      %v370 = vpop.f32.mrf.mxu0
      %v371 = vadd.f32 %v283, %v370
      %v372 = vpop.f32.mrf.mxu0
      %v373 = vadd.f32 %v283, %v372
      %374 = vmatmul.bf16.gmra.mxu0 %v311
      %v375 = vpop.f32.mrf.mxu0
      %v376 = vadd.f32 %v283, %v375
      %v377 = vpop.f32.mrf.mxu0
      %v378 = vadd.f32 %v283, %v377
      %379 = vmatmul.bf16.gmra.mxu0 %v314
      %v380 = vpop.f32.mrf.mxu0
      %v381 = vadd.f32 %v283, %v380
      %v382 = vpop.f32.mrf.mxu0
      %v383 = vadd.f32 %v283, %v382
      %384 = vmatmul.bf16.gmra.mxu0 %v317
      %v385 = vpop.f32.mrf.mxu0
      %v386 = vadd.f32 %v283, %v385
      %v387 = vpop.f32.mrf.mxu0
      %v388 = vadd.f32 %v283, %v387
      %389 = vmatmul.bf16.gmra.mxu0 %v320
      %v390 = vpop.f32.mrf.mxu0
      %v391 = vadd.f32 %v283, %v390
      %v392 = vpop.f32.mrf.mxu0
      %v393 = vadd.f32 %v283, %v392
      %394 = vmatmul.bf16.gmra.mxu0 %v323
      %v395 = vpop.f32.mrf.mxu0
      %v396 = vadd.f32 %v283, %v395
      %v397 = vpop.f32.mrf.mxu0
      %v398 = vadd.f32 %v283, %v397
      %399 = vmatmul.bf16.gmra.mxu0 %v326
      %v400 = vpop.f32.mrf.mxu0
      %v401 = vadd.f32 %v283, %v400
      %v402 = vpop.f32.mrf.mxu0
      %v403 = vadd.f32 %v283, %v402
      %404 = vmatmul.bf16.gmra.mxu0 %v329
      %v405 = vpop.f32.mrf.mxu0
      %v406 = vadd.f32 %v283, %v405
      %v407 = vpop.f32.mrf.mxu0
      %v408 = vadd.f32 %v283, %v407
      %409 = vmatmul.bf16.gmra.mxu0 %v332
      %v410 = vpop.f32.mrf.mxu0
      %v411 = vadd.f32 %v283, %v410
      %v412 = vpop.f32.mrf.mxu0
      %v413 = vadd.f32 %v283, %v412
      %414 = vmatmul.bf16.gmra.mxu0 %v335
      %v415 = vpop.f32.mrf.mxu0
      %v416 = vadd.f32 %v283, %v415
      %v417 = vpop.f32.mrf.mxu0
      %v418 = vadd.f32 %v283, %v417
      %419 = vmatmul.bf16.gmra.mxu0 %v338
      %v420 = vpop.f32.mrf.mxu0
      %v421 = vadd.f32 %v283, %v420
      %v422 = vpop.f32.mrf.mxu0
      %v423 = vadd.f32 %v283, %v422
      %424 = vmatmul.bf16.gmra.mxu0 %v341
      %v425 = vpop.f32.mrf.mxu0
      %v426 = vadd.f32 %v283, %v425
      %v427 = vpop.f32.mrf.mxu0
      %v428 = vadd.f32 %v283, %v427
      %429 = vmatmul.bf16.gmra.mxu0 %v344
      %v430 = vpop.f32.mrf.mxu0
      %v431 = vadd.f32 %v283, %v430
      %v432 = vpop.f32.mrf.mxu0
      %v433 = vadd.f32 %v283, %v432
      %434 = vdwg.mxu0
      %v435 = vmul.f32 %v356, 0.5
      %v436 = vmul.f32 %v358, 0.5
      %v437 = vmul.f32 %v361, 0.5
      %v438 = vmul.f32 %v363, 0.5
      %v439 = vmul.f32 %v366, 0.5
      %v440 = vmul.f32 %v368, 0.5
      %v441 = vmul.f32 %v371, 0.5
      %v442 = vmul.f32 %v373, 0.5
      %v443 = vmul.f32 %v376, 0.5
      %v444 = vmul.f32 %v378, 0.5
      %v445 = vmul.f32 %v381, 0.5
      %v446 = vmul.f32 %v383, 0.5
      %v447 = vmul.f32 %v386, 0.5
      %v448 = vmul.f32 %v388, 0.5
      %v449 = vmul.f32 %v391, 0.5
      %v450 = vmul.f32 %v393, 0.5
      %v451 = vmul.f32 %v396, 0.5
      %v452 = vmul.f32 %v398, 0.5
      %v453 = vmul.f32 %v401, 0.5
      %v454 = vmul.f32 %v403, 0.5
      %v455 = vmul.f32 %v406, 0.5
      %v456 = vmul.f32 %v408, 0.5
      %v457 = vmul.f32 %v411, 0.5
      %v458 = vmul.f32 %v413, 0.5
      %v459 = vmul.f32 %v416, 0.5
      %v460 = vmul.f32 %v418, 0.5
      %v461 = vmul.f32 %v421, 0.5
      %v462 = vmul.f32 %v423, 0.5
      %v463 = vmul.f32 %v426, 0.5
      %v464 = vmul.f32 %v428, 0.5
      %v465 = vmul.f32 %v431, 0.5
      %v466 = vmul.f32 %v433, 0.5
      %v467 = vmul.f32 %v356, 0.044715
      %v468 = vmul.f32 %v358, 0.044715
      %v469 = vmul.f32 %v361, 0.044715
      %v470 = vmul.f32 %v363, 0.044715
      %v471 = vmul.f32 %v366, 0.044715
      %v472 = vmul.f32 %v368, 0.044715
      %v473 = vmul.f32 %v371, 0.044715
      %v474 = vmul.f32 %v373, 0.044715
      %v475 = vmul.f32 %v376, 0.044715
      %v476 = vmul.f32 %v378, 0.044715
      %v477 = vmul.f32 %v381, 0.044715
      %v478 = vmul.f32 %v383, 0.044715
      %v479 = vmul.f32 %v386, 0.044715
      %v480 = vmul.f32 %v388, 0.044715
      %v481 = vmul.f32 %v391, 0.044715
      %v482 = vmul.f32 %v393, 0.044715
      %v483 = vmul.f32 %v396, 0.044715
      %v484 = vmul.f32 %v398, 0.044715
      %v485 = vmul.f32 %v401, 0.044715
      %v486 = vmul.f32 %v403, 0.044715
      %v487 = vmul.f32 %v406, 0.044715
      %v488 = vmul.f32 %v408, 0.044715
      %v489 = vmul.f32 %v411, 0.044715
      %v490 = vmul.f32 %v413, 0.044715
      %v491 = vmul.f32 %v416, 0.044715
      %v492 = vmul.f32 %v418, 0.044715
      %v493 = vmul.f32 %v421, 0.044715
      %v494 = vmul.f32 %v423, 0.044715
      %v495 = vmul.f32 %v426, 0.044715
      %v496 = vmul.f32 %v428, 0.044715
      %v497 = vmul.f32 %v431, 0.044715
      %v498 = vmul.f32 %v433, 0.044715
      %v499 = vmul.f32 %v467, %v356
      %v500 = vmul.f32 %v468, %v358
      %v501 = vmul.f32 %v469, %v361
      %v502 = vmul.f32 %v470, %v363
      %v503 = vmul.f32 %v471, %v366
      %v504 = vmul.f32 %v472, %v368
      %v505 = vmul.f32 %v473, %v371
      %v506 = vmul.f32 %v474, %v373
      %v507 = vmul.f32 %v475, %v376
      %v508 = vmul.f32 %v476, %v378
      %v509 = vmul.f32 %v477, %v381
      %v510 = vmul.f32 %v478, %v383
      %v511 = vmul.f32 %v479, %v386
      %v512 = vmul.f32 %v480, %v388
      %v513 = vmul.f32 %v481, %v391
      %v514 = vmul.f32 %v482, %v393
      %v515 = vmul.f32 %v483, %v396
      %v516 = vmul.f32 %v484, %v398
      %v517 = vmul.f32 %v485, %v401
      %v518 = vmul.f32 %v486, %v403
      %v519 = vmul.f32 %v487, %v406
      %v520 = vmul.f32 %v488, %v408
      %v521 = vmul.f32 %v489, %v411
      %v522 = vmul.f32 %v490, %v413
      %v523 = vmul.f32 %v491, %v416
      %v524 = vmul.f32 %v492, %v418
      %v525 = vmul.f32 %v493, %v421
      %v526 = vmul.f32 %v494, %v423
      %v527 = vmul.f32 %v495, %v426
      %v528 = vmul.f32 %v496, %v428
      %v529 = vmul.f32 %v497, %v431
      %v530 = vmul.f32 %v498, %v433
      %v531 = vmul.f32 %v499, %v356
      %v532 = vmul.f32 %v500, %v358
      %v533 = vmul.f32 %v501, %v361
      %v534 = vmul.f32 %v502, %v363
      %v535 = vmul.f32 %v503, %v366
      %v536 = vmul.f32 %v504, %v368
      %v537 = vmul.f32 %v505, %v371
      %v538 = vmul.f32 %v506, %v373
      %v539 = vmul.f32 %v507, %v376
      %v540 = vmul.f32 %v508, %v378
      %v541 = vmul.f32 %v509, %v381
      %v542 = vmul.f32 %v510, %v383
      %v543 = vmul.f32 %v511, %v386
      %v544 = vmul.f32 %v512, %v388
      %v545 = vmul.f32 %v513, %v391
      %v546 = vmul.f32 %v514, %v393
      %v547 = vmul.f32 %v515, %v396
      %v548 = vmul.f32 %v516, %v398
      %v549 = vmul.f32 %v517, %v401
      %v550 = vmul.f32 %v518, %v403
      %v551 = vmul.f32 %v519, %v406
      %v552 = vmul.f32 %v520, %v408
      %v553 = vmul.f32 %v521, %v411
      %v554 = vmul.f32 %v522, %v413
      %v555 = vmul.f32 %v523, %v416
      %v556 = vmul.f32 %v524, %v418
      %v557 = vmul.f32 %v525, %v421
      %v558 = vmul.f32 %v526, %v423
      %v559 = vmul.f32 %v527, %v426
      %v560 = vmul.f32 %v528, %v428
      %v561 = vmul.f32 %v529, %v431
      %v562 = vmul.f32 %v530, %v433
      %v563 = vadd.f32 %v356, %v531
      %v564 = vadd.f32 %v358, %v532
      %v565 = vadd.f32 %v361, %v533
      %v566 = vadd.f32 %v363, %v534
      %v567 = vadd.f32 %v366, %v535
      %v568 = vadd.f32 %v368, %v536
      %v569 = vadd.f32 %v371, %v537
      %v570 = vadd.f32 %v373, %v538
      %v571 = vadd.f32 %v376, %v539
      %v572 = vadd.f32 %v378, %v540
      %v573 = vadd.f32 %v381, %v541
      %v574 = vadd.f32 %v383, %v542
      %v575 = vadd.f32 %v386, %v543
      %v576 = vadd.f32 %v388, %v544
      %v577 = vadd.f32 %v391, %v545
      %v578 = vadd.f32 %v393, %v546
      %v579 = vadd.f32 %v396, %v547
      %v580 = vadd.f32 %v398, %v548
      %v581 = vadd.f32 %v401, %v549
      %v582 = vadd.f32 %v403, %v550
      %v583 = vadd.f32 %v406, %v551
      %v584 = vadd.f32 %v408, %v552
      %v585 = vadd.f32 %v411, %v553
      %v586 = vadd.f32 %v413, %v554
      %v587 = vadd.f32 %v416, %v555
      %v588 = vadd.f32 %v418, %v556
      %v589 = vadd.f32 %v421, %v557
      %v590 = vadd.f32 %v423, %v558
      %v591 = vadd.f32 %v426, %v559
      %v592 = vadd.f32 %v428, %v560
      %v593 = vadd.f32 %v431, %v561
      %v594 = vadd.f32 %v433, %v562
      %v595 = vmul.f32 %v563, 0.7978846
      %v596 = vmul.f32 %v564, 0.7978846
      %v597 = vmul.f32 %v565, 0.7978846
      %v598 = vmul.f32 %v566, 0.7978846
      %v599 = vmul.f32 %v567, 0.7978846
      %v600 = vmul.f32 %v568, 0.7978846
      %v601 = vmul.f32 %v569, 0.7978846
      %v602 = vmul.f32 %v570, 0.7978846
      %v603 = vmul.f32 %v571, 0.7978846
      %v604 = vmul.f32 %v572, 0.7978846
      %v605 = vmul.f32 %v573, 0.7978846
      %v606 = vmul.f32 %v574, 0.7978846
      %v607 = vmul.f32 %v575, 0.7978846
      %v608 = vmul.f32 %v576, 0.7978846
      %v609 = vmul.f32 %v577, 0.7978846
      %v610 = vmul.f32 %v578, 0.7978846
      %v611 = vmul.f32 %v579, 0.7978846
      %v612 = vmul.f32 %v580, 0.7978846
      %v613 = vmul.f32 %v581, 0.7978846
      %v614 = vmul.f32 %v582, 0.7978846
      %v615 = vmul.f32 %v583, 0.7978846
      %v616 = vmul.f32 %v584, 0.7978846
      %v617 = vmul.f32 %v585, 0.7978846
      %v618 = vmul.f32 %v586, 0.7978846
      %v619 = vmul.f32 %v587, 0.7978846
      %v620 = vmul.f32 %v588, 0.7978846
      %v621 = vmul.f32 %v589, 0.7978846
      %v622 = vmul.f32 %v590, 0.7978846
      %v623 = vmul.f32 %v591, 0.7978846
      %v624 = vmul.f32 %v592, 0.7978846
      %v625 = vmul.f32 %v593, 0.7978846
      %v626 = vmul.f32 %v594, 0.7978846
      %v627 = vtanh.pop %v595
      %v628 = vtanh.pop %v596
      %v629 = vtanh.pop %v597
      %v630 = vtanh.pop %v598
      %v631 = vtanh.pop %v599
      %v632 = vtanh.pop %v600
      %v633 = vtanh.pop %v601
      %v634 = vtanh.pop %v602
      %v635 = vtanh.pop %v603
      %v636 = vtanh.pop %v604
      %v637 = vtanh.pop %v605
      %v638 = vtanh.pop %v606
      %v639 = vtanh.pop %v607
      %v640 = vtanh.pop %v608
      %v641 = vtanh.pop %v609
      %v642 = vtanh.pop %v610
      %v643 = vtanh.pop %v611
      %v644 = vtanh.pop %v612
      %v645 = vtanh.pop %v613
      %v646 = vtanh.pop %v614
      %v647 = vtanh.pop %v615
      %v648 = vtanh.pop %v616
      %v649 = vtanh.pop %v617
      %v650 = vtanh.pop %v618
      %v651 = vtanh.pop %v619
      %v652 = vtanh.pop %v620
      %v653 = vtanh.pop %v621
      %v654 = vtanh.pop %v622
      %v655 = vtanh.pop %v623
      %v656 = vtanh.pop %v624
      %v657 = vtanh.pop %v625
      %v658 = vtanh.pop %v626
      %v659 = vadd.f32 %v627, 1.0
      %v660 = vadd.f32 %v628, 1.0
      %v661 = vadd.f32 %v629, 1.0
      %v662 = vadd.f32 %v630, 1.0
      %v663 = vadd.f32 %v631, 1.0
      %v664 = vadd.f32 %v632, 1.0
      %v665 = vadd.f32 %v633, 1.0
      %v666 = vadd.f32 %v634, 1.0
      %v667 = vadd.f32 %v635, 1.0
      %v668 = vadd.f32 %v636, 1.0
      %v669 = vadd.f32 %v637, 1.0
      %v670 = vadd.f32 %v638, 1.0
      %v671 = vadd.f32 %v639, 1.0
      %v672 = vadd.f32 %v640, 1.0
      %v673 = vadd.f32 %v641, 1.0
      %v674 = vadd.f32 %v642, 1.0
      %v675 = vadd.f32 %v643, 1.0
      %v676 = vadd.f32 %v644, 1.0
      %v677 = vadd.f32 %v645, 1.0
      %v678 = vadd.f32 %v646, 1.0
      %v679 = vadd.f32 %v647, 1.0
      %v680 = vadd.f32 %v648, 1.0
      %v681 = vadd.f32 %v649, 1.0
      %v682 = vadd.f32 %v650, 1.0
      %v683 = vadd.f32 %v651, 1.0
      %v684 = vadd.f32 %v652, 1.0
      %v685 = vadd.f32 %v653, 1.0
      %v686 = vadd.f32 %v654, 1.0
      %v687 = vadd.f32 %v655, 1.0
      %v688 = vadd.f32 %v656, 1.0
      %v689 = vadd.f32 %v657, 1.0
      %v690 = vadd.f32 %v658, 1.0
      %v691 = vmul.f32 %v435, %v659
      %v692 = vmul.f32 %v436, %v660
      %v693 = vmul.f32 %v437, %v661
      %v694 = vmul.f32 %v438, %v662
      %v695 = vmul.f32 %v439, %v663
      %v696 = vmul.f32 %v440, %v664
      %v697 = vmul.f32 %v441, %v665
      %v698 = vmul.f32 %v442, %v666
      %v699 = vmul.f32 %v443, %v667
      %v700 = vmul.f32 %v444, %v668
      %v701 = vmul.f32 %v445, %v669
      %v702 = vmul.f32 %v446, %v670
      %v703 = vmul.f32 %v447, %v671
      %v704 = vmul.f32 %v448, %v672
      %v705 = vmul.f32 %v449, %v673
      %v706 = vmul.f32 %v450, %v674
      %v707 = vmul.f32 %v451, %v675
      %v708 = vmul.f32 %v452, %v676
      %v709 = vmul.f32 %v453, %v677
      %v710 = vmul.f32 %v454, %v678
      %v711 = vmul.f32 %v455, %v679
      %v712 = vmul.f32 %v456, %v680
      %v713 = vmul.f32 %v457, %v681
      %v714 = vmul.f32 %v458, %v682
      %v715 = vmul.f32 %v459, %v683
      %v716 = vmul.f32 %v460, %v684
      %v717 = vmul.f32 %v461, %v685
      %v718 = vmul.f32 %v462, %v686
      %v719 = vmul.f32 %v463, %v687
      %v720 = vmul.f32 %v464, %v688
      %v721 = vmul.f32 %v465, %v689
      %v722 = vmul.f32 %v466, %v690
      %v723 = vpack.c.bf16 %v692, %v691
      %v724 = vpack.c.bf16 %v694, %v693
      %v725 = vpack.c.bf16 %v696, %v695
      %v726 = vpack.c.bf16 %v698, %v697
      %v727 = vpack.c.bf16 %v700, %v699
      %v728 = vpack.c.bf16 %v702, %v701
      %v729 = vpack.c.bf16 %v704, %v703
      %v730 = vpack.c.bf16 %v706, %v705
      %v731 = vpack.c.bf16 %v708, %v707
      %v732 = vpack.c.bf16 %v710, %v709
      %v733 = vpack.c.bf16 %v712, %v711
      %v734 = vpack.c.bf16 %v714, %v713
      %v735 = vpack.c.bf16 %v716, %v715
      %v736 = vpack.c.bf16 %v718, %v717
      %v737 = vpack.c.bf16 %v720, %v719
      %v738 = vpack.c.bf16 %v722, %v721
      %v739 = vld [vmem:[%s3] sm:$0xf]
      %v740 = vld [vmem:[%s3 + $0x4] sm:$0xf]
      %v741 = vld [vmem:[%s3 + $0x8] sm:$0xf]
      %v742 = vld [vmem:[%s3 + $0xc] sm:$0xf]
      %v743 = vld [vmem:[%s4] sm:$0x1]
      %v745 = vperm.slane %v743, 0
      %v751 = vunpack.c.l.b16 %v739
      %v752 = vunpack.c.l.b16 %v740
      %v753 = vunpack.c.l.b16 %v741
      %v754 = vunpack.c.l.b16 %v742
      %v755 = vpack.c.b16 %v752, %v751
      %v756 = vpack.c.b16 %v754, %v753
      %v760 = vsel %vm297, %v723, 0
      %v763 = vsel %vm297, %v724, 0
      %v766 = vsel %vm297, %v725, 0
      %v769 = vsel %vm297, %v726, 0
      %v772 = vsel %vm297, %v727, 0
      %v775 = vsel %vm297, %v728, 0
      %v778 = vsel %vm297, %v729, 0
      %v781 = vsel %vm297, %v730, 0
      %v784 = vsel %vm297, %v731, 0
      %v787 = vsel %vm297, %v732, 0
      %v790 = vsel %vm297, %v733, 0
      %v793 = vsel %vm297, %v734, 0
      %v796 = vsel %vm297, %v735, 0
      %v799 = vsel %vm297, %v736, 0
      %v802 = vsel %vm297, %v737, 0
      %v805 = vsel %vm297, %v738, 0
      %807 = vmatpush.bf16.msra.mxu0 0
      %808 = vmatpush.bf16.msra.mxu0 0
      %809 = vmatpush.bf16.msra.mxu0 0
      %810 = vmatpush.bf16.msra.mxu0 0
      %811 = vmatpush.bf16.msra.mxu0 0
      %812 = vmatpush.bf16.msra.mxu0 0
      %813 = vmatpush.bf16.msra.mxu0 %v756
      %814 = vmatpush.bf16.msra.mxu0 %v755
      %815 = vmatmul.bf16.gmra.mxu0 %v760
      %v816 = vpop.f32.mrf.mxu0
      %v817 = vadd.f32 %v745, %v816
      %v818 = vpop.f32.mrf.mxu0
      %v819 = vadd.f32 %v745, %v818
      %820 = vmatmul.bf16.gmra.mxu0 %v763
      %v821 = vpop.f32.mrf.mxu0
      %v822 = vadd.f32 %v745, %v821
      %v823 = vpop.f32.mrf.mxu0
      %v824 = vadd.f32 %v745, %v823
      %825 = vmatmul.bf16.gmra.mxu0 %v766
      %v826 = vpop.f32.mrf.mxu0
      %v827 = vadd.f32 %v745, %v826
      %v828 = vpop.f32.mrf.mxu0
      %v829 = vadd.f32 %v745, %v828
      %830 = vmatmul.bf16.gmra.mxu0 %v769
      %v831 = vpop.f32.mrf.mxu0
      %v832 = vadd.f32 %v745, %v831
      %v833 = vpop.f32.mrf.mxu0
      %v834 = vadd.f32 %v745, %v833
      %835 = vmatmul.bf16.gmra.mxu0 %v772
      %v836 = vpop.f32.mrf.mxu0
      %v837 = vadd.f32 %v745, %v836
      %v838 = vpop.f32.mrf.mxu0
      %v839 = vadd.f32 %v745, %v838
      %840 = vmatmul.bf16.gmra.mxu0 %v775
      %v841 = vpop.f32.mrf.mxu0
      %v842 = vadd.f32 %v745, %v841
      %v843 = vpop.f32.mrf.mxu0
      %v844 = vadd.f32 %v745, %v843
      %845 = vmatmul.bf16.gmra.mxu0 %v778
      %v846 = vpop.f32.mrf.mxu0
      %v847 = vadd.f32 %v745, %v846
      %v848 = vpop.f32.mrf.mxu0
      %v849 = vadd.f32 %v745, %v848
      %850 = vmatmul.bf16.gmra.mxu0 %v781
      %v851 = vpop.f32.mrf.mxu0
      %v852 = vadd.f32 %v745, %v851
      %v853 = vpop.f32.mrf.mxu0
      %v854 = vadd.f32 %v745, %v853
      %855 = vmatmul.bf16.gmra.mxu0 %v784
      %v856 = vpop.f32.mrf.mxu0
      %v857 = vadd.f32 %v745, %v856
      %v858 = vpop.f32.mrf.mxu0
      %v859 = vadd.f32 %v745, %v858
      %860 = vmatmul.bf16.gmra.mxu0 %v787
      %v861 = vpop.f32.mrf.mxu0
      %v862 = vadd.f32 %v745, %v861
      %v863 = vpop.f32.mrf.mxu0
      %v864 = vadd.f32 %v745, %v863
      %865 = vmatmul.bf16.gmra.mxu0 %v790
      %v866 = vpop.f32.mrf.mxu0
      %v867 = vadd.f32 %v745, %v866
      %v868 = vpop.f32.mrf.mxu0
      %v869 = vadd.f32 %v745, %v868
      %870 = vmatmul.bf16.gmra.mxu0 %v793
      %v871 = vpop.f32.mrf.mxu0
      %v872 = vadd.f32 %v745, %v871
      %v873 = vpop.f32.mrf.mxu0
      %v874 = vadd.f32 %v745, %v873
      %875 = vmatmul.bf16.gmra.mxu0 %v796
      %v876 = vpop.f32.mrf.mxu0
      %v877 = vadd.f32 %v745, %v876
      %v878 = vpop.f32.mrf.mxu0
      %v879 = vadd.f32 %v745, %v878
      %880 = vmatmul.bf16.gmra.mxu0 %v799
      %v881 = vpop.f32.mrf.mxu0
      %v882 = vadd.f32 %v745, %v881
      %v883 = vpop.f32.mrf.mxu0
      %v884 = vadd.f32 %v745, %v883
      %885 = vmatmul.bf16.gmra.mxu0 %v802
      %v886 = vpop.f32.mrf.mxu0
      %v887 = vadd.f32 %v745, %v886
      %v888 = vpop.f32.mrf.mxu0
      %v889 = vadd.f32 %v745, %v888
      %890 = vmatmul.bf16.gmra.mxu0 %v805
      %v891 = vpop.f32.mrf.mxu0
      %v892 = vadd.f32 %v745, %v891
      %v893 = vpop.f32.mrf.mxu0
      %v894 = vadd.f32 %v745, %v893
      %895 = vdwg.mxu0
      %vm896 = vcmask 15360
      %897 = vst.msk [vmem:[%s226] sm:$0xff] %vm896, %v817
      %898 = vst.msk [vmem:[%s226 + $0x8] sm:$0xff] %vm896, %v819
      %899 = vst.msk [vmem:[%s226 + $0x10] sm:$0xff] %vm896, %v822
      %900 = vst.msk [vmem:[%s226 + $0x18] sm:$0xff] %vm896, %v824
      %901 = vst.msk [vmem:[%s226 + $0x20] sm:$0xff] %vm896, %v827
      %902 = vst.msk [vmem:[%s226 + $0x28] sm:$0xff] %vm896, %v829
      %903 = vst.msk [vmem:[%s226 + $0x30] sm:$0xff] %vm896, %v832
      %904 = vst.msk [vmem:[%s226 + $0x38] sm:$0xff] %vm896, %v834
      %905 = vst.msk [vmem:[%s226 + $0x40] sm:$0xff] %vm896, %v837
      %906 = vst.msk [vmem:[%s226 + $0x48] sm:$0xff] %vm896, %v839
      %907 = vst.msk [vmem:[%s226 + $0x50] sm:$0xff] %vm896, %v842
      %908 = vst.msk [vmem:[%s226 + $0x58] sm:$0xff] %vm896, %v844
      %909 = vst.msk [vmem:[%s226 + $0x60] sm:$0xff] %vm896, %v847
      %910 = vst.msk [vmem:[%s226 + $0x68] sm:$0xff] %vm896, %v849
      %911 = vst.msk [vmem:[%s226 + $0x70] sm:$0xff] %vm896, %v852
      %912 = vst.msk [vmem:[%s226 + $0x78] sm:$0xff] %vm896, %v854
      %913 = vst.msk [vmem:[%s226 + $0x80] sm:$0xff] %vm896, %v857
      %914 = vst.msk [vmem:[%s226 + $0x88] sm:$0xff] %vm896, %v859
      %915 = vst.msk [vmem:[%s226 + $0x90] sm:$0xff] %vm896, %v862
      %916 = vst.msk [vmem:[%s226 + $0x98] sm:$0xff] %vm896, %v864
      %917 = vst.msk [vmem:[%s226 + $0xa0] sm:$0xff] %vm896, %v867
      %918 = vst.msk [vmem:[%s226 + $0xa8] sm:$0xff] %vm896, %v869
      %919 = vst.msk [vmem:[%s226 + $0xb0] sm:$0xff] %vm896, %v872
      %920 = vst.msk [vmem:[%s226 + $0xb8] sm:$0xff] %vm896, %v874
      %921 = vst.msk [vmem:[%s226 + $0xc0] sm:$0xff] %vm896, %v877
      %922 = vst.msk [vmem:[%s226 + $0xc8] sm:$0xff] %vm896, %v879
      %923 = vst.msk [vmem:[%s226 + $0xd0] sm:$0xff] %vm896, %v882
      %924 = vst.msk [vmem:[%s226 + $0xd8] sm:$0xff] %vm896, %v884
      %925 = vst.msk [vmem:[%s226 + $0xe0] sm:$0xff] %vm896, %v887
      %926 = vst.msk [vmem:[%s226 + $0xe8] sm:$0xff] %vm896, %v889
      %927 = vst.msk [vmem:[%s226 + $0xf0] sm:$0xff] %vm896, %v892
      %928 = vst.msk [vmem:[%s226 + $0xf8] sm:$0xff] %vm896, %v894
      %s929 = smul.u32 32, %s16
      %p930 = scmp.lt.s32.totalorder %s929, 63
      %s931 = scalar_select %p930, %s929, 63
      %s932 = smul.addr %s931, 8
      %s933 = scalar_lea.vmem %s5, %s932
      // Predicated region
      $region41: #{fno_forward.11} parent=39 // pred_check
        %p934 = pneg %p144
      $region42: #{fno_forward.11} parent=39 // pred_check_branch
        %936 = sbr.rel (%p934) target = $region44
      $region43: #{fno_forward.11} parent=39 // pred_region
        %s937 = smul.u32 32, %s16
      $region44: #{fno_forward.11} parent=39 // pred_fallthru
        _
    $region40: #{fno_forward.11} parent=5 // pred_fallthru
      _
    %p938 = scmp.le.s32.totalorder 2, %s11
    // Predicated region
    $region45: #{fno_forward.11} parent=5 // pred_check
      %p939 = pneg %p938
    $region46: #{fno_forward.11} parent=5 // pred_check_branch
      %941 = sbr.rel (%p939) target = $region48
    $region47: #{fno_forward.11} parent=5 // pred_region
      %s942 = ssub.s32 %s11, 2
      // Predicated region
      $region49: #{fno_forward.11} parent=47 // pred_check
        %p943 = pneg %p150
      $region50: #{fno_forward.11} parent=47 // pred_check_branch
        %945 = sbr.rel (%p943) target = $region52
      $region51: #{fno_forward.11} parent=47 // pred_region
        %s946 = smul.u32 32, %s17
        %p947 = scmp.lt.s32.totalorder %s946, 63
        %s948 = scalar_select %p947, %s946, 63
        %s949 = smul.addr %s948, 8
        %s950 = scalar_lea.vmem %s5, %s949
      $region52: #{fno_forward.11} parent=47 // pred_fallthru
        _
    $region48: #{fno_forward.11} parent=5 // pred_fallthru
      _
  $region6: #{fno_forward.11} parent=0 // loop_footer
    %s15 = sadd.s32 1, %s11
  $region7: #{fno_forward.11} parent=0 // loop_footer_branch
    %10 = sbr.rel target = $region3
  $region8: #{fno_forward.11} parent=0 // loop_exit
    _

</llo_original>
